<compile_context>
chip_gen: v5e
topology: v5e:2x2
jax: 0.10.0
libtpu: 0.0.40
codegen_flags: <defaults>
</compile_context>

<pallas_src>
import numpy as np
import jax
import jax.numpy as jnp
from jax.experimental import pallas as pl
from jax.experimental.pallas import tpu as pltpu


_NUM_FIELDS = 18                     # 8 pred-box + 8 gt-box + pred_iou + mask
_SUB = 8                             # sublanes per tile
_LANE = 128                          # lanes per tile
_SLOTS_PER_SUBTILE = _SUB * _LANE    # 1024 object slots per (8,128) sub-tile
_MAX_SUBTILES_PER_BLOCK = 8          # 8 sub-tiles -> 576 KiB input block (f32)


def _ceil_div(a, b):
    return -(-a // b)


# ----------------------------- kernel geometry -------------------------------
def _box_corners(dx, dy, cos_r, sin_r, cx=None, cy=None):
    """CCW BEV corners of a rotated rectangle; each entry is an (8,128) tile."""
    hx = dx * 0.5
    hy = dy * 0.5
    local = ((hx, hy), (-hx, hy), (-hx, -hy), (hx, -hy))   # CCW in box frame
    xs, ys = [], []
    for lx, ly in local:
        x = cos_r * lx - sin_r * ly
        y = sin_r * lx + cos_r * ly
        if cx is not None:
            x = x + cx
            y = y + cy
        xs.append(x)
        ys.append(y)
    return tuple(xs), tuple(ys)


def _plane_params(qxs, qys):
    """Per-edge (dqx, dqy, c) of CCW quad Q: inside(p) <=> dqx*py - dqy*px - c >= 0."""
    dqx, dqy, c = [], [], []
    for k in range(4):
        ex = qxs[(k + 1) % 4] - qxs[k]
        ey = qys[(k + 1) % 4] - qys[k]
        dqx.append(ex)
        dqy.append(ey)
        c.append(ex * qys[k] - ey * qxs[k])
    return dqx, dqy, c


def _corner_plane_signs(pxs, pys, planes):
    """s[j][k] = signed distance of P-corner j against Q-plane k (16 uniques)."""
    dqx, dqy, c = planes
    return [[dqx[k] * pys[j] - dqy[k] * pxs[j] - c[k] for k in range(4)]
            for j in range(4)]


def _clipped_edge_cross_sum(pxs, pys, p_planes, s, strict):
    """sum_e cross(start_e, end_e) over edges of CCW quad P clipped to inside
    of CCW quad Q (parametric clipping; signs `s` precomputed, 16 uniques).
    `strict=True` drops P-edges lying exactly on a Q plane so shared boundary
    segments are counted exactly once across the two passes."""
    pdx, pdy, _ = p_planes               # edge direction of P-edge j == plane j dq
    total = None
    for j in range(4):
        x0, y0 = pxs[j], pys[j]
        ex, ey = pdx[j], pdy[j]
        t_lo = jnp.zeros_like(x0)
        t_hi = jnp.ones_like(x0)
        for k in range(4):
            s0 = s[j][k]
            s1 = s[(j + 1) % 4][k]
            den = s1 - s0
            par = jnp.abs(den) <= 1e-20              # edge parallel to plane
            inv = pl.reciprocal(jnp.where(par, 1.0, den), approx=True)  # EUP
            t_c = -s0 * inv
            t_lo = jnp.where((~par) & (den > 0.0), jnp.maximum(t_lo, t_c), t_lo)
            t_hi = jnp.where((~par) & (den < 0.0), jnp.minimum(t_hi, t_c), t_hi)
            out_flag = (s0 <= 0.0) if strict else (s0 < 0.0)
            t_lo = jnp.where(par & out_flag, 2.0, t_lo)
        keep = (t_hi > t_lo).astype(x0.dtype)
        sx = x0 + t_lo * ex
        sy = y0 + t_lo * ey
        fx = x0 + t_hi * ex
        fy = y0 + t_hi * ey
        contrib = keep * (sx * fy - sy * fx)
        total = contrib if total is None else total + contrib
    return total


def _subtile_err(f_ref, lo):
    """Masked L1 error |pred_iou - (2*iou3d - 1)| for one (8,128) slot sub-tile."""
    def field(r):
        return f_ref[r, :, lo:lo + _LANE]

    # --- BEV rotated-rectangle intersection (height/volume fields loaded later
    #     to keep vreg pressure down during the clip loops). ---
    ax, ay = field(0), field(1)
    adx, ady = field(3), field(4)
    ca, sa = field(6), field(7)
    gx, gy = field(8), field(9)
    gdx, gdy = field(11), field(12)
    cg, sg = field(14), field(15)

    # Recenter both boxes on the GT center: IoU is translation invariant and
    # the f32 cross/shoelace terms keep precision at pcdet coordinate ranges.
    rax = ax - gx
    ray = ay - gy

    axs, ays = _box_corners(adx, ady, ca, sa, rax, ray)
    gxs, gys = _box_corners(gdx, gdy, cg, sg)

    a_pl = _plane_params(axs, ays)
    g_pl = _plane_params(gxs, gys)

    s_ag = _corner_plane_signs(axs, ays, g_pl)
    cross_a = _clipped_edge_cross_sum(axs, ays, a_pl, s_ag, strict=False)
    s_ga = _corner_plane_signs(gxs, gys, a_pl)        # computed late (pressure)
    cross_g = _clipped_edge_cross_sum(gxs, gys, g_pl, s_ga, strict=True)
    inter_bev = jnp.maximum(0.5 * (cross_a + cross_g), 0.0)

    # --- z overlap, volumes, IoU, masked L1 ---
    az, adz = field(2), field(5)
    gz, gdz = field(10), field(13)
    raz = az - gz
    half_adz = 0.5 * adz
    half_gdz = 0.5 * gdz
    overlap_h = jnp.maximum(
        jnp.minimum(raz + half_adz, half_gdz)
        - jnp.maximum(raz - half_adz, -half_gdz), 0.0)
    inter_3d = inter_bev * overlap_h
    vol_a = field(3) * field(4) * adz
    vol_g = field(11) * field(12) * gdz
    iou = inter_3d / jnp.maximum(vol_a + vol_g - inter_3d, 1e-6)  # exact divide

    target = 2.0 * iou - 1.0
    pred_iou = field(16)
    msk = field(17)
    return jnp.where(msk > 0.0, jnp.abs(pred_iou - target), 0.0)


def _iou_loss_kernel(f_ref, err_ref):
    """f_ref: (18, 8, lanes_per_block) packed fields of one grid block.
    err_ref: (8, 128) partial sum of masked per-slot L1 errors for the block."""
    n_sub = f_ref.shape[-1] // _LANE
    acc = jnp.zeros((_SUB, _LANE), jnp.float32)
    for t in range(n_sub):          # static sub-tile loop; serial accumulator
        acc = acc + _subtile_err(f_ref, t * _LANE)
    err_ref[...] = acc


# --------------------------------- wrapper ------------------------------------
def iou_loss_sparse(iou_pred, mask, ind, box_pred, box_gt, batch_index):
    """JAX/Pallas equivalent of IouLossSparse().forward(...).

    iou_pred: (N, 1) f32, mask/ind: (B, M) int, box_pred: (N, 7) f32,
    box_gt: (B, M, >=7) f32 (slot-aligned gt boxes; pcdet prefix-mask targets),
    batch_index: (N,) int.  Returns a scalar f32 loss.
    """
    mask = mask.astype(jnp.float32)
    B, M = mask.shape
    N = box_pred.shape[0]

    # ---- gather glue (XLA): global prediction row of slot (b, k) ------------
    # TODO(synk): the boolean compaction iou_pred[batch_index == b][ind[b]] is a
    # data-dependent gather with no clean BlockSpec equivalent; done with XLA
    # scatter/gather here, all per-object IoU math runs in the Pallas kernel.
    b_range = jnp.arange(B, dtype=jnp.int32)
    member = batch_index[None, :].astype(jnp.int32) == b_range[:, None]       # (B, N)
    pos = jnp.cumsum(member.astype(jnp.int32), axis=1) - 1                    # (B, N)
    row_ids = jnp.broadcast_to(jnp.arange(N, dtype=jnp.int32)[None, :], (B, N))
    b_ids = jnp.broadcast_to(b_range[:, None], (B, N))
    cols = jnp.where(member, pos, N)                                          # N -> dropped
    rowmap = jnp.zeros((B, N), jnp.int32).at[b_ids, cols].set(row_ids, mode="drop")
    global_row = jnp.take_along_axis(rowmap, ind.astype(jnp.int32), axis=1)   # (B, M)

    pred_iou = jnp.reshape(iou_pred, (N, -1))[:, 0][global_row]               # (B, M)
    pred_box = box_pred[global_row].astype(jnp.float32)                       # (B, M, 7)
    gt_box = box_gt[..., :7].astype(jnp.float32)                              # (B, M, 7)

    # ---- block sizing: several (8,128) sub-tiles per grid step --------------
    S = B * M
    n_subtiles = max(1, _ceil_div(S, _SLOTS_PER_SUBTILE))
    # Cap sub-tiles/block so the grid stays >= 2 when possible (v7x megacore).
    subtiles_per_block = max(1, min(_MAX_SUBTILES_PER_BLOCK, (n_subtiles + 1) // 2))
    grid = _ceil_div(n_subtiles, subtiles_per_block)
    lanes_per_block = subtiles_per_block * _LANE
    S_pad = grid * subtiles_per_block * _SLOTS_PER_SUBTILE

    # Grid-major packing: (grid, 18, 8, lanes_per_block) -> every block is one
    # contiguous HBM slab (single DMA per step, no strided descriptors).
    def pack(x):
        x = jnp.pad(jnp.reshape(x.astype(jnp.float32), (S,)), (0, S_pad - S))
        return jnp.reshape(x, (grid, _SUB, lanes_per_block))

    fields = jnp.stack([
        pack(pred_box[..., 0]), pack(pred_box[..., 1]), pack(pred_box[..., 2]),
        pack(pred_box[..., 3]), pack(pred_box[..., 4]), pack(pred_box[..., 5]),
        pack(jnp.cos(pred_box[..., 6])), pack(jnp.sin(pred_box[..., 6])),
        pack(gt_box[..., 0]), pack(gt_box[..., 1]), pack(gt_box[..., 2]),
        pack(gt_box[..., 3]), pack(gt_box[..., 4]), pack(gt_box[..., 5]),
        pack(jnp.cos(gt_box[..., 6])), pack(jnp.sin(gt_box[..., 6])),
        pack(pred_iou), pack(mask),
    ], axis=1)                                           # (grid, 18, 8, lanes)

    per_block_err = pl.pallas_call(
        _iou_loss_kernel,
        out_shape=jax.ShapeDtypeStruct((grid, _SUB, _LANE), jnp.float32),
        grid=(grid,),
        in_specs=[pl.BlockSpec((None, _NUM_FIELDS, _SUB, lanes_per_block),
                               lambda i: (i, 0, 0, 0))],
        out_specs=pl.BlockSpec((None, _SUB, _LANE), lambda i: (i, 0, 0)),
        compiler_params=pltpu.CompilerParams(dimension_semantics=("parallel",)),
    )(fields)

    # Matches the module: sum of masked L1 / (mask.sum() + 1e-4).
    # (mask.sum() == 0 yields 0.0, same value as the module's early return.)
    return jnp.sum(per_block_err) / (jnp.sum(mask) + 1e-4)


# ----------------------------- numpy reference -------------------------------
def _rect_corners_np(box):
    x, y, _, dx, dy, _, r = [float(v) for v in box[:7]]
    c, s = np.cos(r), np.sin(r)
    out = []
    for lx, ly in ((dx / 2, dy / 2), (-dx / 2, dy / 2),
                   (-dx / 2, -dy / 2), (dx / 2, -dy / 2)):
        out.append(np.array([x + c * lx - s * ly, y + s * lx + c * ly]))
    return out


def _clip_poly_np(poly, a, b):
    """Sutherland-Hodgman clip of polygon to the left of directed edge a->b."""
    res = []
    d = b - a
    n = len(poly)
    for i in range(n):
        cur, nxt = poly[i], poly[(i + 1) % n]
        sc = d[0] * (cur[1] - a[1]) - d[1] * (cur[0] - a[0])
        sn = d[0] * (nxt[1] - a[1]) - d[1] * (nxt[0] - a[0])
        if sc >= 0:
            res.append(cur)
        if (sc < 0) != (sn < 0):
            t = sc / (sc - sn)
            res.append(cur + t * (nxt - cur))
    return res


def _bev_intersection_np(box_a, box_b):
    poly = _rect_corners_np(box_a)
    clip = _rect_corners_np(box_b)
    for k in range(4):
        if not poly:
            return 0.0
        poly = _clip_poly_np(poly, clip[k], clip[(k + 1) % 4])
    if len(poly) < 3:
        return 0.0
    area = 0.0
    for i in range(len(poly)):
        x0, y0 = poly[i]
        x1, y1 = poly[(i + 1) % len(poly)]
        area += x0 * y1 - y0 * x1
    return abs(area) * 0.5


def _aligned_iou3d_np(a, b):
    inter_bev = _bev_intersection_np(a, b)
    hmax = min(a[2] + a[5] / 2, b[2] + b[5] / 2)
    hmin = max(a[2] - a[5] / 2, b[2] - b[5] / 2)
    inter = inter_bev * max(hmax - hmin, 0.0)
    vol_a = a[3] * a[4] * a[5]
    vol_b = b[3] * b[4] * b[5]
    return inter / max(vol_a + vol_b - inter, 1e-6)


def _reference_loss(iou_pred, mask, ind, box_pred, box_gt, batch_index):
    """Pure numpy mirror of the PyTorch forward (independent clipping algo)."""
    iou_pred = np.asarray(iou_pred, np.float64).reshape(len(iou_pred), -1)[:, 0]
    mask = np.asarray(mask)
    ind = np.asarray(ind)
    box_pred = np.asarray(box_pred, np.float64)
    box_gt = np.asarray(box_gt, np.float64)
    batch_index = np.asarray(batch_index)
    if mask.sum() == 0:
        return 0.0
    total = 0.0
    for b in range(mask.shape[0]):
        rows = np.nonzero(batch_index == b)[0]
        sel = rows[ind[b]]
        mb = mask[b].astype(bool)
        pred = iou_pred[sel][mb]
        pbox = box_pred[sel][mb]
        gbox = box_gt[b, :, :7][mb]      # prefix mask => same rows the module pairs with
        for p, pb_, gb_ in zip(pred, pbox, gbox):
            t = 2.0 * _aligned_iou3d_np(pb_, gb_) - 1.0
            total += abs(p - t)
    return total / (mask.sum() + 0.0001)


if __name__ == "__main__":
    B, M = 2, 32                 # batch, max_objects
    counts = (40, 24)            # predictions per batch element
    N = sum(counts)
    n_valid = (9, 6)             # objects actually present per batch element

    keys = jax.random.split(jax.random.PRNGKey(0), 12)

    batch_index = jnp.concatenate(
        [jnp.full((c,), b, jnp.int32) for b, c in enumerate(counts)])
    batch_index = jax.random.permutation(keys[0], batch_index)

    mask_np = np.zeros((B, M), np.int32)
    for b in range(B):
        mask_np[b, :n_valid[b]] = 1                      # pcdet-style prefix mask
    ind_np = np.where(
        mask_np > 0,
        np.asarray(jax.random.randint(keys[1], (B, M), 0, min(counts))), 0
    ).astype(np.int32)

    def rand_boxes(kxy, kz, kd, kr, shape):
        xy = jax.random.uniform(kxy, shape + (2,), minval=-20.0, maxval=20.0)
        z = jax.random.uniform(kz, shape + (1,), minval=-1.0, maxval=1.0)
        d = jax.random.uniform(kd, shape + (3,), minval=1.0, maxval=4.0)
        r = jax.random.uniform(kr, shape + (1,), minval=-np.pi, maxval=np.pi)
        return jnp.concatenate([xy, z, d, r], axis=-1)

    box_gt = rand_boxes(keys[2], keys[3], keys[4], keys[5], (B, M))
    # Writable host copy (np.asarray of a jax Array is read-only).
    box_pred_np = np.asarray(
        rand_boxes(keys[6], keys[7], keys[8], keys[9], (N,)), np.float32).copy()
    iou_pred = jax.random.uniform(keys[10], (N, 1), minval=-1.0, maxval=1.0,
                                  dtype=jnp.float32)

    # Predictions that actually enter the loss become noisy copies of their
    # matched gt boxes so the rotated-overlap path is exercised with overlap.
    noise = np.asarray(jax.random.normal(keys[11], (B, M, 7)), np.float32)
    bi_np = np.asarray(batch_index)
    gt_np = np.asarray(box_gt, np.float32)
    for b in range(B):
        rows = np.nonzero(bi_np == b)[0]
        for k in range(n_valid[b]):
            r = rows[ind_np[b, k]]
            box_pred_np[r, 0:3] = gt_np[b, k, 0:3] + 0.3 * noise[b, k, 0:3]
            box_pred_np[r, 3:6] = gt_np[b, k, 3:6] * (1.0 + 0.1 * np.abs(noise[b, k, 3:6]))
            box_pred_np[r, 6] = gt_np[b, k, 6] + 0.1 * noise[b, k, 6]

    mask = jnp.asarray(mask_np)
    ind = jnp.asarray(ind_np)
    box_pred = jnp.asarray(box_pred_np)

    loss = jax.jit(iou_loss_sparse)(iou_pred, mask, ind, box_pred, box_gt, batch_index)
    loss = jax.block_until_ready(loss)

    ref = _reference_loss(iou_pred, mask, ind, box_pred, box_gt, batch_index)
    assert np.isfinite(float(loss)), float(loss)
    assert abs(float(loss) - float(ref)) < 2e-3, (float(loss), float(ref))
    print("KERNEL_OK")
</pallas_src>

<mosaic_0001>
module attributes {stable_mosaic.version = 11 : i64} {
  func.func @_iou_loss_kernel(%arg0: i32, %arg1: memref<1x18x8x128xf32, #tpu.memory_space<vmem>>, %arg2: memref<1x8x128xf32, #tpu.memory_space<vmem>>) attributes {dimension_semantics = [#tpu.dimension_semantics<parallel>], iteration_bounds = array<i64: 1>, scalar_prefetch = 0 : i64, scratch_operands = 0 : i64, tpu.core_type = #tpu.core_type<tc>, window_params = [{transform_indices = @transform_0, window_bounds = array<i64: 1, 18, 8, 128>}, {transform_indices = @transform_1, window_bounds = array<i64: 1, 8, 128>}]} {
    %cst = arith.constant 0.000000e+00 : f32
    %0 = vector.broadcast %cst : f32 to vector<8x128xf32>
    %c0 = arith.constant 0 : index
    %c0_0 = arith.constant 0 : index
    %c0_1 = arith.constant 0 : index
    %c0_2 = arith.constant 0 : index
    %1 = vector.load %arg1[%c0, %c0_0, %c0_1, %c0_2] : memref<1x18x8x128xf32, #tpu.memory_space<vmem>>, vector<1x1x8x128xf32>
    %2 = vector.shape_cast %1 : vector<1x1x8x128xf32> to vector<8x128xf32>
    %c0_3 = arith.constant 0 : index
    %c1 = arith.constant 1 : index
    %c0_4 = arith.constant 0 : index
    %c0_5 = arith.constant 0 : index
    %3 = vector.load %arg1[%c0_3, %c1, %c0_4, %c0_5] : memref<1x18x8x128xf32, #tpu.memory_space<vmem>>, vector<1x1x8x128xf32>
    %4 = vector.shape_cast %3 : vector<1x1x8x128xf32> to vector<8x128xf32>
    %c0_6 = arith.constant 0 : index
    %c3 = arith.constant 3 : index
    %c0_7 = arith.constant 0 : index
    %c0_8 = arith.constant 0 : index
    %5 = vector.load %arg1[%c0_6, %c3, %c0_7, %c0_8] : memref<1x18x8x128xf32, #tpu.memory_space<vmem>>, vector<1x1x8x128xf32>
    %6 = vector.shape_cast %5 : vector<1x1x8x128xf32> to vector<8x128xf32>
    %c0_9 = arith.constant 0 : index
    %c4 = arith.constant 4 : index
    %c0_10 = arith.constant 0 : index
    %c0_11 = arith.constant 0 : index
    %7 = vector.load %arg1[%c0_9, %c4, %c0_10, %c0_11] : memref<1x18x8x128xf32, #tpu.memory_space<vmem>>, vector<1x1x8x128xf32>
    %8 = vector.shape_cast %7 : vector<1x1x8x128xf32> to vector<8x128xf32>
    %c0_12 = arith.constant 0 : index
    %c6 = arith.constant 6 : index
    %c0_13 = arith.constant 0 : index
    %c0_14 = arith.constant 0 : index
    %9 = vector.load %arg1[%c0_12, %c6, %c0_13, %c0_14] : memref<1x18x8x128xf32, #tpu.memory_space<vmem>>, vector<1x1x8x128xf32>
    %10 = vector.shape_cast %9 : vector<1x1x8x128xf32> to vector<8x128xf32>
    %c0_15 = arith.constant 0 : index
    %c7 = arith.constant 7 : index
    %c0_16 = arith.constant 0 : index
    %c0_17 = arith.constant 0 : index
    %11 = vector.load %arg1[%c0_15, %c7, %c0_16, %c0_17] : memref<1x18x8x128xf32, #tpu.memory_space<vmem>>, vector<1x1x8x128xf32>
    %12 = vector.shape_cast %11 : vector<1x1x8x128xf32> to vector<8x128xf32>
    %c0_18 = arith.constant 0 : index
    %c8 = arith.constant 8 : index
    %c0_19 = arith.constant 0 : index
    %c0_20 = arith.constant 0 : index
    %13 = vector.load %arg1[%c0_18, %c8, %c0_19, %c0_20] : memref<1x18x8x128xf32, #tpu.memory_space<vmem>>, vector<1x1x8x128xf32>
    %14 = vector.shape_cast %13 : vector<1x1x8x128xf32> to vector<8x128xf32>
    %c0_21 = arith.constant 0 : index
    %c9 = arith.constant 9 : index
    %c0_22 = arith.constant 0 : index
    %c0_23 = arith.constant 0 : index
    %15 = vector.load %arg1[%c0_21, %c9, %c0_22, %c0_23] : memref<1x18x8x128xf32, #tpu.memory_space<vmem>>, vector<1x1x8x128xf32>
    %16 = vector.shape_cast %15 : vector<1x1x8x128xf32> to vector<8x128xf32>
    %c0_24 = arith.constant 0 : index
    %c11 = arith.constant 11 : index
    %c0_25 = arith.constant 0 : index
    %c0_26 = arith.constant 0 : index
    %17 = vector.load %arg1[%c0_24, %c11, %c0_25, %c0_26] : memref<1x18x8x128xf32, #tpu.memory_space<vmem>>, vector<1x1x8x128xf32>
    %18 = vector.shape_cast %17 : vector<1x1x8x128xf32> to vector<8x128xf32>
    %c0_27 = arith.constant 0 : index
    %c12 = arith.constant 12 : index
    %c0_28 = arith.constant 0 : index
    %c0_29 = arith.constant 0 : index
    %19 = vector.load %arg1[%c0_27, %c12, %c0_28, %c0_29] : memref<1x18x8x128xf32, #tpu.memory_space<vmem>>, vector<1x1x8x128xf32>
    %20 = vector.shape_cast %19 : vector<1x1x8x128xf32> to vector<8x128xf32>
    %c0_30 = arith.constant 0 : index
    %c14 = arith.constant 14 : index
    %c0_31 = arith.constant 0 : index
    %c0_32 = arith.constant 0 : index
    %21 = vector.load %arg1[%c0_30, %c14, %c0_31, %c0_32] : memref<1x18x8x128xf32, #tpu.memory_space<vmem>>, vector<1x1x8x128xf32>
    %22 = vector.shape_cast %21 : vector<1x1x8x128xf32> to vector<8x128xf32>
    %c0_33 = arith.constant 0 : index
    %c15 = arith.constant 15 : index
    %c0_34 = arith.constant 0 : index
    %c0_35 = arith.constant 0 : index
    %23 = vector.load %arg1[%c0_33, %c15, %c0_34, %c0_35] : memref<1x18x8x128xf32, #tpu.memory_space<vmem>>, vector<1x1x8x128xf32>
    %24 = vector.shape_cast %23 : vector<1x1x8x128xf32> to vector<8x128xf32>
    %25 = arith.subf %2, %14 : vector<8x128xf32>
    %26 = arith.subf %4, %16 : vector<8x128xf32>
    %cst_36 = arith.constant 5.000000e-01 : f32
    %27 = vector.broadcast %cst_36 : f32 to vector<8x128xf32>
    %28 = arith.mulf %6, %27 : vector<8x128xf32>
    %cst_37 = arith.constant 5.000000e-01 : f32
    %29 = vector.broadcast %cst_37 : f32 to vector<8x128xf32>
    %30 = arith.mulf %8, %29 : vector<8x128xf32>
    %cst_38 = arith.constant 0.000000e+00 : f32
    %31 = vector.broadcast %cst_38 : f32 to vector<8x128xf32>
    %32 = arith.subf %31, %28 : vector<8x128xf32>
    %cst_39 = arith.constant 0.000000e+00 : f32
    %33 = vector.broadcast %cst_39 : f32 to vector<8x128xf32>
    %34 = arith.subf %33, %28 : vector<8x128xf32>
    %cst_40 = arith.constant 0.000000e+00 : f32
    %35 = vector.broadcast %cst_40 : f32 to vector<8x128xf32>
    %36 = arith.subf %35, %30 : vector<8x128xf32>
    %cst_41 = arith.constant 0.000000e+00 : f32
    %37 = vector.broadcast %cst_41 : f32 to vector<8x128xf32>
    %38 = arith.subf %37, %30 : vector<8x128xf32>
    %39 = arith.mulf %10, %28 : vector<8x128xf32>
    %40 = arith.mulf %12, %30 : vector<8x128xf32>
    %41 = arith.subf %39, %40 : vector<8x128xf32>
    %42 = arith.mulf %12, %28 : vector<8x128xf32>
    %43 = arith.mulf %10, %30 : vector<8x128xf32>
    %44 = arith.addf %42, %43 : vector<8x128xf32>
    %45 = arith.addf %41, %25 : vector<8x128xf32>
    %46 = arith.addf %44, %26 : vector<8x128xf32>
    %47 = arith.mulf %10, %32 : vector<8x128xf32>
    %48 = arith.mulf %12, %30 : vector<8x128xf32>
    %49 = arith.subf %47, %48 : vector<8x128xf32>
    %50 = arith.mulf %12, %32 : vector<8x128xf32>
    %51 = arith.mulf %10, %30 : vector<8x128xf32>
    %52 = arith.addf %50, %51 : vector<8x128xf32>
    %53 = arith.addf %49, %25 : vector<8x128xf32>
    %54 = arith.addf %52, %26 : vector<8x128xf32>
    %55 = arith.mulf %10, %34 : vector<8x128xf32>
    %56 = arith.mulf %12, %36 : vector<8x128xf32>
    %57 = arith.subf %55, %56 : vector<8x128xf32>
    %58 = arith.mulf %12, %34 : vector<8x128xf32>
    %59 = arith.mulf %10, %36 : vector<8x128xf32>
    %60 = arith.addf %58, %59 : vector<8x128xf32>
    %61 = arith.addf %57, %25 : vector<8x128xf32>
    %62 = arith.addf %60, %26 : vector<8x128xf32>
    %63 = arith.mulf %10, %28 : vector<8x128xf32>
    %64 = arith.mulf %12, %38 : vector<8x128xf32>
    %65 = arith.subf %63, %64 : vector<8x128xf32>
    %66 = arith.mulf %12, %28 : vector<8x128xf32>
    %67 = arith.mulf %10, %38 : vector<8x128xf32>
    %68 = arith.addf %66, %67 : vector<8x128xf32>
    %69 = arith.addf %65, %25 : vector<8x128xf32>
    %70 = arith.addf %68, %26 : vector<8x128xf32>
    %cst_42 = arith.constant 5.000000e-01 : f32
    %71 = vector.broadcast %cst_42 : f32 to vector<8x128xf32>
    %72 = arith.mulf %18, %71 : vector<8x128xf32>
    %cst_43 = arith.constant 5.000000e-01 : f32
    %73 = vector.broadcast %cst_43 : f32 to vector<8x128xf32>
    %74 = arith.mulf %20, %73 : vector<8x128xf32>
    %cst_44 = arith.constant 0.000000e+00 : f32
    %75 = vector.broadcast %cst_44 : f32 to vector<8x128xf32>
    %76 = arith.subf %75, %72 : vector<8x128xf32>
    %cst_45 = arith.constant 0.000000e+00 : f32
    %77 = vector.broadcast %cst_45 : f32 to vector<8x128xf32>
    %78 = arith.subf %77, %72 : vector<8x128xf32>
    %cst_46 = arith.constant 0.000000e+00 : f32
    %79 = vector.broadcast %cst_46 : f32 to vector<8x128xf32>
    %80 = arith.subf %79, %74 : vector<8x128xf32>
    %cst_47 = arith.constant 0.000000e+00 : f32
    %81 = vector.broadcast %cst_47 : f32 to vector<8x128xf32>
    %82 = arith.subf %81, %74 : vector<8x128xf32>
    %83 = arith.mulf %22, %72 : vector<8x128xf32>
    %84 = arith.mulf %24, %74 : vector<8x128xf32>
    %85 = arith.subf %83, %84 : vector<8x128xf32>
    %86 = arith.mulf %24, %72 : vector<8x128xf32>
    %87 = arith.mulf %22, %74 : vector<8x128xf32>
    %88 = arith.addf %86, %87 : vector<8x128xf32>
    %89 = arith.mulf %22, %76 : vector<8x128xf32>
    %90 = arith.mulf %24, %74 : vector<8x128xf32>
    %91 = arith.subf %89, %90 : vector<8x128xf32>
    %92 = arith.mulf %24, %76 : vector<8x128xf32>
    %93 = arith.mulf %22, %74 : vector<8x128xf32>
    %94 = arith.addf %92, %93 : vector<8x128xf32>
    %95 = arith.mulf %22, %78 : vector<8x128xf32>
    %96 = arith.mulf %24, %80 : vector<8x128xf32>
    %97 = arith.subf %95, %96 : vector<8x128xf32>
    %98 = arith.mulf %24, %78 : vector<8x128xf32>
    %99 = arith.mulf %22, %80 : vector<8x128xf32>
    %100 = arith.addf %98, %99 : vector<8x128xf32>
    %101 = arith.mulf %22, %72 : vector<8x128xf32>
    %102 = arith.mulf %24, %82 : vector<8x128xf32>
    %103 = arith.subf %101, %102 : vector<8x128xf32>
    %104 = arith.mulf %24, %72 : vector<8x128xf32>
    %105 = arith.mulf %22, %82 : vector<8x128xf32>
    %106 = arith.addf %104, %105 : vector<8x128xf32>
    %107 = arith.subf %53, %45 : vector<8x128xf32>
    %108 = arith.subf %54, %46 : vector<8x128xf32>
    %109 = arith.mulf %107, %46 : vector<8x128xf32>
    %110 = arith.mulf %108, %45 : vector<8x128xf32>
    %111 = arith.subf %109, %110 : vector<8x128xf32>
    %112 = arith.subf %61, %53 : vector<8x128xf32>
    %113 = arith.subf %62, %54 : vector<8x128xf32>
    %114 = arith.mulf %112, %54 : vector<8x128xf32>
    %115 = arith.mulf %113, %53 : vector<8x128xf32>
    %116 = arith.subf %114, %115 : vector<8x128xf32>
    %117 = arith.subf %69, %61 : vector<8x128xf32>
    %118 = arith.subf %70, %62 : vector<8x128xf32>
    %119 = arith.mulf %117, %62 : vector<8x128xf32>
    %120 = arith.mulf %118, %61 : vector<8x128xf32>
    %121 = arith.subf %119, %120 : vector<8x128xf32>
    %122 = arith.subf %45, %69 : vector<8x128xf32>
    %123 = arith.subf %46, %70 : vector<8x128xf32>
    %124 = arith.mulf %122, %70 : vector<8x128xf32>
    %125 = arith.mulf %123, %69 : vector<8x128xf32>
    %126 = arith.subf %124, %125 : vector<8x128xf32>
    %127 = arith.subf %91, %85 : vector<8x128xf32>
    %128 = arith.subf %94, %88 : vector<8x128xf32>
    %129 = arith.mulf %127, %88 : vector<8x128xf32>
    %130 = arith.mulf %128, %85 : vector<8x128xf32>
    %131 = arith.subf %129, %130 : vector<8x128xf32>
    %132 = arith.subf %97, %91 : vector<8x128xf32>
    %133 = arith.subf %100, %94 : vector<8x128xf32>
    %134 = arith.mulf %132, %94 : vector<8x128xf32>
    %135 = arith.mulf %133, %91 : vector<8x128xf32>
    %136 = arith.subf %134, %135 : vector<8x128xf32>
    %137 = arith.subf %103, %97 : vector<8x128xf32>
    %138 = arith.subf %106, %100 : vector<8x128xf32>
    %139 = arith.mulf %137, %100 : vector<8x128xf32>
    %140 = arith.mulf %138, %97 : vector<8x128xf32>
    %141 = arith.subf %139, %140 : vector<8x128xf32>
    %142 = arith.subf %85, %103 : vector<8x128xf32>
    %143 = arith.subf %88, %106 : vector<8x128xf32>
    %144 = arith.mulf %142, %106 : vector<8x128xf32>
    %145 = arith.mulf %143, %103 : vector<8x128xf32>
    %146 = arith.subf %144, %145 : vector<8x128xf32>
    %147 = arith.mulf %127, %46 : vector<8x128xf32>
    %148 = arith.mulf %128, %45 : vector<8x128xf32>
    %149 = arith.subf %147, %148 : vector<8x128xf32>
    %150 = arith.subf %149, %131 : vector<8x128xf32>
    %151 = arith.mulf %132, %46 : vector<8x128xf32>
    %152 = arith.mulf %133, %45 : vector<8x128xf32>
    %153 = arith.subf %151, %152 : vector<8x128xf32>
    %154 = arith.subf %153, %136 : vector<8x128xf32>
    %155 = arith.mulf %137, %46 : vector<8x128xf32>
    %156 = arith.mulf %138, %45 : vector<8x128xf32>
    %157 = arith.subf %155, %156 : vector<8x128xf32>
    %158 = arith.subf %157, %141 : vector<8x128xf32>
    %159 = arith.mulf %142, %46 : vector<8x128xf32>
    %160 = arith.mulf %143, %45 : vector<8x128xf32>
    %161 = arith.subf %159, %160 : vector<8x128xf32>
    %162 = arith.subf %161, %146 : vector<8x128xf32>
    %163 = arith.mulf %127, %54 : vector<8x128xf32>
    %164 = arith.mulf %128, %53 : vector<8x128xf32>
    %165 = arith.subf %163, %164 : vector<8x128xf32>
    %166 = arith.subf %165, %131 : vector<8x128xf32>
    %167 = arith.mulf %132, %54 : vector<8x128xf32>
    %168 = arith.mulf %133, %53 : vector<8x128xf32>
    %169 = arith.subf %167, %168 : vector<8x128xf32>
    %170 = arith.subf %169, %136 : vector<8x128xf32>
    %171 = arith.mulf %137, %54 : vector<8x128xf32>
    %172 = arith.mulf %138, %53 : vector<8x128xf32>
    %173 = arith.subf %171, %172 : vector<8x128xf32>
    %174 = arith.subf %173, %141 : vector<8x128xf32>
    %175 = arith.mulf %142, %54 : vector<8x128xf32>
    %176 = arith.mulf %143, %53 : vector<8x128xf32>
    %177 = arith.subf %175, %176 : vector<8x128xf32>
    %178 = arith.subf %177, %146 : vector<8x128xf32>
    %179 = arith.mulf %127, %62 : vector<8x128xf32>
    %180 = arith.mulf %128, %61 : vector<8x128xf32>
    %181 = arith.subf %179, %180 : vector<8x128xf32>
    %182 = arith.subf %181, %131 : vector<8x128xf32>
    %183 = arith.mulf %132, %62 : vector<8x128xf32>
    %184 = arith.mulf %133, %61 : vector<8x128xf32>
    %185 = arith.subf %183, %184 : vector<8x128xf32>
    %186 = arith.subf %185, %136 : vector<8x128xf32>
    %187 = arith.mulf %137, %62 : vector<8x128xf32>
    %188 = arith.mulf %138, %61 : vector<8x128xf32>
    %189 = arith.subf %187, %188 : vector<8x128xf32>
    %190 = arith.subf %189, %141 : vector<8x128xf32>
    %191 = arith.mulf %142, %62 : vector<8x128xf32>
    %192 = arith.mulf %143, %61 : vector<8x128xf32>
    %193 = arith.subf %191, %192 : vector<8x128xf32>
    %194 = arith.subf %193, %146 : vector<8x128xf32>
    %195 = arith.mulf %127, %70 : vector<8x128xf32>
    %196 = arith.mulf %128, %69 : vector<8x128xf32>
    %197 = arith.subf %195, %196 : vector<8x128xf32>
    %198 = arith.subf %197, %131 : vector<8x128xf32>
    %199 = arith.mulf %132, %70 : vector<8x128xf32>
    %200 = arith.mulf %133, %69 : vector<8x128xf32>
    %201 = arith.subf %199, %200 : vector<8x128xf32>
    %202 = arith.subf %201, %136 : vector<8x128xf32>
    %203 = arith.mulf %137, %70 : vector<8x128xf32>
    %204 = arith.mulf %138, %69 : vector<8x128xf32>
    %205 = arith.subf %203, %204 : vector<8x128xf32>
    %206 = arith.subf %205, %141 : vector<8x128xf32>
    %207 = arith.mulf %142, %70 : vector<8x128xf32>
    %208 = arith.mulf %143, %69 : vector<8x128xf32>
    %209 = arith.subf %207, %208 : vector<8x128xf32>
    %210 = arith.subf %209, %146 : vector<8x128xf32>
    %cst_48 = arith.constant 0.000000e+00 : f32
    %211 = vector.broadcast %cst_48 : f32 to vector<8x128xf32>
    %cst_49 = arith.constant 1.000000e+00 : f32
    %212 = vector.broadcast %cst_49 : f32 to vector<8x128xf32>
    %213 = arith.subf %166, %150 : vector<8x128xf32>
    %214 = math.absf %213 : vector<8x128xf32>
    %cst_50 = arith.constant 9.99999968E-21 : f32
    %215 = vector.broadcast %cst_50 : f32 to vector<8x128xf32>
    %216 = arith.cmpf ole, %214, %215 : vector<8x128xf32>
    %cst_51 = arith.constant 1.000000e+00 : f32
    %217 = vector.broadcast %cst_51 : f32 to vector<8x128xf32>
    %218 = arith.select %216, %217, %213 : vector<8x128xi1>, vector<8x128xf32>
    %219 = tpu.reciprocal %218 {approx = true} : vector<8x128xf32> -> vector<8x128xf32>
    %cst_52 = arith.constant 0.000000e+00 : f32
    %220 = vector.broadcast %cst_52 : f32 to vector<8x128xf32>
    %221 = arith.subf %220, %150 : vector<8x128xf32>
    %222 = arith.mulf %221, %219 : vector<8x128xf32>
    %cst_53 = arith.constant dense<true> : vector<8x128xi1>
    %223 = arith.xori %216, %cst_53 : vector<8x128xi1>
    %cst_54 = arith.constant 0.000000e+00 : f32
    %224 = vector.broadcast %cst_54 : f32 to vector<8x128xf32>
    %225 = arith.cmpf ogt, %213, %224 : vector<8x128xf32>
    %226 = arith.andi %223, %225 : vector<8x128xi1>
    %227 = arith.maximumf %211, %222 : vector<8x128xf32>
    %228 = arith.select %226, %227, %211 : vector<8x128xi1>, vector<8x128xf32>
    %cst_55 = arith.constant dense<true> : vector<8x128xi1>
    %229 = arith.xori %216, %cst_55 : vector<8x128xi1>
    %cst_56 = arith.constant 0.000000e+00 : f32
    %230 = vector.broadcast %cst_56 : f32 to vector<8x128xf32>
    %231 = arith.cmpf olt, %213, %230 : vector<8x128xf32>
    %232 = arith.andi %229, %231 : vector<8x128xi1>
    %233 = arith.minimumf %212, %222 : vector<8x128xf32>
    %234 = arith.select %232, %233, %212 : vector<8x128xi1>, vector<8x128xf32>
    %cst_57 = arith.constant 0.000000e+00 : f32
    %235 = vector.broadcast %cst_57 : f32 to vector<8x128xf32>
    %236 = arith.cmpf olt, %150, %235 : vector<8x128xf32>
    %237 = arith.andi %216, %236 : vector<8x128xi1>
    %cst_58 = arith.constant 2.000000e+00 : f32
    %238 = vector.broadcast %cst_58 : f32 to vector<8x128xf32>
    %239 = arith.select %237, %238, %228 : vector<8x128xi1>, vector<8x128xf32>
    %240 = arith.subf %170, %154 : vector<8x128xf32>
    %241 = math.absf %240 : vector<8x128xf32>
    %cst_59 = arith.constant 9.99999968E-21 : f32
    %242 = vector.broadcast %cst_59 : f32 to vector<8x128xf32>
    %243 = arith.cmpf ole, %241, %242 : vector<8x128xf32>
    %cst_60 = arith.constant 1.000000e+00 : f32
    %244 = vector.broadcast %cst_60 : f32 to vector<8x128xf32>
    %245 = arith.select %243, %244, %240 : vector<8x128xi1>, vector<8x128xf32>
    %246 = tpu.reciprocal %245 {approx = true} : vector<8x128xf32> -> vector<8x128xf32>
    %cst_61 = arith.constant 0.000000e+00 : f32
    %247 = vector.broadcast %cst_61 : f32 to vector<8x128xf32>
    %248 = arith.subf %247, %154 : vector<8x128xf32>
    %249 = arith.mulf %248, %246 : vector<8x128xf32>
    %cst_62 = arith.constant dense<true> : vector<8x128xi1>
    %250 = arith.xori %243, %cst_62 : vector<8x128xi1>
    %cst_63 = arith.constant 0.000000e+00 : f32
    %251 = vector.broadcast %cst_63 : f32 to vector<8x128xf32>
    %252 = arith.cmpf ogt, %240, %251 : vector<8x128xf32>
    %253 = arith.andi %250, %252 : vector<8x128xi1>
    %254 = arith.maximumf %239, %249 : vector<8x128xf32>
    %255 = arith.select %253, %254, %239 : vector<8x128xi1>, vector<8x128xf32>
    %cst_64 = arith.constant dense<true> : vector<8x128xi1>
    %256 = arith.xori %243, %cst_64 : vector<8x128xi1>
    %cst_65 = arith.constant 0.000000e+00 : f32
    %257 = vector.broadcast %cst_65 : f32 to vector<8x128xf32>
    %258 = arith.cmpf olt, %240, %257 : vector<8x128xf32>
    %259 = arith.andi %256, %258 : vector<8x128xi1>
    %260 = arith.minimumf %234, %249 : vector<8x128xf32>
    %261 = arith.select %259, %260, %234 : vector<8x128xi1>, vector<8x128xf32>
    %cst_66 = arith.constant 0.000000e+00 : f32
    %262 = vector.broadcast %cst_66 : f32 to vector<8x128xf32>
    %263 = arith.cmpf olt, %154, %262 : vector<8x128xf32>
    %264 = arith.andi %243, %263 : vector<8x128xi1>
    %cst_67 = arith.constant 2.000000e+00 : f32
    %265 = vector.broadcast %cst_67 : f32 to vector<8x128xf32>
    %266 = arith.select %264, %265, %255 : vector<8x128xi1>, vector<8x128xf32>
    %267 = arith.subf %174, %158 : vector<8x128xf32>
    %268 = math.absf %267 : vector<8x128xf32>
    %cst_68 = arith.constant 9.99999968E-21 : f32
    %269 = vector.broadcast %cst_68 : f32 to vector<8x128xf32>
    %270 = arith.cmpf ole, %268, %269 : vector<8x128xf32>
    %cst_69 = arith.constant 1.000000e+00 : f32
    %271 = vector.broadcast %cst_69 : f32 to vector<8x128xf32>
    %272 = arith.select %270, %271, %267 : vector<8x128xi1>, vector<8x128xf32>
    %273 = tpu.reciprocal %272 {approx = true} : vector<8x128xf32> -> vector<8x128xf32>
    %cst_70 = arith.constant 0.000000e+00 : f32
    %274 = vector.broadcast %cst_70 : f32 to vector<8x128xf32>
    %275 = arith.subf %274, %158 : vector<8x128xf32>
    %276 = arith.mulf %275, %273 : vector<8x128xf32>
    %cst_71 = arith.constant dense<true> : vector<8x128xi1>
    %277 = arith.xori %270, %cst_71 : vector<8x128xi1>
    %cst_72 = arith.constant 0.000000e+00 : f32
    %278 = vector.broadcast %cst_72 : f32 to vector<8x128xf32>
    %279 = arith.cmpf ogt, %267, %278 : vector<8x128xf32>
    %280 = arith.andi %277, %279 : vector<8x128xi1>
    %281 = arith.maximumf %266, %276 : vector<8x128xf32>
    %282 = arith.select %280, %281, %266 : vector<8x128xi1>, vector<8x128xf32>
    %cst_73 = arith.constant dense<true> : vector<8x128xi1>
    %283 = arith.xori %270, %cst_73 : vector<8x128xi1>
    %cst_74 = arith.constant 0.000000e+00 : f32
    %284 = vector.broadcast %cst_74 : f32 to vector<8x128xf32>
    %285 = arith.cmpf olt, %267, %284 : vector<8x128xf32>
    %286 = arith.andi %283, %285 : vector<8x128xi1>
    %287 = arith.minimumf %261, %276 : vector<8x128xf32>
    %288 = arith.select %286, %287, %261 : vector<8x128xi1>, vector<8x128xf32>
    %cst_75 = arith.constant 0.000000e+00 : f32
    %289 = vector.broadcast %cst_75 : f32 to vector<8x128xf32>
    %290 = arith.cmpf olt, %158, %289 : vector<8x128xf32>
    %291 = arith.andi %270, %290 : vector<8x128xi1>
    %cst_76 = arith.constant 2.000000e+00 : f32
    %292 = vector.broadcast %cst_76 : f32 to vector<8x128xf32>
    %293 = arith.select %291, %292, %282 : vector<8x128xi1>, vector<8x128xf32>
    %294 = arith.subf %178, %162 : vector<8x128xf32>
    %295 = math.absf %294 : vector<8x128xf32>
    %cst_77 = arith.constant 9.99999968E-21 : f32
    %296 = vector.broadcast %cst_77 : f32 to vector<8x128xf32>
    %297 = arith.cmpf ole, %295, %296 : vector<8x128xf32>
    %cst_78 = arith.constant 1.000000e+00 : f32
    %298 = vector.broadcast %cst_78 : f32 to vector<8x128xf32>
    %299 = arith.select %297, %298, %294 : vector<8x128xi1>, vector<8x128xf32>
    %300 = tpu.reciprocal %299 {approx = true} : vector<8x128xf32> -> vector<8x128xf32>
    %cst_79 = arith.constant 0.000000e+00 : f32
    %301 = vector.broadcast %cst_79 : f32 to vector<8x128xf32>
    %302 = arith.subf %301, %162 : vector<8x128xf32>
    %303 = arith.mulf %302, %300 : vector<8x128xf32>
    %cst_80 = arith.constant dense<true> : vector<8x128xi1>
    %304 = arith.xori %297, %cst_80 : vector<8x128xi1>
    %cst_81 = arith.constant 0.000000e+00 : f32
    %305 = vector.broadcast %cst_81 : f32 to vector<8x128xf32>
    %306 = arith.cmpf ogt, %294, %305 : vector<8x128xf32>
    %307 = arith.andi %304, %306 : vector<8x128xi1>
    %308 = arith.maximumf %293, %303 : vector<8x128xf32>
    %309 = arith.select %307, %308, %293 : vector<8x128xi1>, vector<8x128xf32>
    %cst_82 = arith.constant dense<true> : vector<8x128xi1>
    %310 = arith.xori %297, %cst_82 : vector<8x128xi1>
    %cst_83 = arith.constant 0.000000e+00 : f32
    %311 = vector.broadcast %cst_83 : f32 to vector<8x128xf32>
    %312 = arith.cmpf olt, %294, %311 : vector<8x128xf32>
    %313 = arith.andi %310, %312 : vector<8x128xi1>
    %314 = arith.minimumf %288, %303 : vector<8x128xf32>
    %315 = arith.select %313, %314, %288 : vector<8x128xi1>, vector<8x128xf32>
    %cst_84 = arith.constant 0.000000e+00 : f32
    %316 = vector.broadcast %cst_84 : f32 to vector<8x128xf32>
    %317 = arith.cmpf olt, %162, %316 : vector<8x128xf32>
    %318 = arith.andi %297, %317 : vector<8x128xi1>
    %cst_85 = arith.constant 2.000000e+00 : f32
    %319 = vector.broadcast %cst_85 : f32 to vector<8x128xf32>
    %320 = arith.select %318, %319, %309 : vector<8x128xi1>, vector<8x128xf32>
    %321 = arith.cmpf ogt, %315, %320 : vector<8x128xf32>
    %322 = arith.extui %321 : vector<8x128xi1> to vector<8x128xi32>
    %323 = arith.sitofp %322 : vector<8x128xi32> to vector<8x128xf32>
    %324 = arith.mulf %320, %107 : vector<8x128xf32>
    %325 = arith.addf %45, %324 : vector<8x128xf32>
    %326 = arith.mulf %320, %108 : vector<8x128xf32>
    %327 = arith.addf %46, %326 : vector<8x128xf32>
    %328 = arith.mulf %315, %107 : vector<8x128xf32>
    %329 = arith.addf %45, %328 : vector<8x128xf32>
    %330 = arith.mulf %315, %108 : vector<8x128xf32>
    %331 = arith.addf %46, %330 : vector<8x128xf32>
    %332 = arith.mulf %325, %331 : vector<8x128xf32>
    %333 = arith.mulf %327, %329 : vector<8x128xf32>
    %334 = arith.subf %332, %333 : vector<8x128xf32>
    %335 = arith.mulf %323, %334 : vector<8x128xf32>
    %cst_86 = arith.constant 0.000000e+00 : f32
    %336 = vector.broadcast %cst_86 : f32 to vector<8x128xf32>
    %cst_87 = arith.constant 1.000000e+00 : f32
    %337 = vector.broadcast %cst_87 : f32 to vector<8x128xf32>
    %338 = arith.subf %182, %166 : vector<8x128xf32>
    %339 = math.absf %338 : vector<8x128xf32>
    %cst_88 = arith.constant 9.99999968E-21 : f32
    %340 = vector.broadcast %cst_88 : f32 to vector<8x128xf32>
    %341 = arith.cmpf ole, %339, %340 : vector<8x128xf32>
    %cst_89 = arith.constant 1.000000e+00 : f32
    %342 = vector.broadcast %cst_89 : f32 to vector<8x128xf32>
    %343 = arith.select %341, %342, %338 : vector<8x128xi1>, vector<8x128xf32>
    %344 = tpu.reciprocal %343 {approx = true} : vector<8x128xf32> -> vector<8x128xf32>
    %cst_90 = arith.constant 0.000000e+00 : f32
    %345 = vector.broadcast %cst_90 : f32 to vector<8x128xf32>
    %346 = arith.subf %345, %166 : vector<8x128xf32>
    %347 = arith.mulf %346, %344 : vector<8x128xf32>
    %cst_91 = arith.constant dense<true> : vector<8x128xi1>
    %348 = arith.xori %341, %cst_91 : vector<8x128xi1>
    %cst_92 = arith.constant 0.000000e+00 : f32
    %349 = vector.broadcast %cst_92 : f32 to vector<8x128xf32>
    %350 = arith.cmpf ogt, %338, %349 : vector<8x128xf32>
    %351 = arith.andi %348, %350 : vector<8x128xi1>
    %352 = arith.maximumf %336, %347 : vector<8x128xf32>
    %353 = arith.select %351, %352, %336 : vector<8x128xi1>, vector<8x128xf32>
    %cst_93 = arith.constant dense<true> : vector<8x128xi1>
    %354 = arith.xori %341, %cst_93 : vector<8x128xi1>
    %cst_94 = arith.constant 0.000000e+00 : f32
    %355 = vector.broadcast %cst_94 : f32 to vector<8x128xf32>
    %356 = arith.cmpf olt, %338, %355 : vector<8x128xf32>
    %357 = arith.andi %354, %356 : vector<8x128xi1>
    %358 = arith.minimumf %337, %347 : vector<8x128xf32>
    %359 = arith.select %357, %358, %337 : vector<8x128xi1>, vector<8x128xf32>
    %cst_95 = arith.constant 0.000000e+00 : f32
    %360 = vector.broadcast %cst_95 : f32 to vector<8x128xf32>
    %361 = arith.cmpf olt, %166, %360 : vector<8x128xf32>
    %362 = arith.andi %341, %361 : vector<8x128xi1>
    %cst_96 = arith.constant 2.000000e+00 : f32
    %363 = vector.broadcast %cst_96 : f32 to vector<8x128xf32>
    %364 = arith.select %362, %363, %353 : vector<8x128xi1>, vector<8x128xf32>
    %365 = arith.subf %186, %170 : vector<8x128xf32>
    %366 = math.absf %365 : vector<8x128xf32>
    %cst_97 = arith.constant 9.99999968E-21 : f32
    %367 = vector.broadcast %cst_97 : f32 to vector<8x128xf32>
    %368 = arith.cmpf ole, %366, %367 : vector<8x128xf32>
    %cst_98 = arith.constant 1.000000e+00 : f32
    %369 = vector.broadcast %cst_98 : f32 to vector<8x128xf32>
    %370 = arith.select %368, %369, %365 : vector<8x128xi1>, vector<8x128xf32>
    %371 = tpu.reciprocal %370 {approx = true} : vector<8x128xf32> -> vector<8x128xf32>
    %cst_99 = arith.constant 0.000000e+00 : f32
    %372 = vector.broadcast %cst_99 : f32 to vector<8x128xf32>
    %373 = arith.subf %372, %170 : vector<8x128xf32>
    %374 = arith.mulf %373, %371 : vector<8x128xf32>
    %cst_100 = arith.constant dense<true> : vector<8x128xi1>
    %375 = arith.xori %368, %cst_100 : vector<8x128xi1>
    %cst_101 = arith.constant 0.000000e+00 : f32
    %376 = vector.broadcast %cst_101 : f32 to vector<8x128xf32>
    %377 = arith.cmpf ogt, %365, %376 : vector<8x128xf32>
    %378 = arith.andi %375, %377 : vector<8x128xi1>
    %379 = arith.maximumf %364, %374 : vector<8x128xf32>
    %380 = arith.select %378, %379, %364 : vector<8x128xi1>, vector<8x128xf32>
    %cst_102 = arith.constant dense<true> : vector<8x128xi1>
    %381 = arith.xori %368, %cst_102 : vector<8x128xi1>
    %cst_103 = arith.constant 0.000000e+00 : f32
    %382 = vector.broadcast %cst_103 : f32 to vector<8x128xf32>
    %383 = arith.cmpf olt, %365, %382 : vector<8x128xf32>
    %384 = arith.andi %381, %383 : vector<8x128xi1>
    %385 = arith.minimumf %359, %374 : vector<8x128xf32>
    %386 = arith.select %384, %385, %359 : vector<8x128xi1>, vector<8x128xf32>
    %cst_104 = arith.constant 0.000000e+00 : f32
    %387 = vector.broadcast %cst_104 : f32 to vector<8x128xf32>
    %388 = arith.cmpf olt, %170, %387 : vector<8x128xf32>
    %389 = arith.andi %368, %388 : vector<8x128xi1>
    %cst_105 = arith.constant 2.000000e+00 : f32
    %390 = vector.broadcast %cst_105 : f32 to vector<8x128xf32>
    %391 = arith.select %389, %390, %380 : vector<8x128xi1>, vector<8x128xf32>
    %392 = arith.subf %190, %174 : vector<8x128xf32>
    %393 = math.absf %392 : vector<8x128xf32>
    %cst_106 = arith.constant 9.99999968E-21 : f32
    %394 = vector.broadcast %cst_106 : f32 to vector<8x128xf32>
    %395 = arith.cmpf ole, %393, %394 : vector<8x128xf32>
    %cst_107 = arith.constant 1.000000e+00 : f32
    %396 = vector.broadcast %cst_107 : f32 to vector<8x128xf32>
    %397 = arith.select %395, %396, %392 : vector<8x128xi1>, vector<8x128xf32>
    %398 = tpu.reciprocal %397 {approx = true} : vector<8x128xf32> -> vector<8x128xf32>
    %cst_108 = arith.constant 0.000000e+00 : f32
    %399 = vector.broadcast %cst_108 : f32 to vector<8x128xf32>
    %400 = arith.subf %399, %174 : vector<8x128xf32>
    %401 = arith.mulf %400, %398 : vector<8x128xf32>
    %cst_109 = arith.constant dense<true> : vector<8x128xi1>
    %402 = arith.xori %395, %cst_109 : vector<8x128xi1>
    %cst_110 = arith.constant 0.000000e+00 : f32
    %403 = vector.broadcast %cst_110 : f32 to vector<8x128xf32>
    %404 = arith.cmpf ogt, %392, %403 : vector<8x128xf32>
    %405 = arith.andi %402, %404 : vector<8x128xi1>
    %406 = arith.maximumf %391, %401 : vector<8x128xf32>
    %407 = arith.select %405, %406, %391 : vector<8x128xi1>, vector<8x128xf32>
    %cst_111 = arith.constant dense<true> : vector<8x128xi1>
    %408 = arith.xori %395, %cst_111 : vector<8x128xi1>
    %cst_112 = arith.constant 0.000000e+00 : f32
    %409 = vector.broadcast %cst_112 : f32 to vector<8x128xf32>
    %410 = arith.cmpf olt, %392, %409 : vector<8x128xf32>
    %411 = arith.andi %408, %410 : vector<8x128xi1>
    %412 = arith.minimumf %386, %401 : vector<8x128xf32>
    %413 = arith.select %411, %412, %386 : vector<8x128xi1>, vector<8x128xf32>
    %cst_113 = arith.constant 0.000000e+00 : f32
    %414 = vector.broadcast %cst_113 : f32 to vector<8x128xf32>
    %415 = arith.cmpf olt, %174, %414 : vector<8x128xf32>
    %416 = arith.andi %395, %415 : vector<8x128xi1>
    %cst_114 = arith.constant 2.000000e+00 : f32
    %417 = vector.broadcast %cst_114 : f32 to vector<8x128xf32>
    %418 = arith.select %416, %417, %407 : vector<8x128xi1>, vector<8x128xf32>
    %419 = arith.subf %194, %178 : vector<8x128xf32>
    %420 = math.absf %419 : vector<8x128xf32>
    %cst_115 = arith.constant 9.99999968E-21 : f32
    %421 = vector.broadcast %cst_115 : f32 to vector<8x128xf32>
    %422 = arith.cmpf ole, %420, %421 : vector<8x128xf32>
    %cst_116 = arith.constant 1.000000e+00 : f32
    %423 = vector.broadcast %cst_116 : f32 to vector<8x128xf32>
    %424 = arith.select %422, %423, %419 : vector<8x128xi1>, vector<8x128xf32>
    %425 = tpu.reciprocal %424 {approx = true} : vector<8x128xf32> -> vector<8x128xf32>
    %cst_117 = arith.constant 0.000000e+00 : f32
    %426 = vector.broadcast %cst_117 : f32 to vector<8x128xf32>
    %427 = arith.subf %426, %178 : vector<8x128xf32>
    %428 = arith.mulf %427, %425 : vector<8x128xf32>
    %cst_118 = arith.constant dense<true> : vector<8x128xi1>
    %429 = arith.xori %422, %cst_118 : vector<8x128xi1>
    %cst_119 = arith.constant 0.000000e+00 : f32
    %430 = vector.broadcast %cst_119 : f32 to vector<8x128xf32>
    %431 = arith.cmpf ogt, %419, %430 : vector<8x128xf32>
    %432 = arith.andi %429, %431 : vector<8x128xi1>
    %433 = arith.maximumf %418, %428 : vector<8x128xf32>
    %434 = arith.select %432, %433, %418 : vector<8x128xi1>, vector<8x128xf32>
    %cst_120 = arith.constant dense<true> : vector<8x128xi1>
    %435 = arith.xori %422, %cst_120 : vector<8x128xi1>
    %cst_121 = arith.constant 0.000000e+00 : f32
    %436 = vector.broadcast %cst_121 : f32 to vector<8x128xf32>
    %437 = arith.cmpf olt, %419, %436 : vector<8x128xf32>
    %438 = arith.andi %435, %437 : vector<8x128xi1>
    %439 = arith.minimumf %413, %428 : vector<8x128xf32>
    %440 = arith.select %438, %439, %413 : vector<8x128xi1>, vector<8x128xf32>
    %cst_122 = arith.constant 0.000000e+00 : f32
    %441 = vector.broadcast %cst_122 : f32 to vector<8x128xf32>
    %442 = arith.cmpf olt, %178, %441 : vector<8x128xf32>
    %443 = arith.andi %422, %442 : vector<8x128xi1>
    %cst_123 = arith.constant 2.000000e+00 : f32
    %444 = vector.broadcast %cst_123 : f32 to vector<8x128xf32>
    %445 = arith.select %443, %444, %434 : vector<8x128xi1>, vector<8x128xf32>
    %446 = arith.cmpf ogt, %440, %445 : vector<8x128xf32>
    %447 = arith.extui %446 : vector<8x128xi1> to vector<8x128xi32>
    %448 = arith.sitofp %447 : vector<8x128xi32> to vector<8x128xf32>
    %449 = arith.mulf %445, %112 : vector<8x128xf32>
    %450 = arith.addf %53, %449 : vector<8x128xf32>
    %451 = arith.mulf %445, %113 : vector<8x128xf32>
    %452 = arith.addf %54, %451 : vector<8x128xf32>
    %453 = arith.mulf %440, %112 : vector<8x128xf32>
    %454 = arith.addf %53, %453 : vector<8x128xf32>
    %455 = arith.mulf %440, %113 : vector<8x128xf32>
    %456 = arith.addf %54, %455 : vector<8x128xf32>
    %457 = arith.mulf %450, %456 : vector<8x128xf32>
    %458 = arith.mulf %452, %454 : vector<8x128xf32>
    %459 = arith.subf %457, %458 : vector<8x128xf32>
    %460 = arith.mulf %448, %459 : vector<8x128xf32>
    %461 = arith.addf %335, %460 : vector<8x128xf32>
    %cst_124 = arith.constant 0.000000e+00 : f32
    %462 = vector.broadcast %cst_124 : f32 to vector<8x128xf32>
    %cst_125 = arith.constant 1.000000e+00 : f32
    %463 = vector.broadcast %cst_125 : f32 to vector<8x128xf32>
    %464 = arith.subf %198, %182 : vector<8x128xf32>
    %465 = math.absf %464 : vector<8x128xf32>
    %cst_126 = arith.constant 9.99999968E-21 : f32
    %466 = vector.broadcast %cst_126 : f32 to vector<8x128xf32>
    %467 = arith.cmpf ole, %465, %466 : vector<8x128xf32>
    %cst_127 = arith.constant 1.000000e+00 : f32
    %468 = vector.broadcast %cst_127 : f32 to vector<8x128xf32>
    %469 = arith.select %467, %468, %464 : vector<8x128xi1>, vector<8x128xf32>
    %470 = tpu.reciprocal %469 {approx = true} : vector<8x128xf32> -> vector<8x128xf32>
    %cst_128 = arith.constant 0.000000e+00 : f32
    %471 = vector.broadcast %cst_128 : f32 to vector<8x128xf32>
    %472 = arith.subf %471, %182 : vector<8x128xf32>
    %473 = arith.mulf %472, %470 : vector<8x128xf32>
    %cst_129 = arith.constant dense<true> : vector<8x128xi1>
    %474 = arith.xori %467, %cst_129 : vector<8x128xi1>
    %cst_130 = arith.constant 0.000000e+00 : f32
    %475 = vector.broadcast %cst_130 : f32 to vector<8x128xf32>
    %476 = arith.cmpf ogt, %464, %475 : vector<8x128xf32>
    %477 = arith.andi %474, %476 : vector<8x128xi1>
    %478 = arith.maximumf %462, %473 : vector<8x128xf32>
    %479 = arith.select %477, %478, %462 : vector<8x128xi1>, vector<8x128xf32>
    %cst_131 = arith.constant dense<true> : vector<8x128xi1>
    %480 = arith.xori %467, %cst_131 : vector<8x128xi1>
    %cst_132 = arith.constant 0.000000e+00 : f32
    %481 = vector.broadcast %cst_132 : f32 to vector<8x128xf32>
    %482 = arith.cmpf olt, %464, %481 : vector<8x128xf32>
    %483 = arith.andi %480, %482 : vector<8x128xi1>
    %484 = arith.minimumf %463, %473 : vector<8x128xf32>
    %485 = arith.select %483, %484, %463 : vector<8x128xi1>, vector<8x128xf32>
    %cst_133 = arith.constant 0.000000e+00 : f32
    %486 = vector.broadcast %cst_133 : f32 to vector<8x128xf32>
    %487 = arith.cmpf olt, %182, %486 : vector<8x128xf32>
    %488 = arith.andi %467, %487 : vector<8x128xi1>
    %cst_134 = arith.constant 2.000000e+00 : f32
    %489 = vector.broadcast %cst_134 : f32 to vector<8x128xf32>
    %490 = arith.select %488, %489, %479 : vector<8x128xi1>, vector<8x128xf32>
    %491 = arith.subf %202, %186 : vector<8x128xf32>
    %492 = math.absf %491 : vector<8x128xf32>
    %cst_135 = arith.constant 9.99999968E-21 : f32
    %493 = vector.broadcast %cst_135 : f32 to vector<8x128xf32>
    %494 = arith.cmpf ole, %492, %493 : vector<8x128xf32>
    %cst_136 = arith.constant 1.000000e+00 : f32
    %495 = vector.broadcast %cst_136 : f32 to vector<8x128xf32>
    %496 = arith.select %494, %495, %491 : vector<8x128xi1>, vector<8x128xf32>
    %497 = tpu.reciprocal %496 {approx = true} : vector<8x128xf32> -> vector<8x128xf32>
    %cst_137 = arith.constant 0.000000e+00 : f32
    %498 = vector.broadcast %cst_137 : f32 to vector<8x128xf32>
    %499 = arith.subf %498, %186 : vector<8x128xf32>
    %500 = arith.mulf %499, %497 : vector<8x128xf32>
    %cst_138 = arith.constant dense<true> : vector<8x128xi1>
    %501 = arith.xori %494, %cst_138 : vector<8x128xi1>
    %cst_139 = arith.constant 0.000000e+00 : f32
    %502 = vector.broadcast %cst_139 : f32 to vector<8x128xf32>
    %503 = arith.cmpf ogt, %491, %502 : vector<8x128xf32>
    %504 = arith.andi %501, %503 : vector<8x128xi1>
    %505 = arith.maximumf %490, %500 : vector<8x128xf32>
    %506 = arith.select %504, %505, %490 : vector<8x128xi1>, vector<8x128xf32>
    %cst_140 = arith.constant dense<true> : vector<8x128xi1>
    %507 = arith.xori %494, %cst_140 : vector<8x128xi1>
    %cst_141 = arith.constant 0.000000e+00 : f32
    %508 = vector.broadcast %cst_141 : f32 to vector<8x128xf32>
    %509 = arith.cmpf olt, %491, %508 : vector<8x128xf32>
    %510 = arith.andi %507, %509 : vector<8x128xi1>
    %511 = arith.minimumf %485, %500 : vector<8x128xf32>
    %512 = arith.select %510, %511, %485 : vector<8x128xi1>, vector<8x128xf32>
    %cst_142 = arith.constant 0.000000e+00 : f32
    %513 = vector.broadcast %cst_142 : f32 to vector<8x128xf32>
    %514 = arith.cmpf olt, %186, %513 : vector<8x128xf32>
    %515 = arith.andi %494, %514 : vector<8x128xi1>
    %cst_143 = arith.constant 2.000000e+00 : f32
    %516 = vector.broadcast %cst_143 : f32 to vector<8x128xf32>
    %517 = arith.select %515, %516, %506 : vector<8x128xi1>, vector<8x128xf32>
    %518 = arith.subf %206, %190 : vector<8x128xf32>
    %519 = math.absf %518 : vector<8x128xf32>
    %cst_144 = arith.constant 9.99999968E-21 : f32
    %520 = vector.broadcast %cst_144 : f32 to vector<8x128xf32>
    %521 = arith.cmpf ole, %519, %520 : vector<8x128xf32>
    %cst_145 = arith.constant 1.000000e+00 : f32
    %522 = vector.broadcast %cst_145 : f32 to vector<8x128xf32>
    %523 = arith.select %521, %522, %518 : vector<8x128xi1>, vector<8x128xf32>
    %524 = tpu.reciprocal %523 {approx = true} : vector<8x128xf32> -> vector<8x128xf32>
    %cst_146 = arith.constant 0.000000e+00 : f32
    %525 = vector.broadcast %cst_146 : f32 to vector<8x128xf32>
    %526 = arith.subf %525, %190 : vector<8x128xf32>
    %527 = arith.mulf %526, %524 : vector<8x128xf32>
    %cst_147 = arith.constant dense<true> : vector<8x128xi1>
    %528 = arith.xori %521, %cst_147 : vector<8x128xi1>
    %cst_148 = arith.constant 0.000000e+00 : f32
    %529 = vector.broadcast %cst_148 : f32 to vector<8x128xf32>
    %530 = arith.cmpf ogt, %518, %529 : vector<8x128xf32>
    %531 = arith.andi %528, %530 : vector<8x128xi1>
    %532 = arith.maximumf %517, %527 : vector<8x128xf32>
    %533 = arith.select %531, %532, %517 : vector<8x128xi1>, vector<8x128xf32>
    %cst_149 = arith.constant dense<true> : vector<8x128xi1>
    %534 = arith.xori %521, %cst_149 : vector<8x128xi1>
    %cst_150 = arith.constant 0.000000e+00 : f32
    %535 = vector.broadcast %cst_150 : f32 to vector<8x128xf32>
    %536 = arith.cmpf olt, %518, %535 : vector<8x128xf32>
    %537 = arith.andi %534, %536 : vector<8x128xi1>
    %538 = arith.minimumf %512, %527 : vector<8x128xf32>
    %539 = arith.select %537, %538, %512 : vector<8x128xi1>, vector<8x128xf32>
    %cst_151 = arith.constant 0.000000e+00 : f32
    %540 = vector.broadcast %cst_151 : f32 to vector<8x128xf32>
    %541 = arith.cmpf olt, %190, %540 : vector<8x128xf32>
    %542 = arith.andi %521, %541 : vector<8x128xi1>
    %cst_152 = arith.constant 2.000000e+00 : f32
    %543 = vector.broadcast %cst_152 : f32 to vector<8x128xf32>
    %544 = arith.select %542, %543, %533 : vector<8x128xi1>, vector<8x128xf32>
    %545 = arith.subf %210, %194 : vector<8x128xf32>
    %546 = math.absf %545 : vector<8x128xf32>
    %cst_153 = arith.constant 9.99999968E-21 : f32
    %547 = vector.broadcast %cst_153 : f32 to vector<8x128xf32>
    %548 = arith.cmpf ole, %546, %547 : vector<8x128xf32>
    %cst_154 = arith.constant 1.000000e+00 : f32
    %549 = vector.broadcast %cst_154 : f32 to vector<8x128xf32>
    %550 = arith.select %548, %549, %545 : vector<8x128xi1>, vector<8x128xf32>
    %551 = tpu.reciprocal %550 {approx = true} : vector<8x128xf32> -> vector<8x128xf32>
    %cst_155 = arith.constant 0.000000e+00 : f32
    %552 = vector.broadcast %cst_155 : f32 to vector<8x128xf32>
    %553 = arith.subf %552, %194 : vector<8x128xf32>
    %554 = arith.mulf %553, %551 : vector<8x128xf32>
    %cst_156 = arith.constant dense<true> : vector<8x128xi1>
    %555 = arith.xori %548, %cst_156 : vector<8x128xi1>
    %cst_157 = arith.constant 0.000000e+00 : f32
    %556 = vector.broadcast %cst_157 : f32 to vector<8x128xf32>
    %557 = arith.cmpf ogt, %545, %556 : vector<8x128xf32>
    %558 = arith.andi %555, %557 : vector<8x128xi1>
    %559 = arith.maximumf %544, %554 : vector<8x128xf32>
    %560 = arith.select %558, %559, %544 : vector<8x128xi1>, vector<8x128xf32>
    %cst_158 = arith.constant dense<true> : vector<8x128xi1>
    %561 = arith.xori %548, %cst_158 : vector<8x128xi1>
    %cst_159 = arith.constant 0.000000e+00 : f32
    %562 = vector.broadcast %cst_159 : f32 to vector<8x128xf32>
    %563 = arith.cmpf olt, %545, %562 : vector<8x128xf32>
    %564 = arith.andi %561, %563 : vector<8x128xi1>
    %565 = arith.minimumf %539, %554 : vector<8x128xf32>
    %566 = arith.select %564, %565, %539 : vector<8x128xi1>, vector<8x128xf32>
    %cst_160 = arith.constant 0.000000e+00 : f32
    %567 = vector.broadcast %cst_160 : f32 to vector<8x128xf32>
    %568 = arith.cmpf olt, %194, %567 : vector<8x128xf32>
    %569 = arith.andi %548, %568 : vector<8x128xi1>
    %cst_161 = arith.constant 2.000000e+00 : f32
    %570 = vector.broadcast %cst_161 : f32 to vector<8x128xf32>
    %571 = arith.select %569, %570, %560 : vector<8x128xi1>, vector<8x128xf32>
    %572 = arith.cmpf ogt, %566, %571 : vector<8x128xf32>
    %573 = arith.extui %572 : vector<8x128xi1> to vector<8x128xi32>
    %574 = arith.sitofp %573 : vector<8x128xi32> to vector<8x128xf32>
    %575 = arith.mulf %571, %117 : vector<8x128xf32>
    %576 = arith.addf %61, %575 : vector<8x128xf32>
    %577 = arith.mulf %571, %118 : vector<8x128xf32>
    %578 = arith.addf %62, %577 : vector<8x128xf32>
    %579 = arith.mulf %566, %117 : vector<8x128xf32>
    %580 = arith.addf %61, %579 : vector<8x128xf32>
    %581 = arith.mulf %566, %118 : vector<8x128xf32>
    %582 = arith.addf %62, %581 : vector<8x128xf32>
    %583 = arith.mulf %576, %582 : vector<8x128xf32>
    %584 = arith.mulf %578, %580 : vector<8x128xf32>
    %585 = arith.subf %583, %584 : vector<8x128xf32>
    %586 = arith.mulf %574, %585 : vector<8x128xf32>
    %587 = arith.addf %461, %586 : vector<8x128xf32>
    %cst_162 = arith.constant 0.000000e+00 : f32
    %588 = vector.broadcast %cst_162 : f32 to vector<8x128xf32>
    %cst_163 = arith.constant 1.000000e+00 : f32
    %589 = vector.broadcast %cst_163 : f32 to vector<8x128xf32>
    %590 = arith.subf %150, %198 : vector<8x128xf32>
    %591 = math.absf %590 : vector<8x128xf32>
    %cst_164 = arith.constant 9.99999968E-21 : f32
    %592 = vector.broadcast %cst_164 : f32 to vector<8x128xf32>
    %593 = arith.cmpf ole, %591, %592 : vector<8x128xf32>
    %cst_165 = arith.constant 1.000000e+00 : f32
    %594 = vector.broadcast %cst_165 : f32 to vector<8x128xf32>
    %595 = arith.select %593, %594, %590 : vector<8x128xi1>, vector<8x128xf32>
    %596 = tpu.reciprocal %595 {approx = true} : vector<8x128xf32> -> vector<8x128xf32>
    %cst_166 = arith.constant 0.000000e+00 : f32
    %597 = vector.broadcast %cst_166 : f32 to vector<8x128xf32>
    %598 = arith.subf %597, %198 : vector<8x128xf32>
    %599 = arith.mulf %598, %596 : vector<8x128xf32>
    %cst_167 = arith.constant dense<true> : vector<8x128xi1>
    %600 = arith.xori %593, %cst_167 : vector<8x128xi1>
    %cst_168 = arith.constant 0.000000e+00 : f32
    %601 = vector.broadcast %cst_168 : f32 to vector<8x128xf32>
    %602 = arith.cmpf ogt, %590, %601 : vector<8x128xf32>
    %603 = arith.andi %600, %602 : vector<8x128xi1>
    %604 = arith.maximumf %588, %599 : vector<8x128xf32>
    %605 = arith.select %603, %604, %588 : vector<8x128xi1>, vector<8x128xf32>
    %cst_169 = arith.constant dense<true> : vector<8x128xi1>
    %606 = arith.xori %593, %cst_169 : vector<8x128xi1>
    %cst_170 = arith.constant 0.000000e+00 : f32
    %607 = vector.broadcast %cst_170 : f32 to vector<8x128xf32>
    %608 = arith.cmpf olt, %590, %607 : vector<8x128xf32>
    %609 = arith.andi %606, %608 : vector<8x128xi1>
    %610 = arith.minimumf %589, %599 : vector<8x128xf32>
    %611 = arith.select %609, %610, %589 : vector<8x128xi1>, vector<8x128xf32>
    %cst_171 = arith.constant 0.000000e+00 : f32
    %612 = vector.broadcast %cst_171 : f32 to vector<8x128xf32>
    %613 = arith.cmpf olt, %198, %612 : vector<8x128xf32>
    %614 = arith.andi %593, %613 : vector<8x128xi1>
    %cst_172 = arith.constant 2.000000e+00 : f32
    %615 = vector.broadcast %cst_172 : f32 to vector<8x128xf32>
    %616 = arith.select %614, %615, %605 : vector<8x128xi1>, vector<8x128xf32>
    %617 = arith.subf %154, %202 : vector<8x128xf32>
    %618 = math.absf %617 : vector<8x128xf32>
    %cst_173 = arith.constant 9.99999968E-21 : f32
    %619 = vector.broadcast %cst_173 : f32 to vector<8x128xf32>
    %620 = arith.cmpf ole, %618, %619 : vector<8x128xf32>
    %cst_174 = arith.constant 1.000000e+00 : f32
    %621 = vector.broadcast %cst_174 : f32 to vector<8x128xf32>
    %622 = arith.select %620, %621, %617 : vector<8x128xi1>, vector<8x128xf32>
    %623 = tpu.reciprocal %622 {approx = true} : vector<8x128xf32> -> vector<8x128xf32>
    %cst_175 = arith.constant 0.000000e+00 : f32
    %624 = vector.broadcast %cst_175 : f32 to vector<8x128xf32>
    %625 = arith.subf %624, %202 : vector<8x128xf32>
    %626 = arith.mulf %625, %623 : vector<8x128xf32>
    %cst_176 = arith.constant dense<true> : vector<8x128xi1>
    %627 = arith.xori %620, %cst_176 : vector<8x128xi1>
    %cst_177 = arith.constant 0.000000e+00 : f32
    %628 = vector.broadcast %cst_177 : f32 to vector<8x128xf32>
    %629 = arith.cmpf ogt, %617, %628 : vector<8x128xf32>
    %630 = arith.andi %627, %629 : vector<8x128xi1>
    %631 = arith.maximumf %616, %626 : vector<8x128xf32>
    %632 = arith.select %630, %631, %616 : vector<8x128xi1>, vector<8x128xf32>
    %cst_178 = arith.constant dense<true> : vector<8x128xi1>
    %633 = arith.xori %620, %cst_178 : vector<8x128xi1>
    %cst_179 = arith.constant 0.000000e+00 : f32
    %634 = vector.broadcast %cst_179 : f32 to vector<8x128xf32>
    %635 = arith.cmpf olt, %617, %634 : vector<8x128xf32>
    %636 = arith.andi %633, %635 : vector<8x128xi1>
    %637 = arith.minimumf %611, %626 : vector<8x128xf32>
    %638 = arith.select %636, %637, %611 : vector<8x128xi1>, vector<8x128xf32>
    %cst_180 = arith.constant 0.000000e+00 : f32
    %639 = vector.broadcast %cst_180 : f32 to vector<8x128xf32>
    %640 = arith.cmpf olt, %202, %639 : vector<8x128xf32>
    %641 = arith.andi %620, %640 : vector<8x128xi1>
    %cst_181 = arith.constant 2.000000e+00 : f32
    %642 = vector.broadcast %cst_181 : f32 to vector<8x128xf32>
    %643 = arith.select %641, %642, %632 : vector<8x128xi1>, vector<8x128xf32>
    %644 = arith.subf %158, %206 : vector<8x128xf32>
    %645 = math.absf %644 : vector<8x128xf32>
    %cst_182 = arith.constant 9.99999968E-21 : f32
    %646 = vector.broadcast %cst_182 : f32 to vector<8x128xf32>
    %647 = arith.cmpf ole, %645, %646 : vector<8x128xf32>
    %cst_183 = arith.constant 1.000000e+00 : f32
    %648 = vector.broadcast %cst_183 : f32 to vector<8x128xf32>
    %649 = arith.select %647, %648, %644 : vector<8x128xi1>, vector<8x128xf32>
    %650 = tpu.reciprocal %649 {approx = true} : vector<8x128xf32> -> vector<8x128xf32>
    %cst_184 = arith.constant 0.000000e+00 : f32
    %651 = vector.broadcast %cst_184 : f32 to vector<8x128xf32>
    %652 = arith.subf %651, %206 : vector<8x128xf32>
    %653 = arith.mulf %652, %650 : vector<8x128xf32>
    %cst_185 = arith.constant dense<true> : vector<8x128xi1>
    %654 = arith.xori %647, %cst_185 : vector<8x128xi1>
    %cst_186 = arith.constant 0.000000e+00 : f32
    %655 = vector.broadcast %cst_186 : f32 to vector<8x128xf32>
    %656 = arith.cmpf ogt, %644, %655 : vector<8x128xf32>
    %657 = arith.andi %654, %656 : vector<8x128xi1>
    %658 = arith.maximumf %643, %653 : vector<8x128xf32>
    %659 = arith.select %657, %658, %643 : vector<8x128xi1>, vector<8x128xf32>
    %cst_187 = arith.constant dense<true> : vector<8x128xi1>
    %660 = arith.xori %647, %cst_187 : vector<8x128xi1>
    %cst_188 = arith.constant 0.000000e+00 : f32
    %661 = vector.broadcast %cst_188 : f32 to vector<8x128xf32>
    %662 = arith.cmpf olt, %644, %661 : vector<8x128xf32>
    %663 = arith.andi %660, %662 : vector<8x128xi1>
    %664 = arith.minimumf %638, %653 : vector<8x128xf32>
    %665 = arith.select %663, %664, %638 : vector<8x128xi1>, vector<8x128xf32>
    %cst_189 = arith.constant 0.000000e+00 : f32
    %666 = vector.broadcast %cst_189 : f32 to vector<8x128xf32>
    %667 = arith.cmpf olt, %206, %666 : vector<8x128xf32>
    %668 = arith.andi %647, %667 : vector<8x128xi1>
    %cst_190 = arith.constant 2.000000e+00 : f32
    %669 = vector.broadcast %cst_190 : f32 to vector<8x128xf32>
    %670 = arith.select %668, %669, %659 : vector<8x128xi1>, vector<8x128xf32>
    %671 = arith.subf %162, %210 : vector<8x128xf32>
    %672 = math.absf %671 : vector<8x128xf32>
    %cst_191 = arith.constant 9.99999968E-21 : f32
    %673 = vector.broadcast %cst_191 : f32 to vector<8x128xf32>
    %674 = arith.cmpf ole, %672, %673 : vector<8x128xf32>
    %cst_192 = arith.constant 1.000000e+00 : f32
    %675 = vector.broadcast %cst_192 : f32 to vector<8x128xf32>
    %676 = arith.select %674, %675, %671 : vector<8x128xi1>, vector<8x128xf32>
    %677 = tpu.reciprocal %676 {approx = true} : vector<8x128xf32> -> vector<8x128xf32>
    %cst_193 = arith.constant 0.000000e+00 : f32
    %678 = vector.broadcast %cst_193 : f32 to vector<8x128xf32>
    %679 = arith.subf %678, %210 : vector<8x128xf32>
    %680 = arith.mulf %679, %677 : vector<8x128xf32>
    %cst_194 = arith.constant dense<true> : vector<8x128xi1>
    %681 = arith.xori %674, %cst_194 : vector<8x128xi1>
    %cst_195 = arith.constant 0.000000e+00 : f32
    %682 = vector.broadcast %cst_195 : f32 to vector<8x128xf32>
    %683 = arith.cmpf ogt, %671, %682 : vector<8x128xf32>
    %684 = arith.andi %681, %683 : vector<8x128xi1>
    %685 = arith.maximumf %670, %680 : vector<8x128xf32>
    %686 = arith.select %684, %685, %670 : vector<8x128xi1>, vector<8x128xf32>
    %cst_196 = arith.constant dense<true> : vector<8x128xi1>
    %687 = arith.xori %674, %cst_196 : vector<8x128xi1>
    %cst_197 = arith.constant 0.000000e+00 : f32
    %688 = vector.broadcast %cst_197 : f32 to vector<8x128xf32>
    %689 = arith.cmpf olt, %671, %688 : vector<8x128xf32>
    %690 = arith.andi %687, %689 : vector<8x128xi1>
    %691 = arith.minimumf %665, %680 : vector<8x128xf32>
    %692 = arith.select %690, %691, %665 : vector<8x128xi1>, vector<8x128xf32>
    %cst_198 = arith.constant 0.000000e+00 : f32
    %693 = vector.broadcast %cst_198 : f32 to vector<8x128xf32>
    %694 = arith.cmpf olt, %210, %693 : vector<8x128xf32>
    %695 = arith.andi %674, %694 : vector<8x128xi1>
    %cst_199 = arith.constant 2.000000e+00 : f32
    %696 = vector.broadcast %cst_199 : f32 to vector<8x128xf32>
    %697 = arith.select %695, %696, %686 : vector<8x128xi1>, vector<8x128xf32>
    %698 = arith.cmpf ogt, %692, %697 : vector<8x128xf32>
    %699 = arith.extui %698 : vector<8x128xi1> to vector<8x128xi32>
    %700 = arith.sitofp %699 : vector<8x128xi32> to vector<8x128xf32>
    %701 = arith.mulf %697, %122 : vector<8x128xf32>
    %702 = arith.addf %69, %701 : vector<8x128xf32>
    %703 = arith.mulf %697, %123 : vector<8x128xf32>
    %704 = arith.addf %70, %703 : vector<8x128xf32>
    %705 = arith.mulf %692, %122 : vector<8x128xf32>
    %706 = arith.addf %69, %705 : vector<8x128xf32>
    %707 = arith.mulf %692, %123 : vector<8x128xf32>
    %708 = arith.addf %70, %707 : vector<8x128xf32>
    %709 = arith.mulf %702, %708 : vector<8x128xf32>
    %710 = arith.mulf %704, %706 : vector<8x128xf32>
    %711 = arith.subf %709, %710 : vector<8x128xf32>
    %712 = arith.mulf %700, %711 : vector<8x128xf32>
    %713 = arith.addf %587, %712 : vector<8x128xf32>
    %714 = arith.mulf %107, %88 : vector<8x128xf32>
    %715 = arith.mulf %108, %85 : vector<8x128xf32>
    %716 = arith.subf %714, %715 : vector<8x128xf32>
    %717 = arith.subf %716, %111 : vector<8x128xf32>
    %718 = arith.mulf %112, %88 : vector<8x128xf32>
    %719 = arith.mulf %113, %85 : vector<8x128xf32>
    %720 = arith.subf %718, %719 : vector<8x128xf32>
    %721 = arith.subf %720, %116 : vector<8x128xf32>
    %722 = arith.mulf %117, %88 : vector<8x128xf32>
    %723 = arith.mulf %118, %85 : vector<8x128xf32>
    %724 = arith.subf %722, %723 : vector<8x128xf32>
    %725 = arith.subf %724, %121 : vector<8x128xf32>
    %726 = arith.mulf %122, %88 : vector<8x128xf32>
    %727 = arith.mulf %123, %85 : vector<8x128xf32>
    %728 = arith.subf %726, %727 : vector<8x128xf32>
    %729 = arith.subf %728, %126 : vector<8x128xf32>
    %730 = arith.mulf %107, %94 : vector<8x128xf32>
    %731 = arith.mulf %108, %91 : vector<8x128xf32>
    %732 = arith.subf %730, %731 : vector<8x128xf32>
    %733 = arith.subf %732, %111 : vector<8x128xf32>
    %734 = arith.mulf %112, %94 : vector<8x128xf32>
    %735 = arith.mulf %113, %91 : vector<8x128xf32>
    %736 = arith.subf %734, %735 : vector<8x128xf32>
    %737 = arith.subf %736, %116 : vector<8x128xf32>
    %738 = arith.mulf %117, %94 : vector<8x128xf32>
    %739 = arith.mulf %118, %91 : vector<8x128xf32>
    %740 = arith.subf %738, %739 : vector<8x128xf32>
    %741 = arith.subf %740, %121 : vector<8x128xf32>
    %742 = arith.mulf %122, %94 : vector<8x128xf32>
    %743 = arith.mulf %123, %91 : vector<8x128xf32>
    %744 = arith.subf %742, %743 : vector<8x128xf32>
    %745 = arith.subf %744, %126 : vector<8x128xf32>
    %746 = arith.mulf %107, %100 : vector<8x128xf32>
    %747 = arith.mulf %108, %97 : vector<8x128xf32>
    %748 = arith.subf %746, %747 : vector<8x128xf32>
    %749 = arith.subf %748, %111 : vector<8x128xf32>
    %750 = arith.mulf %112, %100 : vector<8x128xf32>
    %751 = arith.mulf %113, %97 : vector<8x128xf32>
    %752 = arith.subf %750, %751 : vector<8x128xf32>
    %753 = arith.subf %752, %116 : vector<8x128xf32>
    %754 = arith.mulf %117, %100 : vector<8x128xf32>
    %755 = arith.mulf %118, %97 : vector<8x128xf32>
    %756 = arith.subf %754, %755 : vector<8x128xf32>
    %757 = arith.subf %756, %121 : vector<8x128xf32>
    %758 = arith.mulf %122, %100 : vector<8x128xf32>
    %759 = arith.mulf %123, %97 : vector<8x128xf32>
    %760 = arith.subf %758, %759 : vector<8x128xf32>
    %761 = arith.subf %760, %126 : vector<8x128xf32>
    %762 = arith.mulf %107, %106 : vector<8x128xf32>
    %763 = arith.mulf %108, %103 : vector<8x128xf32>
    %764 = arith.subf %762, %763 : vector<8x128xf32>
    %765 = arith.subf %764, %111 : vector<8x128xf32>
    %766 = arith.mulf %112, %106 : vector<8x128xf32>
    %767 = arith.mulf %113, %103 : vector<8x128xf32>
    %768 = arith.subf %766, %767 : vector<8x128xf32>
    %769 = arith.subf %768, %116 : vector<8x128xf32>
    %770 = arith.mulf %117, %106 : vector<8x128xf32>
    %771 = arith.mulf %118, %103 : vector<8x128xf32>
    %772 = arith.subf %770, %771 : vector<8x128xf32>
    %773 = arith.subf %772, %121 : vector<8x128xf32>
    %774 = arith.mulf %122, %106 : vector<8x128xf32>
    %775 = arith.mulf %123, %103 : vector<8x128xf32>
    %776 = arith.subf %774, %775 : vector<8x128xf32>
    %777 = arith.subf %776, %126 : vector<8x128xf32>
    %cst_200 = arith.constant 0.000000e+00 : f32
    %778 = vector.broadcast %cst_200 : f32 to vector<8x128xf32>
    %cst_201 = arith.constant 1.000000e+00 : f32
    %779 = vector.broadcast %cst_201 : f32 to vector<8x128xf32>
    %780 = arith.subf %733, %717 : vector<8x128xf32>
    %781 = math.absf %780 : vector<8x128xf32>
    %cst_202 = arith.constant 9.99999968E-21 : f32
    %782 = vector.broadcast %cst_202 : f32 to vector<8x128xf32>
    %783 = arith.cmpf ole, %781, %782 : vector<8x128xf32>
    %cst_203 = arith.constant 1.000000e+00 : f32
    %784 = vector.broadcast %cst_203 : f32 to vector<8x128xf32>
    %785 = arith.select %783, %784, %780 : vector<8x128xi1>, vector<8x128xf32>
    %786 = tpu.reciprocal %785 {approx = true} : vector<8x128xf32> -> vector<8x128xf32>
    %cst_204 = arith.constant 0.000000e+00 : f32
    %787 = vector.broadcast %cst_204 : f32 to vector<8x128xf32>
    %788 = arith.subf %787, %717 : vector<8x128xf32>
    %789 = arith.mulf %788, %786 : vector<8x128xf32>
    %cst_205 = arith.constant dense<true> : vector<8x128xi1>
    %790 = arith.xori %783, %cst_205 : vector<8x128xi1>
    %cst_206 = arith.constant 0.000000e+00 : f32
    %791 = vector.broadcast %cst_206 : f32 to vector<8x128xf32>
    %792 = arith.cmpf ogt, %780, %791 : vector<8x128xf32>
    %793 = arith.andi %790, %792 : vector<8x128xi1>
    %794 = arith.maximumf %778, %789 : vector<8x128xf32>
    %795 = arith.select %793, %794, %778 : vector<8x128xi1>, vector<8x128xf32>
    %cst_207 = arith.constant dense<true> : vector<8x128xi1>
    %796 = arith.xori %783, %cst_207 : vector<8x128xi1>
    %cst_208 = arith.constant 0.000000e+00 : f32
    %797 = vector.broadcast %cst_208 : f32 to vector<8x128xf32>
    %798 = arith.cmpf olt, %780, %797 : vector<8x128xf32>
    %799 = arith.andi %796, %798 : vector<8x128xi1>
    %800 = arith.minimumf %779, %789 : vector<8x128xf32>
    %801 = arith.select %799, %800, %779 : vector<8x128xi1>, vector<8x128xf32>
    %cst_209 = arith.constant 0.000000e+00 : f32
    %802 = vector.broadcast %cst_209 : f32 to vector<8x128xf32>
    %803 = arith.cmpf ole, %717, %802 : vector<8x128xf32>
    %804 = arith.andi %783, %803 : vector<8x128xi1>
    %cst_210 = arith.constant 2.000000e+00 : f32
    %805 = vector.broadcast %cst_210 : f32 to vector<8x128xf32>
    %806 = arith.select %804, %805, %795 : vector<8x128xi1>, vector<8x128xf32>
    %807 = arith.subf %737, %721 : vector<8x128xf32>
    %808 = math.absf %807 : vector<8x128xf32>
    %cst_211 = arith.constant 9.99999968E-21 : f32
    %809 = vector.broadcast %cst_211 : f32 to vector<8x128xf32>
    %810 = arith.cmpf ole, %808, %809 : vector<8x128xf32>
    %cst_212 = arith.constant 1.000000e+00 : f32
    %811 = vector.broadcast %cst_212 : f32 to vector<8x128xf32>
    %812 = arith.select %810, %811, %807 : vector<8x128xi1>, vector<8x128xf32>
    %813 = tpu.reciprocal %812 {approx = true} : vector<8x128xf32> -> vector<8x128xf32>
    %cst_213 = arith.constant 0.000000e+00 : f32
    %814 = vector.broadcast %cst_213 : f32 to vector<8x128xf32>
    %815 = arith.subf %814, %721 : vector<8x128xf32>
    %816 = arith.mulf %815, %813 : vector<8x128xf32>
    %cst_214 = arith.constant dense<true> : vector<8x128xi1>
    %817 = arith.xori %810, %cst_214 : vector<8x128xi1>
    %cst_215 = arith.constant 0.000000e+00 : f32
    %818 = vector.broadcast %cst_215 : f32 to vector<8x128xf32>
    %819 = arith.cmpf ogt, %807, %818 : vector<8x128xf32>
    %820 = arith.andi %817, %819 : vector<8x128xi1>
    %821 = arith.maximumf %806, %816 : vector<8x128xf32>
    %822 = arith.select %820, %821, %806 : vector<8x128xi1>, vector<8x128xf32>
    %cst_216 = arith.constant dense<true> : vector<8x128xi1>
    %823 = arith.xori %810, %cst_216 : vector<8x128xi1>
    %cst_217 = arith.constant 0.000000e+00 : f32
    %824 = vector.broadcast %cst_217 : f32 to vector<8x128xf32>
    %825 = arith.cmpf olt, %807, %824 : vector<8x128xf32>
    %826 = arith.andi %823, %825 : vector<8x128xi1>
    %827 = arith.minimumf %801, %816 : vector<8x128xf32>
    %828 = arith.select %826, %827, %801 : vector<8x128xi1>, vector<8x128xf32>
    %cst_218 = arith.constant 0.000000e+00 : f32
    %829 = vector.broadcast %cst_218 : f32 to vector<8x128xf32>
    %830 = arith.cmpf ole, %721, %829 : vector<8x128xf32>
    %831 = arith.andi %810, %830 : vector<8x128xi1>
    %cst_219 = arith.constant 2.000000e+00 : f32
    %832 = vector.broadcast %cst_219 : f32 to vector<8x128xf32>
    %833 = arith.select %831, %832, %822 : vector<8x128xi1>, vector<8x128xf32>
    %834 = arith.subf %741, %725 : vector<8x128xf32>
    %835 = math.absf %834 : vector<8x128xf32>
    %cst_220 = arith.constant 9.99999968E-21 : f32
    %836 = vector.broadcast %cst_220 : f32 to vector<8x128xf32>
    %837 = arith.cmpf ole, %835, %836 : vector<8x128xf32>
    %cst_221 = arith.constant 1.000000e+00 : f32
    %838 = vector.broadcast %cst_221 : f32 to vector<8x128xf32>
    %839 = arith.select %837, %838, %834 : vector<8x128xi1>, vector<8x128xf32>
    %840 = tpu.reciprocal %839 {approx = true} : vector<8x128xf32> -> vector<8x128xf32>
    %cst_222 = arith.constant 0.000000e+00 : f32
    %841 = vector.broadcast %cst_222 : f32 to vector<8x128xf32>
    %842 = arith.subf %841, %725 : vector<8x128xf32>
    %843 = arith.mulf %842, %840 : vector<8x128xf32>
    %cst_223 = arith.constant dense<true> : vector<8x128xi1>
    %844 = arith.xori %837, %cst_223 : vector<8x128xi1>
    %cst_224 = arith.constant 0.000000e+00 : f32
    %845 = vector.broadcast %cst_224 : f32 to vector<8x128xf32>
    %846 = arith.cmpf ogt, %834, %845 : vector<8x128xf32>
    %847 = arith.andi %844, %846 : vector<8x128xi1>
    %848 = arith.maximumf %833, %843 : vector<8x128xf32>
    %849 = arith.select %847, %848, %833 : vector<8x128xi1>, vector<8x128xf32>
    %cst_225 = arith.constant dense<true> : vector<8x128xi1>
    %850 = arith.xori %837, %cst_225 : vector<8x128xi1>
    %cst_226 = arith.constant 0.000000e+00 : f32
    %851 = vector.broadcast %cst_226 : f32 to vector<8x128xf32>
    %852 = arith.cmpf olt, %834, %851 : vector<8x128xf32>
    %853 = arith.andi %850, %852 : vector<8x128xi1>
    %854 = arith.minimumf %828, %843 : vector<8x128xf32>
    %855 = arith.select %853, %854, %828 : vector<8x128xi1>, vector<8x128xf32>
    %cst_227 = arith.constant 0.000000e+00 : f32
    %856 = vector.broadcast %cst_227 : f32 to vector<8x128xf32>
    %857 = arith.cmpf ole, %725, %856 : vector<8x128xf32>
    %858 = arith.andi %837, %857 : vector<8x128xi1>
    %cst_228 = arith.constant 2.000000e+00 : f32
    %859 = vector.broadcast %cst_228 : f32 to vector<8x128xf32>
    %860 = arith.select %858, %859, %849 : vector<8x128xi1>, vector<8x128xf32>
    %861 = arith.subf %745, %729 : vector<8x128xf32>
    %862 = math.absf %861 : vector<8x128xf32>
    %cst_229 = arith.constant 9.99999968E-21 : f32
    %863 = vector.broadcast %cst_229 : f32 to vector<8x128xf32>
    %864 = arith.cmpf ole, %862, %863 : vector<8x128xf32>
    %cst_230 = arith.constant 1.000000e+00 : f32
    %865 = vector.broadcast %cst_230 : f32 to vector<8x128xf32>
    %866 = arith.select %864, %865, %861 : vector<8x128xi1>, vector<8x128xf32>
    %867 = tpu.reciprocal %866 {approx = true} : vector<8x128xf32> -> vector<8x128xf32>
    %cst_231 = arith.constant 0.000000e+00 : f32
    %868 = vector.broadcast %cst_231 : f32 to vector<8x128xf32>
    %869 = arith.subf %868, %729 : vector<8x128xf32>
    %870 = arith.mulf %869, %867 : vector<8x128xf32>
    %cst_232 = arith.constant dense<true> : vector<8x128xi1>
    %871 = arith.xori %864, %cst_232 : vector<8x128xi1>
    %cst_233 = arith.constant 0.000000e+00 : f32
    %872 = vector.broadcast %cst_233 : f32 to vector<8x128xf32>
    %873 = arith.cmpf ogt, %861, %872 : vector<8x128xf32>
    %874 = arith.andi %871, %873 : vector<8x128xi1>
    %875 = arith.maximumf %860, %870 : vector<8x128xf32>
    %876 = arith.select %874, %875, %860 : vector<8x128xi1>, vector<8x128xf32>
    %cst_234 = arith.constant dense<true> : vector<8x128xi1>
    %877 = arith.xori %864, %cst_234 : vector<8x128xi1>
    %cst_235 = arith.constant 0.000000e+00 : f32
    %878 = vector.broadcast %cst_235 : f32 to vector<8x128xf32>
    %879 = arith.cmpf olt, %861, %878 : vector<8x128xf32>
    %880 = arith.andi %877, %879 : vector<8x128xi1>
    %881 = arith.minimumf %855, %870 : vector<8x128xf32>
    %882 = arith.select %880, %881, %855 : vector<8x128xi1>, vector<8x128xf32>
    %cst_236 = arith.constant 0.000000e+00 : f32
    %883 = vector.broadcast %cst_236 : f32 to vector<8x128xf32>
    %884 = arith.cmpf ole, %729, %883 : vector<8x128xf32>
    %885 = arith.andi %864, %884 : vector<8x128xi1>
    %cst_237 = arith.constant 2.000000e+00 : f32
    %886 = vector.broadcast %cst_237 : f32 to vector<8x128xf32>
    %887 = arith.select %885, %886, %876 : vector<8x128xi1>, vector<8x128xf32>
    %888 = arith.cmpf ogt, %882, %887 : vector<8x128xf32>
    %889 = arith.extui %888 : vector<8x128xi1> to vector<8x128xi32>
    %890 = arith.sitofp %889 : vector<8x128xi32> to vector<8x128xf32>
    %891 = arith.mulf %887, %127 : vector<8x128xf32>
    %892 = arith.addf %85, %891 : vector<8x128xf32>
    %893 = arith.mulf %887, %128 : vector<8x128xf32>
    %894 = arith.addf %88, %893 : vector<8x128xf32>
    %895 = arith.mulf %882, %127 : vector<8x128xf32>
    %896 = arith.addf %85, %895 : vector<8x128xf32>
    %897 = arith.mulf %882, %128 : vector<8x128xf32>
    %898 = arith.addf %88, %897 : vector<8x128xf32>
    %899 = arith.mulf %892, %898 : vector<8x128xf32>
    %900 = arith.mulf %894, %896 : vector<8x128xf32>
    %901 = arith.subf %899, %900 : vector<8x128xf32>
    %902 = arith.mulf %890, %901 : vector<8x128xf32>
    %cst_238 = arith.constant 0.000000e+00 : f32
    %903 = vector.broadcast %cst_238 : f32 to vector<8x128xf32>
    %cst_239 = arith.constant 1.000000e+00 : f32
    %904 = vector.broadcast %cst_239 : f32 to vector<8x128xf32>
    %905 = arith.subf %749, %733 : vector<8x128xf32>
    %906 = math.absf %905 : vector<8x128xf32>
    %cst_240 = arith.constant 9.99999968E-21 : f32
    %907 = vector.broadcast %cst_240 : f32 to vector<8x128xf32>
    %908 = arith.cmpf ole, %906, %907 : vector<8x128xf32>
    %cst_241 = arith.constant 1.000000e+00 : f32
    %909 = vector.broadcast %cst_241 : f32 to vector<8x128xf32>
    %910 = arith.select %908, %909, %905 : vector<8x128xi1>, vector<8x128xf32>
    %911 = tpu.reciprocal %910 {approx = true} : vector<8x128xf32> -> vector<8x128xf32>
    %cst_242 = arith.constant 0.000000e+00 : f32
    %912 = vector.broadcast %cst_242 : f32 to vector<8x128xf32>
    %913 = arith.subf %912, %733 : vector<8x128xf32>
    %914 = arith.mulf %913, %911 : vector<8x128xf32>
    %cst_243 = arith.constant dense<true> : vector<8x128xi1>
    %915 = arith.xori %908, %cst_243 : vector<8x128xi1>
    %cst_244 = arith.constant 0.000000e+00 : f32
    %916 = vector.broadcast %cst_244 : f32 to vector<8x128xf32>
    %917 = arith.cmpf ogt, %905, %916 : vector<8x128xf32>
    %918 = arith.andi %915, %917 : vector<8x128xi1>
    %919 = arith.maximumf %903, %914 : vector<8x128xf32>
    %920 = arith.select %918, %919, %903 : vector<8x128xi1>, vector<8x128xf32>
    %cst_245 = arith.constant dense<true> : vector<8x128xi1>
    %921 = arith.xori %908, %cst_245 : vector<8x128xi1>
    %cst_246 = arith.constant 0.000000e+00 : f32
    %922 = vector.broadcast %cst_246 : f32 to vector<8x128xf32>
    %923 = arith.cmpf olt, %905, %922 : vector<8x128xf32>
    %924 = arith.andi %921, %923 : vector<8x128xi1>
    %925 = arith.minimumf %904, %914 : vector<8x128xf32>
    %926 = arith.select %924, %925, %904 : vector<8x128xi1>, vector<8x128xf32>
    %cst_247 = arith.constant 0.000000e+00 : f32
    %927 = vector.broadcast %cst_247 : f32 to vector<8x128xf32>
    %928 = arith.cmpf ole, %733, %927 : vector<8x128xf32>
    %929 = arith.andi %908, %928 : vector<8x128xi1>
    %cst_248 = arith.constant 2.000000e+00 : f32
    %930 = vector.broadcast %cst_248 : f32 to vector<8x128xf32>
    %931 = arith.select %929, %930, %920 : vector<8x128xi1>, vector<8x128xf32>
    %932 = arith.subf %753, %737 : vector<8x128xf32>
    %933 = math.absf %932 : vector<8x128xf32>
    %cst_249 = arith.constant 9.99999968E-21 : f32
    %934 = vector.broadcast %cst_249 : f32 to vector<8x128xf32>
    %935 = arith.cmpf ole, %933, %934 : vector<8x128xf32>
    %cst_250 = arith.constant 1.000000e+00 : f32
    %936 = vector.broadcast %cst_250 : f32 to vector<8x128xf32>
    %937 = arith.select %935, %936, %932 : vector<8x128xi1>, vector<8x128xf32>
    %938 = tpu.reciprocal %937 {approx = true} : vector<8x128xf32> -> vector<8x128xf32>
    %cst_251 = arith.constant 0.000000e+00 : f32
    %939 = vector.broadcast %cst_251 : f32 to vector<8x128xf32>
    %940 = arith.subf %939, %737 : vector<8x128xf32>
    %941 = arith.mulf %940, %938 : vector<8x128xf32>
    %cst_252 = arith.constant dense<true> : vector<8x128xi1>
    %942 = arith.xori %935, %cst_252 : vector<8x128xi1>
    %cst_253 = arith.constant 0.000000e+00 : f32
    %943 = vector.broadcast %cst_253 : f32 to vector<8x128xf32>
    %944 = arith.cmpf ogt, %932, %943 : vector<8x128xf32>
    %945 = arith.andi %942, %944 : vector<8x128xi1>
    %946 = arith.maximumf %931, %941 : vector<8x128xf32>
    %947 = arith.select %945, %946, %931 : vector<8x128xi1>, vector<8x128xf32>
    %cst_254 = arith.constant dense<true> : vector<8x128xi1>
    %948 = arith.xori %935, %cst_254 : vector<8x128xi1>
    %cst_255 = arith.constant 0.000000e+00 : f32
    %949 = vector.broadcast %cst_255 : f32 to vector<8x128xf32>
    %950 = arith.cmpf olt, %932, %949 : vector<8x128xf32>
    %951 = arith.andi %948, %950 : vector<8x128xi1>
    %952 = arith.minimumf %926, %941 : vector<8x128xf32>
    %953 = arith.select %951, %952, %926 : vector<8x128xi1>, vector<8x128xf32>
    %cst_256 = arith.constant 0.000000e+00 : f32
    %954 = vector.broadcast %cst_256 : f32 to vector<8x128xf32>
    %955 = arith.cmpf ole, %737, %954 : vector<8x128xf32>
    %956 = arith.andi %935, %955 : vector<8x128xi1>
    %cst_257 = arith.constant 2.000000e+00 : f32
    %957 = vector.broadcast %cst_257 : f32 to vector<8x128xf32>
    %958 = arith.select %956, %957, %947 : vector<8x128xi1>, vector<8x128xf32>
    %959 = arith.subf %757, %741 : vector<8x128xf32>
    %960 = math.absf %959 : vector<8x128xf32>
    %cst_258 = arith.constant 9.99999968E-21 : f32
    %961 = vector.broadcast %cst_258 : f32 to vector<8x128xf32>
    %962 = arith.cmpf ole, %960, %961 : vector<8x128xf32>
    %cst_259 = arith.constant 1.000000e+00 : f32
    %963 = vector.broadcast %cst_259 : f32 to vector<8x128xf32>
    %964 = arith.select %962, %963, %959 : vector<8x128xi1>, vector<8x128xf32>
    %965 = tpu.reciprocal %964 {approx = true} : vector<8x128xf32> -> vector<8x128xf32>
    %cst_260 = arith.constant 0.000000e+00 : f32
    %966 = vector.broadcast %cst_260 : f32 to vector<8x128xf32>
    %967 = arith.subf %966, %741 : vector<8x128xf32>
    %968 = arith.mulf %967, %965 : vector<8x128xf32>
    %cst_261 = arith.constant dense<true> : vector<8x128xi1>
    %969 = arith.xori %962, %cst_261 : vector<8x128xi1>
    %cst_262 = arith.constant 0.000000e+00 : f32
    %970 = vector.broadcast %cst_262 : f32 to vector<8x128xf32>
    %971 = arith.cmpf ogt, %959, %970 : vector<8x128xf32>
    %972 = arith.andi %969, %971 : vector<8x128xi1>
    %973 = arith.maximumf %958, %968 : vector<8x128xf32>
    %974 = arith.select %972, %973, %958 : vector<8x128xi1>, vector<8x128xf32>
    %cst_263 = arith.constant dense<true> : vector<8x128xi1>
    %975 = arith.xori %962, %cst_263 : vector<8x128xi1>
    %cst_264 = arith.constant 0.000000e+00 : f32
    %976 = vector.broadcast %cst_264 : f32 to vector<8x128xf32>
    %977 = arith.cmpf olt, %959, %976 : vector<8x128xf32>
    %978 = arith.andi %975, %977 : vector<8x128xi1>
    %979 = arith.minimumf %953, %968 : vector<8x128xf32>
    %980 = arith.select %978, %979, %953 : vector<8x128xi1>, vector<8x128xf32>
    %cst_265 = arith.constant 0.000000e+00 : f32
    %981 = vector.broadcast %cst_265 : f32 to vector<8x128xf32>
    %982 = arith.cmpf ole, %741, %981 : vector<8x128xf32>
    %983 = arith.andi %962, %982 : vector<8x128xi1>
    %cst_266 = arith.constant 2.000000e+00 : f32
    %984 = vector.broadcast %cst_266 : f32 to vector<8x128xf32>
    %985 = arith.select %983, %984, %974 : vector<8x128xi1>, vector<8x128xf32>
    %986 = arith.subf %761, %745 : vector<8x128xf32>
    %987 = math.absf %986 : vector<8x128xf32>
    %cst_267 = arith.constant 9.99999968E-21 : f32
    %988 = vector.broadcast %cst_267 : f32 to vector<8x128xf32>
    %989 = arith.cmpf ole, %987, %988 : vector<8x128xf32>
    %cst_268 = arith.constant 1.000000e+00 : f32
    %990 = vector.broadcast %cst_268 : f32 to vector<8x128xf32>
    %991 = arith.select %989, %990, %986 : vector<8x128xi1>, vector<8x128xf32>
    %992 = tpu.reciprocal %991 {approx = true} : vector<8x128xf32> -> vector<8x128xf32>
    %cst_269 = arith.constant 0.000000e+00 : f32
    %993 = vector.broadcast %cst_269 : f32 to vector<8x128xf32>
    %994 = arith.subf %993, %745 : vector<8x128xf32>
    %995 = arith.mulf %994, %992 : vector<8x128xf32>
    %cst_270 = arith.constant dense<true> : vector<8x128xi1>
    %996 = arith.xori %989, %cst_270 : vector<8x128xi1>
    %cst_271 = arith.constant 0.000000e+00 : f32
    %997 = vector.broadcast %cst_271 : f32 to vector<8x128xf32>
    %998 = arith.cmpf ogt, %986, %997 : vector<8x128xf32>
    %999 = arith.andi %996, %998 : vector<8x128xi1>
    %1000 = arith.maximumf %985, %995 : vector<8x128xf32>
    %1001 = arith.select %999, %1000, %985 : vector<8x128xi1>, vector<8x128xf32>
    %cst_272 = arith.constant dense<true> : vector<8x128xi1>
    %1002 = arith.xori %989, %cst_272 : vector<8x128xi1>
    %cst_273 = arith.constant 0.000000e+00 : f32
    %1003 = vector.broadcast %cst_273 : f32 to vector<8x128xf32>
    %1004 = arith.cmpf olt, %986, %1003 : vector<8x128xf32>
    %1005 = arith.andi %1002, %1004 : vector<8x128xi1>
    %1006 = arith.minimumf %980, %995 : vector<8x128xf32>
    %1007 = arith.select %1005, %1006, %980 : vector<8x128xi1>, vector<8x128xf32>
    %cst_274 = arith.constant 0.000000e+00 : f32
    %1008 = vector.broadcast %cst_274 : f32 to vector<8x128xf32>
    %1009 = arith.cmpf ole, %745, %1008 : vector<8x128xf32>
    %1010 = arith.andi %989, %1009 : vector<8x128xi1>
    %cst_275 = arith.constant 2.000000e+00 : f32
    %1011 = vector.broadcast %cst_275 : f32 to vector<8x128xf32>
    %1012 = arith.select %1010, %1011, %1001 : vector<8x128xi1>, vector<8x128xf32>
    %1013 = arith.cmpf ogt, %1007, %1012 : vector<8x128xf32>
    %1014 = arith.extui %1013 : vector<8x128xi1> to vector<8x128xi32>
    %1015 = arith.sitofp %1014 : vector<8x128xi32> to vector<8x128xf32>
    %1016 = arith.mulf %1012, %132 : vector<8x128xf32>
    %1017 = arith.addf %91, %1016 : vector<8x128xf32>
    %1018 = arith.mulf %1012, %133 : vector<8x128xf32>
    %1019 = arith.addf %94, %1018 : vector<8x128xf32>
    %1020 = arith.mulf %1007, %132 : vector<8x128xf32>
    %1021 = arith.addf %91, %1020 : vector<8x128xf32>
    %1022 = arith.mulf %1007, %133 : vector<8x128xf32>
    %1023 = arith.addf %94, %1022 : vector<8x128xf32>
    %1024 = arith.mulf %1017, %1023 : vector<8x128xf32>
    %1025 = arith.mulf %1019, %1021 : vector<8x128xf32>
    %1026 = arith.subf %1024, %1025 : vector<8x128xf32>
    %1027 = arith.mulf %1015, %1026 : vector<8x128xf32>
    %1028 = arith.addf %902, %1027 : vector<8x128xf32>
    %cst_276 = arith.constant 0.000000e+00 : f32
    %1029 = vector.broadcast %cst_276 : f32 to vector<8x128xf32>
    %cst_277 = arith.constant 1.000000e+00 : f32
    %1030 = vector.broadcast %cst_277 : f32 to vector<8x128xf32>
    %1031 = arith.subf %765, %749 : vector<8x128xf32>
    %1032 = math.absf %1031 : vector<8x128xf32>
    %cst_278 = arith.constant 9.99999968E-21 : f32
    %1033 = vector.broadcast %cst_278 : f32 to vector<8x128xf32>
    %1034 = arith.cmpf ole, %1032, %1033 : vector<8x128xf32>
    %cst_279 = arith.constant 1.000000e+00 : f32
    %1035 = vector.broadcast %cst_279 : f32 to vector<8x128xf32>
    %1036 = arith.select %1034, %1035, %1031 : vector<8x128xi1>, vector<8x128xf32>
    %1037 = tpu.reciprocal %1036 {approx = true} : vector<8x128xf32> -> vector<8x128xf32>
    %cst_280 = arith.constant 0.000000e+00 : f32
    %1038 = vector.broadcast %cst_280 : f32 to vector<8x128xf32>
    %1039 = arith.subf %1038, %749 : vector<8x128xf32>
    %1040 = arith.mulf %1039, %1037 : vector<8x128xf32>
    %cst_281 = arith.constant dense<true> : vector<8x128xi1>
    %1041 = arith.xori %1034, %cst_281 : vector<8x128xi1>
    %cst_282 = arith.constant 0.000000e+00 : f32
    %1042 = vector.broadcast %cst_282 : f32 to vector<8x128xf32>
    %1043 = arith.cmpf ogt, %1031, %1042 : vector<8x128xf32>
    %1044 = arith.andi %1041, %1043 : vector<8x128xi1>
    %1045 = arith.maximumf %1029, %1040 : vector<8x128xf32>
    %1046 = arith.select %1044, %1045, %1029 : vector<8x128xi1>, vector<8x128xf32>
    %cst_283 = arith.constant dense<true> : vector<8x128xi1>
    %1047 = arith.xori %1034, %cst_283 : vector<8x128xi1>
    %cst_284 = arith.constant 0.000000e+00 : f32
    %1048 = vector.broadcast %cst_284 : f32 to vector<8x128xf32>
    %1049 = arith.cmpf olt, %1031, %1048 : vector<8x128xf32>
    %1050 = arith.andi %1047, %1049 : vector<8x128xi1>
    %1051 = arith.minimumf %1030, %1040 : vector<8x128xf32>
    %1052 = arith.select %1050, %1051, %1030 : vector<8x128xi1>, vector<8x128xf32>
    %cst_285 = arith.constant 0.000000e+00 : f32
    %1053 = vector.broadcast %cst_285 : f32 to vector<8x128xf32>
    %1054 = arith.cmpf ole, %749, %1053 : vector<8x128xf32>
    %1055 = arith.andi %1034, %1054 : vector<8x128xi1>
    %cst_286 = arith.constant 2.000000e+00 : f32
    %1056 = vector.broadcast %cst_286 : f32 to vector<8x128xf32>
    %1057 = arith.select %1055, %1056, %1046 : vector<8x128xi1>, vector<8x128xf32>
    %1058 = arith.subf %769, %753 : vector<8x128xf32>
    %1059 = math.absf %1058 : vector<8x128xf32>
    %cst_287 = arith.constant 9.99999968E-21 : f32
    %1060 = vector.broadcast %cst_287 : f32 to vector<8x128xf32>
    %1061 = arith.cmpf ole, %1059, %1060 : vector<8x128xf32>
    %cst_288 = arith.constant 1.000000e+00 : f32
    %1062 = vector.broadcast %cst_288 : f32 to vector<8x128xf32>
    %1063 = arith.select %1061, %1062, %1058 : vector<8x128xi1>, vector<8x128xf32>
    %1064 = tpu.reciprocal %1063 {approx = true} : vector<8x128xf32> -> vector<8x128xf32>
    %cst_289 = arith.constant 0.000000e+00 : f32
    %1065 = vector.broadcast %cst_289 : f32 to vector<8x128xf32>
    %1066 = arith.subf %1065, %753 : vector<8x128xf32>
    %1067 = arith.mulf %1066, %1064 : vector<8x128xf32>
    %cst_290 = arith.constant dense<true> : vector<8x128xi1>
    %1068 = arith.xori %1061, %cst_290 : vector<8x128xi1>
    %cst_291 = arith.constant 0.000000e+00 : f32
    %1069 = vector.broadcast %cst_291 : f32 to vector<8x128xf32>
    %1070 = arith.cmpf ogt, %1058, %1069 : vector<8x128xf32>
    %1071 = arith.andi %1068, %1070 : vector<8x128xi1>
    %1072 = arith.maximumf %1057, %1067 : vector<8x128xf32>
    %1073 = arith.select %1071, %1072, %1057 : vector<8x128xi1>, vector<8x128xf32>
    %cst_292 = arith.constant dense<true> : vector<8x128xi1>
    %1074 = arith.xori %1061, %cst_292 : vector<8x128xi1>
    %cst_293 = arith.constant 0.000000e+00 : f32
    %1075 = vector.broadcast %cst_293 : f32 to vector<8x128xf32>
    %1076 = arith.cmpf olt, %1058, %1075 : vector<8x128xf32>
    %1077 = arith.andi %1074, %1076 : vector<8x128xi1>
    %1078 = arith.minimumf %1052, %1067 : vector<8x128xf32>
    %1079 = arith.select %1077, %1078, %1052 : vector<8x128xi1>, vector<8x128xf32>
    %cst_294 = arith.constant 0.000000e+00 : f32
    %1080 = vector.broadcast %cst_294 : f32 to vector<8x128xf32>
    %1081 = arith.cmpf ole, %753, %1080 : vector<8x128xf32>
    %1082 = arith.andi %1061, %1081 : vector<8x128xi1>
    %cst_295 = arith.constant 2.000000e+00 : f32
    %1083 = vector.broadcast %cst_295 : f32 to vector<8x128xf32>
    %1084 = arith.select %1082, %1083, %1073 : vector<8x128xi1>, vector<8x128xf32>
    %1085 = arith.subf %773, %757 : vector<8x128xf32>
    %1086 = math.absf %1085 : vector<8x128xf32>
    %cst_296 = arith.constant 9.99999968E-21 : f32
    %1087 = vector.broadcast %cst_296 : f32 to vector<8x128xf32>
    %1088 = arith.cmpf ole, %1086, %1087 : vector<8x128xf32>
    %cst_297 = arith.constant 1.000000e+00 : f32
    %1089 = vector.broadcast %cst_297 : f32 to vector<8x128xf32>
    %1090 = arith.select %1088, %1089, %1085 : vector<8x128xi1>, vector<8x128xf32>
    %1091 = tpu.reciprocal %1090 {approx = true} : vector<8x128xf32> -> vector<8x128xf32>
    %cst_298 = arith.constant 0.000000e+00 : f32
    %1092 = vector.broadcast %cst_298 : f32 to vector<8x128xf32>
    %1093 = arith.subf %1092, %757 : vector<8x128xf32>
    %1094 = arith.mulf %1093, %1091 : vector<8x128xf32>
    %cst_299 = arith.constant dense<true> : vector<8x128xi1>
    %1095 = arith.xori %1088, %cst_299 : vector<8x128xi1>
    %cst_300 = arith.constant 0.000000e+00 : f32
    %1096 = vector.broadcast %cst_300 : f32 to vector<8x128xf32>
    %1097 = arith.cmpf ogt, %1085, %1096 : vector<8x128xf32>
    %1098 = arith.andi %1095, %1097 : vector<8x128xi1>
    %1099 = arith.maximumf %1084, %1094 : vector<8x128xf32>
    %1100 = arith.select %1098, %1099, %1084 : vector<8x128xi1>, vector<8x128xf32>
    %cst_301 = arith.constant dense<true> : vector<8x128xi1>
    %1101 = arith.xori %1088, %cst_301 : vector<8x128xi1>
    %cst_302 = arith.constant 0.000000e+00 : f32
    %1102 = vector.broadcast %cst_302 : f32 to vector<8x128xf32>
    %1103 = arith.cmpf olt, %1085, %1102 : vector<8x128xf32>
    %1104 = arith.andi %1101, %1103 : vector<8x128xi1>
    %1105 = arith.minimumf %1079, %1094 : vector<8x128xf32>
    %1106 = arith.select %1104, %1105, %1079 : vector<8x128xi1>, vector<8x128xf32>
    %cst_303 = arith.constant 0.000000e+00 : f32
    %1107 = vector.broadcast %cst_303 : f32 to vector<8x128xf32>
    %1108 = arith.cmpf ole, %757, %1107 : vector<8x128xf32>
    %1109 = arith.andi %1088, %1108 : vector<8x128xi1>
    %cst_304 = arith.constant 2.000000e+00 : f32
    %1110 = vector.broadcast %cst_304 : f32 to vector<8x128xf32>
    %1111 = arith.select %1109, %1110, %1100 : vector<8x128xi1>, vector<8x128xf32>
    %1112 = arith.subf %777, %761 : vector<8x128xf32>
    %1113 = math.absf %1112 : vector<8x128xf32>
    %cst_305 = arith.constant 9.99999968E-21 : f32
    %1114 = vector.broadcast %cst_305 : f32 to vector<8x128xf32>
    %1115 = arith.cmpf ole, %1113, %1114 : vector<8x128xf32>
    %cst_306 = arith.constant 1.000000e+00 : f32
    %1116 = vector.broadcast %cst_306 : f32 to vector<8x128xf32>
    %1117 = arith.select %1115, %1116, %1112 : vector<8x128xi1>, vector<8x128xf32>
    %1118 = tpu.reciprocal %1117 {approx = true} : vector<8x128xf32> -> vector<8x128xf32>
    %cst_307 = arith.constant 0.000000e+00 : f32
    %1119 = vector.broadcast %cst_307 : f32 to vector<8x128xf32>
    %1120 = arith.subf %1119, %761 : vector<8x128xf32>
    %1121 = arith.mulf %1120, %1118 : vector<8x128xf32>
    %cst_308 = arith.constant dense<true> : vector<8x128xi1>
    %1122 = arith.xori %1115, %cst_308 : vector<8x128xi1>
    %cst_309 = arith.constant 0.000000e+00 : f32
    %1123 = vector.broadcast %cst_309 : f32 to vector<8x128xf32>
    %1124 = arith.cmpf ogt, %1112, %1123 : vector<8x128xf32>
    %1125 = arith.andi %1122, %1124 : vector<8x128xi1>
    %1126 = arith.maximumf %1111, %1121 : vector<8x128xf32>
    %1127 = arith.select %1125, %1126, %1111 : vector<8x128xi1>, vector<8x128xf32>
    %cst_310 = arith.constant dense<true> : vector<8x128xi1>
    %1128 = arith.xori %1115, %cst_310 : vector<8x128xi1>
    %cst_311 = arith.constant 0.000000e+00 : f32
    %1129 = vector.broadcast %cst_311 : f32 to vector<8x128xf32>
    %1130 = arith.cmpf olt, %1112, %1129 : vector<8x128xf32>
    %1131 = arith.andi %1128, %1130 : vector<8x128xi1>
    %1132 = arith.minimumf %1106, %1121 : vector<8x128xf32>
    %1133 = arith.select %1131, %1132, %1106 : vector<8x128xi1>, vector<8x128xf32>
    %cst_312 = arith.constant 0.000000e+00 : f32
    %1134 = vector.broadcast %cst_312 : f32 to vector<8x128xf32>
    %1135 = arith.cmpf ole, %761, %1134 : vector<8x128xf32>
    %1136 = arith.andi %1115, %1135 : vector<8x128xi1>
    %cst_313 = arith.constant 2.000000e+00 : f32
    %1137 = vector.broadcast %cst_313 : f32 to vector<8x128xf32>
    %1138 = arith.select %1136, %1137, %1127 : vector<8x128xi1>, vector<8x128xf32>
    %1139 = arith.cmpf ogt, %1133, %1138 : vector<8x128xf32>
    %1140 = arith.extui %1139 : vector<8x128xi1> to vector<8x128xi32>
    %1141 = arith.sitofp %1140 : vector<8x128xi32> to vector<8x128xf32>
    %1142 = arith.mulf %1138, %137 : vector<8x128xf32>
    %1143 = arith.addf %97, %1142 : vector<8x128xf32>
    %1144 = arith.mulf %1138, %138 : vector<8x128xf32>
    %1145 = arith.addf %100, %1144 : vector<8x128xf32>
    %1146 = arith.mulf %1133, %137 : vector<8x128xf32>
    %1147 = arith.addf %97, %1146 : vector<8x128xf32>
    %1148 = arith.mulf %1133, %138 : vector<8x128xf32>
    %1149 = arith.addf %100, %1148 : vector<8x128xf32>
    %1150 = arith.mulf %1143, %1149 : vector<8x128xf32>
    %1151 = arith.mulf %1145, %1147 : vector<8x128xf32>
    %1152 = arith.subf %1150, %1151 : vector<8x128xf32>
    %1153 = arith.mulf %1141, %1152 : vector<8x128xf32>
    %1154 = arith.addf %1028, %1153 : vector<8x128xf32>
    %cst_314 = arith.constant 0.000000e+00 : f32
    %1155 = vector.broadcast %cst_314 : f32 to vector<8x128xf32>
    %cst_315 = arith.constant 1.000000e+00 : f32
    %1156 = vector.broadcast %cst_315 : f32 to vector<8x128xf32>
    %1157 = arith.subf %717, %765 : vector<8x128xf32>
    %1158 = math.absf %1157 : vector<8x128xf32>
    %cst_316 = arith.constant 9.99999968E-21 : f32
    %1159 = vector.broadcast %cst_316 : f32 to vector<8x128xf32>
    %1160 = arith.cmpf ole, %1158, %1159 : vector<8x128xf32>
    %cst_317 = arith.constant 1.000000e+00 : f32
    %1161 = vector.broadcast %cst_317 : f32 to vector<8x128xf32>
    %1162 = arith.select %1160, %1161, %1157 : vector<8x128xi1>, vector<8x128xf32>
    %1163 = tpu.reciprocal %1162 {approx = true} : vector<8x128xf32> -> vector<8x128xf32>
    %cst_318 = arith.constant 0.000000e+00 : f32
    %1164 = vector.broadcast %cst_318 : f32 to vector<8x128xf32>
    %1165 = arith.subf %1164, %765 : vector<8x128xf32>
    %1166 = arith.mulf %1165, %1163 : vector<8x128xf32>
    %cst_319 = arith.constant dense<true> : vector<8x128xi1>
    %1167 = arith.xori %1160, %cst_319 : vector<8x128xi1>
    %cst_320 = arith.constant 0.000000e+00 : f32
    %1168 = vector.broadcast %cst_320 : f32 to vector<8x128xf32>
    %1169 = arith.cmpf ogt, %1157, %1168 : vector<8x128xf32>
    %1170 = arith.andi %1167, %1169 : vector<8x128xi1>
    %1171 = arith.maximumf %1155, %1166 : vector<8x128xf32>
    %1172 = arith.select %1170, %1171, %1155 : vector<8x128xi1>, vector<8x128xf32>
    %cst_321 = arith.constant dense<true> : vector<8x128xi1>
    %1173 = arith.xori %1160, %cst_321 : vector<8x128xi1>
    %cst_322 = arith.constant 0.000000e+00 : f32
    %1174 = vector.broadcast %cst_322 : f32 to vector<8x128xf32>
    %1175 = arith.cmpf olt, %1157, %1174 : vector<8x128xf32>
    %1176 = arith.andi %1173, %1175 : vector<8x128xi1>
    %1177 = arith.minimumf %1156, %1166 : vector<8x128xf32>
    %1178 = arith.select %1176, %1177, %1156 : vector<8x128xi1>, vector<8x128xf32>
    %cst_323 = arith.constant 0.000000e+00 : f32
    %1179 = vector.broadcast %cst_323 : f32 to vector<8x128xf32>
    %1180 = arith.cmpf ole, %765, %1179 : vector<8x128xf32>
    %1181 = arith.andi %1160, %1180 : vector<8x128xi1>
    %cst_324 = arith.constant 2.000000e+00 : f32
    %1182 = vector.broadcast %cst_324 : f32 to vector<8x128xf32>
    %1183 = arith.select %1181, %1182, %1172 : vector<8x128xi1>, vector<8x128xf32>
    %1184 = arith.subf %721, %769 : vector<8x128xf32>
    %1185 = math.absf %1184 : vector<8x128xf32>
    %cst_325 = arith.constant 9.99999968E-21 : f32
    %1186 = vector.broadcast %cst_325 : f32 to vector<8x128xf32>
    %1187 = arith.cmpf ole, %1185, %1186 : vector<8x128xf32>
    %cst_326 = arith.constant 1.000000e+00 : f32
    %1188 = vector.broadcast %cst_326 : f32 to vector<8x128xf32>
    %1189 = arith.select %1187, %1188, %1184 : vector<8x128xi1>, vector<8x128xf32>
    %1190 = tpu.reciprocal %1189 {approx = true} : vector<8x128xf32> -> vector<8x128xf32>
    %cst_327 = arith.constant 0.000000e+00 : f32
    %1191 = vector.broadcast %cst_327 : f32 to vector<8x128xf32>
    %1192 = arith.subf %1191, %769 : vector<8x128xf32>
    %1193 = arith.mulf %1192, %1190 : vector<8x128xf32>
    %cst_328 = arith.constant dense<true> : vector<8x128xi1>
    %1194 = arith.xori %1187, %cst_328 : vector<8x128xi1>
    %cst_329 = arith.constant 0.000000e+00 : f32
    %1195 = vector.broadcast %cst_329 : f32 to vector<8x128xf32>
    %1196 = arith.cmpf ogt, %1184, %1195 : vector<8x128xf32>
    %1197 = arith.andi %1194, %1196 : vector<8x128xi1>
    %1198 = arith.maximumf %1183, %1193 : vector<8x128xf32>
    %1199 = arith.select %1197, %1198, %1183 : vector<8x128xi1>, vector<8x128xf32>
    %cst_330 = arith.constant dense<true> : vector<8x128xi1>
    %1200 = arith.xori %1187, %cst_330 : vector<8x128xi1>
    %cst_331 = arith.constant 0.000000e+00 : f32
    %1201 = vector.broadcast %cst_331 : f32 to vector<8x128xf32>
    %1202 = arith.cmpf olt, %1184, %1201 : vector<8x128xf32>
    %1203 = arith.andi %1200, %1202 : vector<8x128xi1>
    %1204 = arith.minimumf %1178, %1193 : vector<8x128xf32>
    %1205 = arith.select %1203, %1204, %1178 : vector<8x128xi1>, vector<8x128xf32>
    %cst_332 = arith.constant 0.000000e+00 : f32
    %1206 = vector.broadcast %cst_332 : f32 to vector<8x128xf32>
    %1207 = arith.cmpf ole, %769, %1206 : vector<8x128xf32>
    %1208 = arith.andi %1187, %1207 : vector<8x128xi1>
    %cst_333 = arith.constant 2.000000e+00 : f32
    %1209 = vector.broadcast %cst_333 : f32 to vector<8x128xf32>
    %1210 = arith.select %1208, %1209, %1199 : vector<8x128xi1>, vector<8x128xf32>
    %1211 = arith.subf %725, %773 : vector<8x128xf32>
    %1212 = math.absf %1211 : vector<8x128xf32>
    %cst_334 = arith.constant 9.99999968E-21 : f32
    %1213 = vector.broadcast %cst_334 : f32 to vector<8x128xf32>
    %1214 = arith.cmpf ole, %1212, %1213 : vector<8x128xf32>
    %cst_335 = arith.constant 1.000000e+00 : f32
    %1215 = vector.broadcast %cst_335 : f32 to vector<8x128xf32>
    %1216 = arith.select %1214, %1215, %1211 : vector<8x128xi1>, vector<8x128xf32>
    %1217 = tpu.reciprocal %1216 {approx = true} : vector<8x128xf32> -> vector<8x128xf32>
    %cst_336 = arith.constant 0.000000e+00 : f32
    %1218 = vector.broadcast %cst_336 : f32 to vector<8x128xf32>
    %1219 = arith.subf %1218, %773 : vector<8x128xf32>
    %1220 = arith.mulf %1219, %1217 : vector<8x128xf32>
    %cst_337 = arith.constant dense<true> : vector<8x128xi1>
    %1221 = arith.xori %1214, %cst_337 : vector<8x128xi1>
    %cst_338 = arith.constant 0.000000e+00 : f32
    %1222 = vector.broadcast %cst_338 : f32 to vector<8x128xf32>
    %1223 = arith.cmpf ogt, %1211, %1222 : vector<8x128xf32>
    %1224 = arith.andi %1221, %1223 : vector<8x128xi1>
    %1225 = arith.maximumf %1210, %1220 : vector<8x128xf32>
    %1226 = arith.select %1224, %1225, %1210 : vector<8x128xi1>, vector<8x128xf32>
    %cst_339 = arith.constant dense<true> : vector<8x128xi1>
    %1227 = arith.xori %1214, %cst_339 : vector<8x128xi1>
    %cst_340 = arith.constant 0.000000e+00 : f32
    %1228 = vector.broadcast %cst_340 : f32 to vector<8x128xf32>
    %1229 = arith.cmpf olt, %1211, %1228 : vector<8x128xf32>
    %1230 = arith.andi %1227, %1229 : vector<8x128xi1>
    %1231 = arith.minimumf %1205, %1220 : vector<8x128xf32>
    %1232 = arith.select %1230, %1231, %1205 : vector<8x128xi1>, vector<8x128xf32>
    %cst_341 = arith.constant 0.000000e+00 : f32
    %1233 = vector.broadcast %cst_341 : f32 to vector<8x128xf32>
    %1234 = arith.cmpf ole, %773, %1233 : vector<8x128xf32>
    %1235 = arith.andi %1214, %1234 : vector<8x128xi1>
    %cst_342 = arith.constant 2.000000e+00 : f32
    %1236 = vector.broadcast %cst_342 : f32 to vector<8x128xf32>
    %1237 = arith.select %1235, %1236, %1226 : vector<8x128xi1>, vector<8x128xf32>
    %1238 = arith.subf %729, %777 : vector<8x128xf32>
    %1239 = math.absf %1238 : vector<8x128xf32>
    %cst_343 = arith.constant 9.99999968E-21 : f32
    %1240 = vector.broadcast %cst_343 : f32 to vector<8x128xf32>
    %1241 = arith.cmpf ole, %1239, %1240 : vector<8x128xf32>
    %cst_344 = arith.constant 1.000000e+00 : f32
    %1242 = vector.broadcast %cst_344 : f32 to vector<8x128xf32>
    %1243 = arith.select %1241, %1242, %1238 : vector<8x128xi1>, vector<8x128xf32>
    %1244 = tpu.reciprocal %1243 {approx = true} : vector<8x128xf32> -> vector<8x128xf32>
    %cst_345 = arith.constant 0.000000e+00 : f32
    %1245 = vector.broadcast %cst_345 : f32 to vector<8x128xf32>
    %1246 = arith.subf %1245, %777 : vector<8x128xf32>
    %1247 = arith.mulf %1246, %1244 : vector<8x128xf32>
    %cst_346 = arith.constant dense<true> : vector<8x128xi1>
    %1248 = arith.xori %1241, %cst_346 : vector<8x128xi1>
    %cst_347 = arith.constant 0.000000e+00 : f32
    %1249 = vector.broadcast %cst_347 : f32 to vector<8x128xf32>
    %1250 = arith.cmpf ogt, %1238, %1249 : vector<8x128xf32>
    %1251 = arith.andi %1248, %1250 : vector<8x128xi1>
    %1252 = arith.maximumf %1237, %1247 : vector<8x128xf32>
    %1253 = arith.select %1251, %1252, %1237 : vector<8x128xi1>, vector<8x128xf32>
    %cst_348 = arith.constant dense<true> : vector<8x128xi1>
    %1254 = arith.xori %1241, %cst_348 : vector<8x128xi1>
    %cst_349 = arith.constant 0.000000e+00 : f32
    %1255 = vector.broadcast %cst_349 : f32 to vector<8x128xf32>
    %1256 = arith.cmpf olt, %1238, %1255 : vector<8x128xf32>
    %1257 = arith.andi %1254, %1256 : vector<8x128xi1>
    %1258 = arith.minimumf %1232, %1247 : vector<8x128xf32>
    %1259 = arith.select %1257, %1258, %1232 : vector<8x128xi1>, vector<8x128xf32>
    %cst_350 = arith.constant 0.000000e+00 : f32
    %1260 = vector.broadcast %cst_350 : f32 to vector<8x128xf32>
    %1261 = arith.cmpf ole, %777, %1260 : vector<8x128xf32>
    %1262 = arith.andi %1241, %1261 : vector<8x128xi1>
    %cst_351 = arith.constant 2.000000e+00 : f32
    %1263 = vector.broadcast %cst_351 : f32 to vector<8x128xf32>
    %1264 = arith.select %1262, %1263, %1253 : vector<8x128xi1>, vector<8x128xf32>
    %1265 = arith.cmpf ogt, %1259, %1264 : vector<8x128xf32>
    %1266 = arith.extui %1265 : vector<8x128xi1> to vector<8x128xi32>
    %1267 = arith.sitofp %1266 : vector<8x128xi32> to vector<8x128xf32>
    %1268 = arith.mulf %1264, %142 : vector<8x128xf32>
    %1269 = arith.addf %103, %1268 : vector<8x128xf32>
    %1270 = arith.mulf %1264, %143 : vector<8x128xf32>
    %1271 = arith.addf %106, %1270 : vector<8x128xf32>
    %1272 = arith.mulf %1259, %142 : vector<8x128xf32>
    %1273 = arith.addf %103, %1272 : vector<8x128xf32>
    %1274 = arith.mulf %1259, %143 : vector<8x128xf32>
    %1275 = arith.addf %106, %1274 : vector<8x128xf32>
    %1276 = arith.mulf %1269, %1275 : vector<8x128xf32>
    %1277 = arith.mulf %1271, %1273 : vector<8x128xf32>
    %1278 = arith.subf %1276, %1277 : vector<8x128xf32>
    %1279 = arith.mulf %1267, %1278 : vector<8x128xf32>
    %1280 = arith.addf %1154, %1279 : vector<8x128xf32>
    %1281 = arith.addf %713, %1280 : vector<8x128xf32>
    %cst_352 = arith.constant 5.000000e-01 : f32
    %1282 = vector.broadcast %cst_352 : f32 to vector<8x128xf32>
    %1283 = arith.mulf %1282, %1281 : vector<8x128xf32>
    %cst_353 = arith.constant 0.000000e+00 : f32
    %1284 = vector.broadcast %cst_353 : f32 to vector<8x128xf32>
    %1285 = arith.maximumf %1283, %1284 : vector<8x128xf32>
    %c0_354 = arith.constant 0 : index
    %c2 = arith.constant 2 : index
    %c0_355 = arith.constant 0 : index
    %c0_356 = arith.constant 0 : index
    %1286 = vector.load %arg1[%c0_354, %c2, %c0_355, %c0_356] : memref<1x18x8x128xf32, #tpu.memory_space<vmem>>, vector<1x1x8x128xf32>
    %1287 = vector.shape_cast %1286 : vector<1x1x8x128xf32> to vector<8x128xf32>
    %c0_357 = arith.constant 0 : index
    %c5 = arith.constant 5 : index
    %c0_358 = arith.constant 0 : index
    %c0_359 = arith.constant 0 : index
    %1288 = vector.load %arg1[%c0_357, %c5, %c0_358, %c0_359] : memref<1x18x8x128xf32, #tpu.memory_space<vmem>>, vector<1x1x8x128xf32>
    %1289 = vector.shape_cast %1288 : vector<1x1x8x128xf32> to vector<8x128xf32>
    %c0_360 = arith.constant 0 : index
    %c10 = arith.constant 10 : index
    %c0_361 = arith.constant 0 : index
    %c0_362 = arith.constant 0 : index
    %1290 = vector.load %arg1[%c0_360, %c10, %c0_361, %c0_362] : memref<1x18x8x128xf32, #tpu.memory_space<vmem>>, vector<1x1x8x128xf32>
    %1291 = vector.shape_cast %1290 : vector<1x1x8x128xf32> to vector<8x128xf32>
    %c0_363 = arith.constant 0 : index
    %c13 = arith.constant 13 : index
    %c0_364 = arith.constant 0 : index
    %c0_365 = arith.constant 0 : index
    %1292 = vector.load %arg1[%c0_363, %c13, %c0_364, %c0_365] : memref<1x18x8x128xf32, #tpu.memory_space<vmem>>, vector<1x1x8x128xf32>
    %1293 = vector.shape_cast %1292 : vector<1x1x8x128xf32> to vector<8x128xf32>
    %1294 = arith.subf %1287, %1291 : vector<8x128xf32>
    %cst_366 = arith.constant 5.000000e-01 : f32
    %1295 = vector.broadcast %cst_366 : f32 to vector<8x128xf32>
    %1296 = arith.mulf %1295, %1289 : vector<8x128xf32>
    %cst_367 = arith.constant 5.000000e-01 : f32
    %1297 = vector.broadcast %cst_367 : f32 to vector<8x128xf32>
    %1298 = arith.mulf %1297, %1293 : vector<8x128xf32>
    %1299 = arith.addf %1294, %1296 : vector<8x128xf32>
    %1300 = arith.minimumf %1299, %1298 : vector<8x128xf32>
    %1301 = arith.subf %1294, %1296 : vector<8x128xf32>
    %cst_368 = arith.constant 0.000000e+00 : f32
    %1302 = vector.broadcast %cst_368 : f32 to vector<8x128xf32>
    %1303 = arith.subf %1302, %1298 : vector<8x128xf32>
    %1304 = arith.maximumf %1301, %1303 : vector<8x128xf32>
    %1305 = arith.subf %1300, %1304 : vector<8x128xf32>
    %cst_369 = arith.constant 0.000000e+00 : f32
    %1306 = vector.broadcast %cst_369 : f32 to vector<8x128xf32>
    %1307 = arith.maximumf %1305, %1306 : vector<8x128xf32>
    %1308 = arith.mulf %1285, %1307 : vector<8x128xf32>
    %c0_370 = arith.constant 0 : index
    %c3_371 = arith.constant 3 : index
    %c0_372 = arith.constant 0 : index
    %c0_373 = arith.constant 0 : index
    %1309 = vector.load %arg1[%c0_370, %c3_371, %c0_372, %c0_373] : memref<1x18x8x128xf32, #tpu.memory_space<vmem>>, vector<1x1x8x128xf32>
    %1310 = vector.shape_cast %1309 : vector<1x1x8x128xf32> to vector<8x128xf32>
    %c0_374 = arith.constant 0 : index
    %c4_375 = arith.constant 4 : index
    %c0_376 = arith.constant 0 : index
    %c0_377 = arith.constant 0 : index
    %1311 = vector.load %arg1[%c0_374, %c4_375, %c0_376, %c0_377] : memref<1x18x8x128xf32, #tpu.memory_space<vmem>>, vector<1x1x8x128xf32>
    %1312 = vector.shape_cast %1311 : vector<1x1x8x128xf32> to vector<8x128xf32>
    %1313 = arith.mulf %1310, %1312 : vector<8x128xf32>
    %1314 = arith.mulf %1313, %1289 : vector<8x128xf32>
    %c0_378 = arith.constant 0 : index
    %c11_379 = arith.constant 11 : index
    %c0_380 = arith.constant 0 : index
    %c0_381 = arith.constant 0 : index
    %1315 = vector.load %arg1[%c0_378, %c11_379, %c0_380, %c0_381] : memref<1x18x8x128xf32, #tpu.memory_space<vmem>>, vector<1x1x8x128xf32>
    %1316 = vector.shape_cast %1315 : vector<1x1x8x128xf32> to vector<8x128xf32>
    %c0_382 = arith.constant 0 : index
    %c12_383 = arith.constant 12 : index
    %c0_384 = arith.constant 0 : index
    %c0_385 = arith.constant 0 : index
    %1317 = vector.load %arg1[%c0_382, %c12_383, %c0_384, %c0_385] : memref<1x18x8x128xf32, #tpu.memory_space<vmem>>, vector<1x1x8x128xf32>
    %1318 = vector.shape_cast %1317 : vector<1x1x8x128xf32> to vector<8x128xf32>
    %1319 = arith.mulf %1316, %1318 : vector<8x128xf32>
    %1320 = arith.mulf %1319, %1293 : vector<8x128xf32>
    %1321 = arith.addf %1314, %1320 : vector<8x128xf32>
    %1322 = arith.subf %1321, %1308 : vector<8x128xf32>
    %cst_386 = arith.constant 9.99999997E-7 : f32
    %1323 = vector.broadcast %cst_386 : f32 to vector<8x128xf32>
    %1324 = arith.maximumf %1322, %1323 : vector<8x128xf32>
    %1325 = arith.divf %1308, %1324 : vector<8x128xf32>
    %cst_387 = arith.constant 2.000000e+00 : f32
    %1326 = vector.broadcast %cst_387 : f32 to vector<8x128xf32>
    %1327 = arith.mulf %1326, %1325 : vector<8x128xf32>
    %cst_388 = arith.constant 1.000000e+00 : f32
    %1328 = vector.broadcast %cst_388 : f32 to vector<8x128xf32>
    %1329 = arith.subf %1327, %1328 : vector<8x128xf32>
    %c0_389 = arith.constant 0 : index
    %c16 = arith.constant 16 : index
    %c0_390 = arith.constant 0 : index
    %c0_391 = arith.constant 0 : index
    %1330 = vector.load %arg1[%c0_389, %c16, %c0_390, %c0_391] : memref<1x18x8x128xf32, #tpu.memory_space<vmem>>, vector<1x1x8x128xf32>
    %1331 = vector.shape_cast %1330 : vector<1x1x8x128xf32> to vector<8x128xf32>
    %c0_392 = arith.constant 0 : index
    %c17 = arith.constant 17 : index
    %c0_393 = arith.constant 0 : index
    %c0_394 = arith.constant 0 : index
    %1332 = vector.load %arg1[%c0_392, %c17, %c0_393, %c0_394] : memref<1x18x8x128xf32, #tpu.memory_space<vmem>>, vector<1x1x8x128xf32>
    %1333 = vector.shape_cast %1332 : vector<1x1x8x128xf32> to vector<8x128xf32>
    %cst_395 = arith.constant 0.000000e+00 : f32
    %1334 = vector.broadcast %cst_395 : f32 to vector<8x128xf32>
    %1335 = arith.cmpf ogt, %1333, %1334 : vector<8x128xf32>
    %1336 = arith.subf %1331, %1329 : vector<8x128xf32>
    %1337 = math.absf %1336 : vector<8x128xf32>
    %cst_396 = arith.constant 0.000000e+00 : f32
    %1338 = vector.broadcast %cst_396 : f32 to vector<8x128xf32>
    %1339 = arith.select %1335, %1337, %1338 : vector<8x128xi1>, vector<8x128xf32>
    %1340 = arith.addf %0, %1339 : vector<8x128xf32>
    %c0_397 = arith.constant 0 : index
    %c0_398 = arith.constant 0 : index
    %c0_399 = arith.constant 0 : index
    %1341 = vector.load %arg2[%c0_397, %c0_398, %c0_399] : memref<1x8x128xf32, #tpu.memory_space<vmem>>, vector<1x8x128xf32>
    %1342 = vector.shape_cast %1341 : vector<1x8x128xf32> to vector<8x128xf32>
    %1343 = vector.shape_cast %1340 : vector<8x128xf32> to vector<1x8x128xf32>
    tpu.vector_store %arg2[%c0_397, %c0_398, %c0_399], %1343 {strides = array<i32>} : memref<1x8x128xf32, #tpu.memory_space<vmem>>, vector<1x8x128xf32>,
    return
  }
  func.func @transform_0(%arg0: i32) -> (i32, i32, i32, i32) {
    %c0_i32 = arith.constant 0 : i32
    %c0_i32_0 = arith.constant 0 : i32
    %c0_i32_1 = arith.constant 0 : i32
    %c0_i32_2 = arith.constant 0 : i32
    return %arg0, %c0_i32, %c0_i32_0, %c0_i32_1 : i32, i32, i32, i32
  }
  func.func @transform_1(%arg0: i32) -> (i32, i32, i32) {
    %c0_i32 = arith.constant 0 : i32
    %c0_i32_0 = arith.constant 0 : i32
    %c0_i32_1 = arith.constant 0 : i32
    return %arg0, %c0_i32, %c0_i32_0 : i32, i32, i32
  }
}

</mosaic_0001>

<llo_original>
// kernel: squeeze.18
$region0: #{squeeze.18}
  %s0 = inlined_call_operand.vmem [shape: f32[2,32,1], index: 0, kind: input, shape index: {}]
  %s1 = inlined_call_operand.vmem [shape: f32[64], index: 1, kind: output, shape index: {}]
  $region1: #{squeeze.18} parent=0
    #allocation0 [shape = 'u8[4096]{0}', space=vmem, size = 0x1000, scoped, tag = 'scoped mem for output reshape']
    #allocation1 [shape = 'u8[4096]{0}', space=vmem, size = 0x1000, scoped, tag = 'scoped mem for input reshape']
    %s3 = ssub.s32 4, 1
    %v4 = vld [vmem:[%s0] sm:%s3]
    %5 = vst [vmem:[#allocation1] sm:%s3] %v4
    %v6 = vld [vmem:[#allocation1] sm:$0x1]
    %vm7 = vcmask 261120
    %8 = vst.msk [vmem:[#allocation0] sm:$0x1] %vm7, %v6
    %s9 = scalar_lea.vmem [#allocation1], 1
    %v10 = vld [vmem:[%s9] sm:$0x1]
    %11 = vrot.lane.b32.xlu0 %v10, 32
    %v12 = vpop.permute.xlu0 %11
    %vm13 = vcmask 523520
    %14 = vst.msk [vmem:[#allocation0] sm:$0x1] %vm13, %v12
    %s16 = ssub.s32 2, 1
    %v17 = vld [vmem:[#allocation0] sm:%s16]
    %s19 = ssub.s32 2, 1
    %20 = vst [vmem:[%s1] sm:%s19] %v17

// kernel: iou_loss_sparse.1
$region0: #{iou_loss_sparse.1}
  #allocation0 [shape = 'u32[]', space=smem, size = 0x4, offset = 0x4, fixed_abs, tag = 'smem constant byte address 0x4 - core index']
  #allocation1 [shape = 'u32[72,128]{1,0:T(1,128)}', space=vmem, size = 0x9000, scoped, tag = 'internal scratch']
  %s0 = inlined_call_operand.vmem [shape: f32[1,18,8,128], index: 0, kind: input, shape index: {}]
  %s1 = inlined_call_operand.vmem [shape: f32[1,8,128], index: 1, kind: output, shape index: {}]
  %s2 = sld [smem:[#allocation0]]
  $region14: #{iou_loss_sparse.1} parent=0
    _
  %s4 = ssub.s32 1, %s2
  %s5 = scalar_select 0, %s4, %s2
  // Predicated region
  $region2: #{iou_loss_sparse.1} parent=0 // pred_check
    _
  $region3: #{iou_loss_sparse.1} parent=0 // pred_check_branch
    %7 = sbr.rel (0) target = $region5
  $region4: #{iou_loss_sparse.1} parent=0 // pred_region
    _
  $region5: #{iou_loss_sparse.1} parent=0 // pred_fallthru
    _
  %v8 = vld [vmem:[%s0] sm:$0xff]
  %s9 = scalar_lea.vmem %s0, 8
  %v10 = vld [vmem:[%s9] sm:$0xff]
  %s11 = scalar_lea.vmem %s0, 24
  %v12 = vld [vmem:[%s11] sm:$0xff]
  %s13 = scalar_lea.vmem %s0, 32
  %v14 = vld [vmem:[%s13] sm:$0xff]
  %s15 = scalar_lea.vmem %s0, 48
  %v16 = vld [vmem:[%s15] sm:$0xff]
  %s17 = scalar_lea.vmem %s0, 56
  %v18 = vld [vmem:[%s17] sm:$0xff]
  %s19 = scalar_lea.vmem %s0, 64
  %v20 = vld [vmem:[%s19] sm:$0xff]
  %s21 = scalar_lea.vmem %s0, 72
  %v22 = vld [vmem:[%s21] sm:$0xff]
  %s23 = scalar_lea.vmem %s0, 88
  %v24 = vld [vmem:[%s23] sm:$0xff]
  %s25 = scalar_lea.vmem %s0, 96
  %v26 = vld [vmem:[%s25] sm:$0xff]
  %s27 = scalar_lea.vmem %s0, 112
  %v28 = vld [vmem:[%s27] sm:$0xff]
  %s29 = scalar_lea.vmem %s0, 120
  %v30 = vld [vmem:[%s29] sm:$0xff]
  %v31 = vsub.f32 %v8, %v20
  %v32 = vsub.f32 %v10, %v22
  %v33 = vmul.f32 %v12, 0.5
  %v34 = vmul.f32 %v14, 0.5
  %v35 = vsub.f32 0.0, %v33
  %v36 = vsub.f32 0.0, %v34
  %v37 = vmul.f32 %v16, %v33
  %v38 = vmul.f32 %v18, %v34
  %v39 = vsub.f32 %v37, %v38
  %v40 = vmul.f32 %v18, %v33
  %v41 = vmul.f32 %v16, %v34
  %v42 = vadd.f32 %v40, %v41
  %v43 = vadd.f32 %v39, %v31
  %v44 = vadd.f32 %v42, %v32
  %v45 = vmul.f32 %v16, %v35
  %v46 = vsub.f32 %v45, %v38
  %v47 = vmul.f32 %v18, %v35
  %v48 = vadd.f32 %v47, %v41
  %v49 = vadd.f32 %v46, %v31
  %v50 = vadd.f32 %v48, %v32
  %v51 = vmul.f32 %v18, %v36
  %v52 = vsub.f32 %v45, %v51
  %v53 = vmul.f32 %v16, %v36
  %v54 = vadd.f32 %v47, %v53
  %v55 = vadd.f32 %v52, %v31
  %v56 = vadd.f32 %v54, %v32
  %v57 = vsub.f32 %v37, %v51
  %v58 = vadd.f32 %v40, %v53
  %v59 = vadd.f32 %v57, %v31
  %v60 = vadd.f32 %v58, %v32
  %v61 = vmul.f32 %v24, 0.5
  %v62 = vmul.f32 %v26, 0.5
  %v63 = vsub.f32 0.0, %v61
  %v64 = vsub.f32 0.0, %v62
  %v65 = vmul.f32 %v28, %v61
  %v66 = vmul.f32 %v30, %v62
  %v67 = vsub.f32 %v65, %v66
  %v68 = vmul.f32 %v30, %v61
  %v69 = vmul.f32 %v28, %v62
  %v70 = vadd.f32 %v68, %v69
  %v71 = vmul.f32 %v28, %v63
  %v72 = vsub.f32 %v71, %v66
  %v73 = vmul.f32 %v30, %v63
  %v74 = vadd.f32 %v73, %v69
  %v75 = vmul.f32 %v30, %v64
  %v76 = vsub.f32 %v71, %v75
  %v77 = vmul.f32 %v28, %v64
  %v78 = vadd.f32 %v73, %v77
  %v79 = vsub.f32 %v65, %v75
  %v80 = vadd.f32 %v68, %v77
  %v81 = vsub.f32 %v49, %v43
  %v82 = vsub.f32 %v50, %v44
  %v83 = vmul.f32 %v81, %v44
  %v84 = vmul.f32 %v82, %v43
  %v85 = vsub.f32 %v83, %v84
  %v86 = vsub.f32 %v55, %v49
  %v87 = vsub.f32 %v56, %v50
  %v88 = vmul.f32 %v86, %v50
  %v89 = vmul.f32 %v87, %v49
  %v90 = vsub.f32 %v88, %v89
  %v91 = vsub.f32 %v59, %v55
  %v92 = vsub.f32 %v60, %v56
  %v93 = vmul.f32 %v91, %v56
  %v94 = vmul.f32 %v92, %v55
  %v95 = vsub.f32 %v93, %v94
  %v96 = vsub.f32 %v43, %v59
  %v97 = vsub.f32 %v44, %v60
  %v98 = vmul.f32 %v96, %v60
  %v99 = vmul.f32 %v97, %v59
  %v100 = vsub.f32 %v98, %v99
  %v101 = vsub.f32 %v72, %v67
  %v102 = vsub.f32 %v74, %v70
  %v103 = vmul.f32 %v101, %v70
  %v104 = vmul.f32 %v102, %v67
  %v105 = vsub.f32 %v103, %v104
  %v106 = vsub.f32 %v76, %v72
  %v107 = vsub.f32 %v78, %v74
  %v108 = vmul.f32 %v106, %v74
  %v109 = vmul.f32 %v107, %v72
  %v110 = vsub.f32 %v108, %v109
  %v111 = vsub.f32 %v79, %v76
  %v112 = vsub.f32 %v80, %v78
  %v113 = vmul.f32 %v111, %v78
  %v114 = vmul.f32 %v112, %v76
  %v115 = vsub.f32 %v113, %v114
  %v116 = vsub.f32 %v67, %v79
  %v117 = vsub.f32 %v70, %v80
  %v118 = vmul.f32 %v116, %v80
  %v119 = vmul.f32 %v117, %v79
  %v120 = vsub.f32 %v118, %v119
  %v121 = vmul.f32 %v101, %v44
  %v122 = vmul.f32 %v102, %v43
  %v123 = vsub.f32 %v121, %v122
  %v124 = vsub.f32 %v123, %v105
  %v125 = vmul.f32 %v106, %v44
  %v126 = vmul.f32 %v107, %v43
  %v127 = vsub.f32 %v125, %v126
  %v128 = vsub.f32 %v127, %v110
  %v129 = vmul.f32 %v111, %v44
  %v130 = vmul.f32 %v112, %v43
  %v131 = vsub.f32 %v129, %v130
  %v132 = vsub.f32 %v131, %v115
  %v133 = vmul.f32 %v116, %v44
  %v134 = vmul.f32 %v117, %v43
  %v135 = vsub.f32 %v133, %v134
  %v136 = vsub.f32 %v135, %v120
  %v137 = vmul.f32 %v101, %v50
  %v138 = vmul.f32 %v102, %v49
  %v139 = vsub.f32 %v137, %v138
  %v140 = vsub.f32 %v139, %v105
  %v141 = vmul.f32 %v106, %v50
  %v142 = vmul.f32 %v107, %v49
  %v143 = vsub.f32 %v141, %v142
  %v144 = vsub.f32 %v143, %v110
  %v145 = vmul.f32 %v111, %v50
  %v146 = vmul.f32 %v112, %v49
  %v147 = vsub.f32 %v145, %v146
  %v148 = vsub.f32 %v147, %v115
  %v149 = vmul.f32 %v116, %v50
  %v150 = vmul.f32 %v117, %v49
  %v151 = vsub.f32 %v149, %v150
  %v152 = vsub.f32 %v151, %v120
  %v153 = vmul.f32 %v101, %v56
  %v154 = vmul.f32 %v102, %v55
  %v155 = vsub.f32 %v153, %v154
  %v156 = vsub.f32 %v155, %v105
  %v157 = vmul.f32 %v106, %v56
  %v158 = vmul.f32 %v107, %v55
  %v159 = vsub.f32 %v157, %v158
  %v160 = vsub.f32 %v159, %v110
  %v161 = vmul.f32 %v111, %v56
  %v162 = vmul.f32 %v112, %v55
  %v163 = vsub.f32 %v161, %v162
  %v164 = vsub.f32 %v163, %v115
  %v165 = vmul.f32 %v116, %v56
  %v166 = vmul.f32 %v117, %v55
  %v167 = vsub.f32 %v165, %v166
  %v168 = vsub.f32 %v167, %v120
  %v169 = vmul.f32 %v101, %v60
  %v170 = vmul.f32 %v102, %v59
  %v171 = vsub.f32 %v169, %v170
  %v172 = vsub.f32 %v171, %v105
  %v173 = vmul.f32 %v106, %v60
  %v174 = vmul.f32 %v107, %v59
  %v175 = vsub.f32 %v173, %v174
  %v176 = vsub.f32 %v175, %v110
  %v177 = vmul.f32 %v111, %v60
  %v178 = vmul.f32 %v112, %v59
  %v179 = vsub.f32 %v177, %v178
  %v180 = vsub.f32 %v179, %v115
  %v181 = vmul.f32 %v116, %v60
  %v182 = vmul.f32 %v117, %v59
  %v183 = vsub.f32 %v181, %v182
  %v184 = vsub.f32 %v183, %v120
  %v185 = vsub.f32 %v140, %v124
  %v186 = vand.u32 2147483647, %v185
  %vm187 = vcmp.le.f32.partialorder %v186, 1e-20
  %v188 = vsel %vm187, 1.0, %v185
  %v189 = vrcp.pop %v188
  %v190 = vsub.f32 0.0, %v124
  %v191 = vmul.f32 %v190, %v189
  %vm192 = vmxor %vm187, 1
  %vm193 = vcmp.gt.f32.partialorder %v185, 0.0
  %vm194 = vmand %vm192, %vm193
  %v195 = vmax.f32 %v191, 0.0
  %v196 = vsel %vm194, %v195, 0.0
  %vm197 = vcmp.lt.f32.partialorder %v185, 0.0
  %vm198 = vmand %vm192, %vm197
  %v199 = vmin.f32 %v191, 1.0
  %v200 = vsel %vm198, %v199, 1.0
  %vm201 = vcmp.lt.f32.partialorder %v124, 0.0
  %vm202 = vmand %vm187, %vm201
  %v203 = vsel %vm202, 2.0, %v196
  %v204 = vsub.f32 %v144, %v128
  %v205 = vand.u32 2147483647, %v204
  %vm206 = vcmp.le.f32.partialorder %v205, 1e-20
  %v207 = vsel %vm206, 1.0, %v204
  %v208 = vrcp.pop %v207
  %v209 = vsub.f32 0.0, %v128
  %v210 = vmul.f32 %v209, %v208
  %vm211 = vmxor %vm206, 1
  %vm212 = vcmp.gt.f32.partialorder %v204, 0.0
  %vm213 = vmand %vm211, %vm212
  %v214 = vmax.f32 %v203, %v210
  %v215 = vsel %vm213, %v214, %v203
  %vm216 = vcmp.lt.f32.partialorder %v204, 0.0
  %vm217 = vmand %vm211, %vm216
  %v218 = vmin.f32 %v200, %v210
  %v219 = vsel %vm217, %v218, %v200
  %vm220 = vcmp.lt.f32.partialorder %v128, 0.0
  %vm221 = vmand %vm206, %vm220
  %v222 = vsel %vm221, 2.0, %v215
  %v223 = vsub.f32 %v148, %v132
  %v224 = vand.u32 2147483647, %v223
  %vm225 = vcmp.le.f32.partialorder %v224, 1e-20
  %v226 = vsel %vm225, 1.0, %v223
  %v227 = vrcp.pop %v226
  %v228 = vsub.f32 0.0, %v132
  %v229 = vmul.f32 %v228, %v227
  %vm230 = vmxor %vm225, 1
  %vm231 = vcmp.gt.f32.partialorder %v223, 0.0
  %vm232 = vmand %vm230, %vm231
  %v233 = vmax.f32 %v222, %v229
  %v234 = vsel %vm232, %v233, %v222
  %vm235 = vcmp.lt.f32.partialorder %v223, 0.0
  %vm236 = vmand %vm230, %vm235
  %v237 = vmin.f32 %v219, %v229
  %v238 = vsel %vm236, %v237, %v219
  %vm239 = vcmp.lt.f32.partialorder %v132, 0.0
  %vm240 = vmand %vm225, %vm239
  %v241 = vsel %vm240, 2.0, %v234
  %v242 = vsub.f32 %v152, %v136
  %v243 = vand.u32 2147483647, %v242
  %vm244 = vcmp.le.f32.partialorder %v243, 1e-20
  %v245 = vsel %vm244, 1.0, %v242
  %v246 = vrcp.pop %v245
  %v247 = vsub.f32 0.0, %v136
  %v248 = vmul.f32 %v247, %v246
  %vm249 = vmxor %vm244, 1
  %vm250 = vcmp.gt.f32.partialorder %v242, 0.0
  %vm251 = vmand %vm249, %vm250
  %v252 = vmax.f32 %v241, %v248
  %v253 = vsel %vm251, %v252, %v241
  %vm254 = vcmp.lt.f32.partialorder %v242, 0.0
  %vm255 = vmand %vm249, %vm254
  %v256 = vmin.f32 %v238, %v248
  %v257 = vsel %vm255, %v256, %v238
  %vm258 = vcmp.lt.f32.partialorder %v136, 0.0
  %vm259 = vmand %vm244, %vm258
  %v260 = vsel %vm259, 2.0, %v253
  %vm261 = vcmp.gt.f32.partialorder %v257, %v260
  %v262 = vsel %vm261, 1, 0
  %v263 = vcvt.s32.f32 %v262
  %v264 = vmul.f32 %v260, %v81
  %v265 = vadd.f32 %v43, %v264
  %v266 = vmul.f32 %v260, %v82
  %v267 = vadd.f32 %v44, %v266
  %v268 = vmul.f32 %v257, %v81
  %v269 = vadd.f32 %v43, %v268
  %v270 = vmul.f32 %v257, %v82
  %v271 = vadd.f32 %v44, %v270
  %v272 = vmul.f32 %v265, %v271
  %v273 = vmul.f32 %v267, %v269
  %v274 = vsub.f32 %v272, %v273
  %v275 = vmul.f32 %v263, %v274
  %v276 = vsub.f32 %v156, %v140
  %v277 = vand.u32 2147483647, %v276
  %vm278 = vcmp.le.f32.partialorder %v277, 1e-20
  %v279 = vsel %vm278, 1.0, %v276
  %v280 = vrcp.pop %v279
  %v281 = vsub.f32 0.0, %v140
  %v282 = vmul.f32 %v281, %v280
  %vm283 = vmxor %vm278, 1
  %vm284 = vcmp.gt.f32.partialorder %v276, 0.0
  %vm285 = vmand %vm283, %vm284
  %v286 = vmax.f32 %v282, 0.0
  %v287 = vsel %vm285, %v286, 0.0
  %vm288 = vcmp.lt.f32.partialorder %v276, 0.0
  %vm289 = vmand %vm283, %vm288
  %v290 = vmin.f32 %v282, 1.0
  %v291 = vsel %vm289, %v290, 1.0
  %vm292 = vcmp.lt.f32.partialorder %v140, 0.0
  %vm293 = vmand %vm278, %vm292
  %v294 = vsel %vm293, 2.0, %v287
  %v295 = vsub.f32 %v160, %v144
  %v296 = vand.u32 2147483647, %v295
  %vm297 = vcmp.le.f32.partialorder %v296, 1e-20
  %v298 = vsel %vm297, 1.0, %v295
  %v299 = vrcp.pop %v298
  %v300 = vsub.f32 0.0, %v144
  %v301 = vmul.f32 %v300, %v299
  %vm302 = vmxor %vm297, 1
  %vm303 = vcmp.gt.f32.partialorder %v295, 0.0
  %vm304 = vmand %vm302, %vm303
  %v305 = vmax.f32 %v294, %v301
  %v306 = vsel %vm304, %v305, %v294
  %vm307 = vcmp.lt.f32.partialorder %v295, 0.0
  %vm308 = vmand %vm302, %vm307
  %v309 = vmin.f32 %v291, %v301
  %v310 = vsel %vm308, %v309, %v291
  %vm311 = vcmp.lt.f32.partialorder %v144, 0.0
  %vm312 = vmand %vm297, %vm311
  %v313 = vsel %vm312, 2.0, %v306
  %v314 = vsub.f32 %v164, %v148
  %v315 = vand.u32 2147483647, %v314
  %vm316 = vcmp.le.f32.partialorder %v315, 1e-20
  %v317 = vsel %vm316, 1.0, %v314
  %v318 = vrcp.pop %v317
  %v319 = vsub.f32 0.0, %v148
  %v320 = vmul.f32 %v319, %v318
  %vm321 = vmxor %vm316, 1
  %vm322 = vcmp.gt.f32.partialorder %v314, 0.0
  %vm323 = vmand %vm321, %vm322
  %v324 = vmax.f32 %v313, %v320
  %v325 = vsel %vm323, %v324, %v313
  %vm326 = vcmp.lt.f32.partialorder %v314, 0.0
  %vm327 = vmand %vm321, %vm326
  %v328 = vmin.f32 %v310, %v320
  %v329 = vsel %vm327, %v328, %v310
  %vm330 = vcmp.lt.f32.partialorder %v148, 0.0
  %vm331 = vmand %vm316, %vm330
  %v332 = vsel %vm331, 2.0, %v325
  %v333 = vsub.f32 %v168, %v152
  %v334 = vand.u32 2147483647, %v333
  %vm335 = vcmp.le.f32.partialorder %v334, 1e-20
  %v336 = vsel %vm335, 1.0, %v333
  %v337 = vrcp.pop %v336
  %v338 = vsub.f32 0.0, %v152
  %v339 = vmul.f32 %v338, %v337
  %vm340 = vmxor %vm335, 1
  %vm341 = vcmp.gt.f32.partialorder %v333, 0.0
  %vm342 = vmand %vm340, %vm341
  %v343 = vmax.f32 %v332, %v339
  %v344 = vsel %vm342, %v343, %v332
  %vm345 = vcmp.lt.f32.partialorder %v333, 0.0
  %vm346 = vmand %vm340, %vm345
  %v347 = vmin.f32 %v329, %v339
  %v348 = vsel %vm346, %v347, %v329
  %vm349 = vcmp.lt.f32.partialorder %v152, 0.0
  %vm350 = vmand %vm335, %vm349
  %v351 = vsel %vm350, 2.0, %v344
  %vm352 = vcmp.gt.f32.partialorder %v348, %v351
  %v353 = vsel %vm352, 1, 0
  %v354 = vcvt.s32.f32 %v353
  %v355 = vmul.f32 %v351, %v86
  %v356 = vadd.f32 %v49, %v355
  %v357 = vmul.f32 %v351, %v87
  %v358 = vadd.f32 %v50, %v357
  %v359 = vmul.f32 %v348, %v86
  %v360 = vadd.f32 %v49, %v359
  %v361 = vmul.f32 %v348, %v87
  %v362 = vadd.f32 %v50, %v361
  %v363 = vmul.f32 %v356, %v362
  %v364 = vmul.f32 %v358, %v360
  %v365 = vsub.f32 %v363, %v364
  %v366 = vmul.f32 %v354, %v365
  %v367 = vadd.f32 %v275, %v366
  %v368 = vsub.f32 %v172, %v156
  %v369 = vand.u32 2147483647, %v368
  %vm370 = vcmp.le.f32.partialorder %v369, 1e-20
  %v371 = vsel %vm370, 1.0, %v368
  %v372 = vrcp.pop %v371
  %v373 = vsub.f32 0.0, %v156
  %v374 = vmul.f32 %v373, %v372
  %vm375 = vmxor %vm370, 1
  %vm376 = vcmp.gt.f32.partialorder %v368, 0.0
  %vm377 = vmand %vm375, %vm376
  %v378 = vmax.f32 %v374, 0.0
  %v379 = vsel %vm377, %v378, 0.0
  %vm380 = vcmp.lt.f32.partialorder %v368, 0.0
  %vm381 = vmand %vm375, %vm380
  %v382 = vmin.f32 %v374, 1.0
  %v383 = vsel %vm381, %v382, 1.0
  %vm384 = vcmp.lt.f32.partialorder %v156, 0.0
  %vm385 = vmand %vm370, %vm384
  %v386 = vsel %vm385, 2.0, %v379
  %v387 = vsub.f32 %v176, %v160
  %v388 = vand.u32 2147483647, %v387
  %vm389 = vcmp.le.f32.partialorder %v388, 1e-20
  %v390 = vsel %vm389, 1.0, %v387
  %v391 = vrcp.pop %v390
  %v392 = vsub.f32 0.0, %v160
  %v393 = vmul.f32 %v392, %v391
  %vm394 = vmxor %vm389, 1
  %vm395 = vcmp.gt.f32.partialorder %v387, 0.0
  %vm396 = vmand %vm394, %vm395
  %v397 = vmax.f32 %v386, %v393
  %v398 = vsel %vm396, %v397, %v386
  %vm399 = vcmp.lt.f32.partialorder %v387, 0.0
  %vm400 = vmand %vm394, %vm399
  %v401 = vmin.f32 %v383, %v393
  %v402 = vsel %vm400, %v401, %v383
  %vm403 = vcmp.lt.f32.partialorder %v160, 0.0
  %vm404 = vmand %vm389, %vm403
  %v405 = vsel %vm404, 2.0, %v398
  %v406 = vsub.f32 %v180, %v164
  %v407 = vand.u32 2147483647, %v406
  %vm408 = vcmp.le.f32.partialorder %v407, 1e-20
  %v409 = vsel %vm408, 1.0, %v406
  %v410 = vrcp.pop %v409
  %v411 = vsub.f32 0.0, %v164
  %v412 = vmul.f32 %v411, %v410
  %vm413 = vmxor %vm408, 1
  %vm414 = vcmp.gt.f32.partialorder %v406, 0.0
  %vm415 = vmand %vm413, %vm414
  %v416 = vmax.f32 %v405, %v412
  %v417 = vsel %vm415, %v416, %v405
  %vm418 = vcmp.lt.f32.partialorder %v406, 0.0
  %vm419 = vmand %vm413, %vm418
  %v420 = vmin.f32 %v402, %v412
  %v421 = vsel %vm419, %v420, %v402
  %vm422 = vcmp.lt.f32.partialorder %v164, 0.0
  %vm423 = vmand %vm408, %vm422
  %v424 = vsel %vm423, 2.0, %v417
  %v425 = vsub.f32 %v184, %v168
  %v426 = vand.u32 2147483647, %v425
  %vm427 = vcmp.le.f32.partialorder %v426, 1e-20
  %v428 = vsel %vm427, 1.0, %v425
  %v429 = vrcp.pop %v428
  %v430 = vsub.f32 0.0, %v168
  %v431 = vmul.f32 %v430, %v429
  %vm432 = vmxor %vm427, 1
  %vm433 = vcmp.gt.f32.partialorder %v425, 0.0
  %vm434 = vmand %vm432, %vm433
  %v435 = vmax.f32 %v424, %v431
  %v436 = vsel %vm434, %v435, %v424
  %vm437 = vcmp.lt.f32.partialorder %v425, 0.0
  %vm438 = vmand %vm432, %vm437
  %v439 = vmin.f32 %v421, %v431
  %v440 = vsel %vm438, %v439, %v421
  %vm441 = vcmp.lt.f32.partialorder %v168, 0.0
  %vm442 = vmand %vm427, %vm441
  %v443 = vsel %vm442, 2.0, %v436
  %vm444 = vcmp.gt.f32.partialorder %v440, %v443
  %v445 = vsel %vm444, 1, 0
  %v446 = vcvt.s32.f32 %v445
  %v447 = vmul.f32 %v443, %v91
  %v448 = vadd.f32 %v55, %v447
  %v449 = vmul.f32 %v443, %v92
  %v450 = vadd.f32 %v56, %v449
  %v451 = vmul.f32 %v440, %v91
  %v452 = vadd.f32 %v55, %v451
  %v453 = vmul.f32 %v440, %v92
  %v454 = vadd.f32 %v56, %v453
  %v455 = vmul.f32 %v448, %v454
  %v456 = vmul.f32 %v450, %v452
  %v457 = vsub.f32 %v455, %v456
  %v458 = vmul.f32 %v446, %v457
  %v459 = vadd.f32 %v367, %v458
  %v460 = vsub.f32 %v124, %v172
  %v461 = vand.u32 2147483647, %v460
  %vm462 = vcmp.le.f32.partialorder %v461, 1e-20
  %v463 = vsel %vm462, 1.0, %v460
  %v464 = vrcp.pop %v463
  %v465 = vsub.f32 0.0, %v172
  %v466 = vmul.f32 %v465, %v464
  %vm467 = vmxor %vm462, 1
  %vm468 = vcmp.gt.f32.partialorder %v460, 0.0
  %vm469 = vmand %vm467, %vm468
  %v470 = vmax.f32 %v466, 0.0
  %v471 = vsel %vm469, %v470, 0.0
  %vm472 = vcmp.lt.f32.partialorder %v460, 0.0
  %vm473 = vmand %vm467, %vm472
  %v474 = vmin.f32 %v466, 1.0
  %v475 = vsel %vm473, %v474, 1.0
  %vm476 = vcmp.lt.f32.partialorder %v172, 0.0
  %vm477 = vmand %vm462, %vm476
  %v478 = vsel %vm477, 2.0, %v471
  %v479 = vsub.f32 %v128, %v176
  %v480 = vand.u32 2147483647, %v479
  %vm481 = vcmp.le.f32.partialorder %v480, 1e-20
  %v482 = vsel %vm481, 1.0, %v479
  %v483 = vrcp.pop %v482
  %v484 = vsub.f32 0.0, %v176
  %v485 = vmul.f32 %v484, %v483
  %vm486 = vmxor %vm481, 1
  %vm487 = vcmp.gt.f32.partialorder %v479, 0.0
  %vm488 = vmand %vm486, %vm487
  %v489 = vmax.f32 %v478, %v485
  %v490 = vsel %vm488, %v489, %v478
  %vm491 = vcmp.lt.f32.partialorder %v479, 0.0
  %vm492 = vmand %vm486, %vm491
  %v493 = vmin.f32 %v475, %v485
  %v494 = vsel %vm492, %v493, %v475
  %vm495 = vcmp.lt.f32.partialorder %v176, 0.0
  %vm496 = vmand %vm481, %vm495
  %v497 = vsel %vm496, 2.0, %v490
  %v498 = vsub.f32 %v132, %v180
  %v499 = vand.u32 2147483647, %v498
  %vm500 = vcmp.le.f32.partialorder %v499, 1e-20
  %v501 = vsel %vm500, 1.0, %v498
  %v502 = vrcp.pop %v501
  %v503 = vsub.f32 0.0, %v180
  %v504 = vmul.f32 %v503, %v502
  %vm505 = vmxor %vm500, 1
  %vm506 = vcmp.gt.f32.partialorder %v498, 0.0
  %vm507 = vmand %vm505, %vm506
  %v508 = vmax.f32 %v497, %v504
  %v509 = vsel %vm507, %v508, %v497
  %vm510 = vcmp.lt.f32.partialorder %v498, 0.0
  %vm511 = vmand %vm505, %vm510
  %v512 = vmin.f32 %v494, %v504
  %v513 = vsel %vm511, %v512, %v494
  %vm514 = vcmp.lt.f32.partialorder %v180, 0.0
  %vm515 = vmand %vm500, %vm514
  %v516 = vsel %vm515, 2.0, %v509
  %v517 = vsub.f32 %v136, %v184
  %v518 = vand.u32 2147483647, %v517
  %vm519 = vcmp.le.f32.partialorder %v518, 1e-20
  %v520 = vsel %vm519, 1.0, %v517
  %v521 = vrcp.pop %v520
  %v522 = vsub.f32 0.0, %v184
  %v523 = vmul.f32 %v522, %v521
  %vm524 = vmxor %vm519, 1
  %vm525 = vcmp.gt.f32.partialorder %v517, 0.0
  %vm526 = vmand %vm524, %vm525
  %v527 = vmax.f32 %v516, %v523
  %v528 = vsel %vm526, %v527, %v516
  %vm529 = vcmp.lt.f32.partialorder %v517, 0.0
  %vm530 = vmand %vm524, %vm529
  %v531 = vmin.f32 %v513, %v523
  %v532 = vsel %vm530, %v531, %v513
  %vm533 = vcmp.lt.f32.partialorder %v184, 0.0
  %vm534 = vmand %vm519, %vm533
  %v535 = vsel %vm534, 2.0, %v528
  %vm536 = vcmp.gt.f32.partialorder %v532, %v535
  %v537 = vsel %vm536, 1, 0
  %v538 = vcvt.s32.f32 %v537
  %v539 = vmul.f32 %v535, %v96
  %v540 = vadd.f32 %v59, %v539
  %v541 = vmul.f32 %v535, %v97
  %v542 = vadd.f32 %v60, %v541
  %v543 = vmul.f32 %v532, %v96
  %v544 = vadd.f32 %v59, %v543
  %v545 = vmul.f32 %v532, %v97
  %v546 = vadd.f32 %v60, %v545
  %v547 = vmul.f32 %v540, %v546
  %v548 = vmul.f32 %v542, %v544
  %v549 = vsub.f32 %v547, %v548
  %v550 = vmul.f32 %v538, %v549
  %v551 = vadd.f32 %v459, %v550
  %v552 = vmul.f32 %v81, %v70
  %v553 = vmul.f32 %v82, %v67
  %v554 = vsub.f32 %v552, %v553
  %v555 = vsub.f32 %v554, %v85
  %v556 = vmul.f32 %v86, %v70
  %v557 = vmul.f32 %v87, %v67
  %v558 = vsub.f32 %v556, %v557
  %v559 = vsub.f32 %v558, %v90
  %v560 = vmul.f32 %v91, %v70
  %v561 = vmul.f32 %v92, %v67
  %v562 = vsub.f32 %v560, %v561
  %v563 = vsub.f32 %v562, %v95
  %v564 = vmul.f32 %v96, %v70
  %v565 = vmul.f32 %v97, %v67
  %v566 = vsub.f32 %v564, %v565
  %v567 = vsub.f32 %v566, %v100
  %v568 = vmul.f32 %v81, %v74
  %v569 = vmul.f32 %v82, %v72
  %v570 = vsub.f32 %v568, %v569
  %v571 = vsub.f32 %v570, %v85
  %v572 = vmul.f32 %v86, %v74
  %v573 = vmul.f32 %v87, %v72
  %v574 = vsub.f32 %v572, %v573
  %v575 = vsub.f32 %v574, %v90
  %v576 = vmul.f32 %v91, %v74
  %v577 = vmul.f32 %v92, %v72
  %v578 = vsub.f32 %v576, %v577
  %v579 = vsub.f32 %v578, %v95
  %v580 = vmul.f32 %v96, %v74
  %v581 = vmul.f32 %v97, %v72
  %v582 = vsub.f32 %v580, %v581
  %v583 = vsub.f32 %v582, %v100
  %v584 = vmul.f32 %v81, %v78
  %v585 = vmul.f32 %v82, %v76
  %v586 = vsub.f32 %v584, %v585
  %v587 = vsub.f32 %v586, %v85
  %v588 = vmul.f32 %v86, %v78
  %v589 = vmul.f32 %v87, %v76
  %v590 = vsub.f32 %v588, %v589
  %v591 = vsub.f32 %v590, %v90
  %v592 = vmul.f32 %v91, %v78
  %v593 = vmul.f32 %v92, %v76
  %v594 = vsub.f32 %v592, %v593
  %v595 = vsub.f32 %v594, %v95
  %v596 = vmul.f32 %v96, %v78
  %v597 = vmul.f32 %v97, %v76
  %v598 = vsub.f32 %v596, %v597
  %v599 = vsub.f32 %v598, %v100
  %v600 = vmul.f32 %v81, %v80
  %v601 = vmul.f32 %v82, %v79
  %v602 = vsub.f32 %v600, %v601
  %v603 = vsub.f32 %v602, %v85
  %v604 = vmul.f32 %v86, %v80
  %v605 = vmul.f32 %v87, %v79
  %v606 = vsub.f32 %v604, %v605
  %v607 = vsub.f32 %v606, %v90
  %v608 = vmul.f32 %v91, %v80
  %v609 = vmul.f32 %v92, %v79
  %v610 = vsub.f32 %v608, %v609
  %v611 = vsub.f32 %v610, %v95
  %v612 = vmul.f32 %v96, %v80
  %v613 = vmul.f32 %v97, %v79
  %v614 = vsub.f32 %v612, %v613
  %v615 = vsub.f32 %v614, %v100
  %v616 = vsub.f32 %v571, %v555
  %v617 = vand.u32 2147483647, %v616
  %vm618 = vcmp.le.f32.partialorder %v617, 1e-20
  %v619 = vsel %vm618, 1.0, %v616
  %v620 = vrcp.pop %v619
  %v621 = vsub.f32 0.0, %v555
  %v622 = vmul.f32 %v621, %v620
  %vm623 = vmxor %vm618, 1
  %vm624 = vcmp.gt.f32.partialorder %v616, 0.0
  %vm625 = vmand %vm623, %vm624
  %v626 = vmax.f32 %v622, 0.0
  %v627 = vsel %vm625, %v626, 0.0
  %vm628 = vcmp.lt.f32.partialorder %v616, 0.0
  %vm629 = vmand %vm623, %vm628
  %v630 = vmin.f32 %v622, 1.0
  %v631 = vsel %vm629, %v630, 1.0
  %vm632 = vcmp.le.f32.partialorder %v555, 0.0
  %vm633 = vmand %vm618, %vm632
  %v634 = vsel %vm633, 2.0, %v627
  %v635 = vsub.f32 %v575, %v559
  %v636 = vand.u32 2147483647, %v635
  %vm637 = vcmp.le.f32.partialorder %v636, 1e-20
  %v638 = vsel %vm637, 1.0, %v635
  %v639 = vrcp.pop %v638
  %v640 = vsub.f32 0.0, %v559
  %v641 = vmul.f32 %v640, %v639
  %vm642 = vmxor %vm637, 1
  %vm643 = vcmp.gt.f32.partialorder %v635, 0.0
  %vm644 = vmand %vm642, %vm643
  %v645 = vmax.f32 %v634, %v641
  %v646 = vsel %vm644, %v645, %v634
  %vm647 = vcmp.lt.f32.partialorder %v635, 0.0
  %vm648 = vmand %vm642, %vm647
  %v649 = vmin.f32 %v631, %v641
  %v650 = vsel %vm648, %v649, %v631
  %vm651 = vcmp.le.f32.partialorder %v559, 0.0
  %vm652 = vmand %vm637, %vm651
  %v653 = vsel %vm652, 2.0, %v646
  %v654 = vsub.f32 %v579, %v563
  %v655 = vand.u32 2147483647, %v654
  %vm656 = vcmp.le.f32.partialorder %v655, 1e-20
  %v657 = vsel %vm656, 1.0, %v654
  %v658 = vrcp.pop %v657
  %v659 = vsub.f32 0.0, %v563
  %v660 = vmul.f32 %v659, %v658
  %vm661 = vmxor %vm656, 1
  %vm662 = vcmp.gt.f32.partialorder %v654, 0.0
  %vm663 = vmand %vm661, %vm662
  %v664 = vmax.f32 %v653, %v660
  %v665 = vsel %vm663, %v664, %v653
  %vm666 = vcmp.lt.f32.partialorder %v654, 0.0
  %vm667 = vmand %vm661, %vm666
  %v668 = vmin.f32 %v650, %v660
  %v669 = vsel %vm667, %v668, %v650
  %vm670 = vcmp.le.f32.partialorder %v563, 0.0
  %vm671 = vmand %vm656, %vm670
  %v672 = vsel %vm671, 2.0, %v665
  %v673 = vsub.f32 %v583, %v567
  %v674 = vand.u32 2147483647, %v673
  %vm675 = vcmp.le.f32.partialorder %v674, 1e-20
  %v676 = vsel %vm675, 1.0, %v673
  %v677 = vrcp.pop %v676
  %v678 = vsub.f32 0.0, %v567
  %v679 = vmul.f32 %v678, %v677
  %vm680 = vmxor %vm675, 1
  %vm681 = vcmp.gt.f32.partialorder %v673, 0.0
  %vm682 = vmand %vm680, %vm681
  %v683 = vmax.f32 %v672, %v679
  %v684 = vsel %vm682, %v683, %v672
  %vm685 = vcmp.lt.f32.partialorder %v673, 0.0
  %vm686 = vmand %vm680, %vm685
  %v687 = vmin.f32 %v669, %v679
  %v688 = vsel %vm686, %v687, %v669
  %vm689 = vcmp.le.f32.partialorder %v567, 0.0
  %vm690 = vmand %vm675, %vm689
  %v691 = vsel %vm690, 2.0, %v684
  %vm692 = vcmp.gt.f32.partialorder %v688, %v691
  %v693 = vsel %vm692, 1, 0
  %v694 = vcvt.s32.f32 %v693
  %v695 = vmul.f32 %v691, %v101
  %v696 = vadd.f32 %v67, %v695
  %v697 = vmul.f32 %v691, %v102
  %v698 = vadd.f32 %v70, %v697
  %v699 = vmul.f32 %v688, %v101
  %v700 = vadd.f32 %v67, %v699
  %v701 = vmul.f32 %v688, %v102
  %v702 = vadd.f32 %v70, %v701
  %v703 = vmul.f32 %v696, %v702
  %v704 = vmul.f32 %v698, %v700
  %v705 = vsub.f32 %v703, %v704
  %v706 = vmul.f32 %v694, %v705
  %v707 = vsub.f32 %v587, %v571
  %v708 = vand.u32 2147483647, %v707
  %vm709 = vcmp.le.f32.partialorder %v708, 1e-20
  %v710 = vsel %vm709, 1.0, %v707
  %v711 = vrcp.pop %v710
  %v712 = vsub.f32 0.0, %v571
  %v713 = vmul.f32 %v712, %v711
  %vm714 = vmxor %vm709, 1
  %vm715 = vcmp.gt.f32.partialorder %v707, 0.0
  %vm716 = vmand %vm714, %vm715
  %v717 = vmax.f32 %v713, 0.0
  %v718 = vsel %vm716, %v717, 0.0
  %vm719 = vcmp.lt.f32.partialorder %v707, 0.0
  %vm720 = vmand %vm714, %vm719
  %v721 = vmin.f32 %v713, 1.0
  %v722 = vsel %vm720, %v721, 1.0
  %vm723 = vcmp.le.f32.partialorder %v571, 0.0
  %vm724 = vmand %vm709, %vm723
  %v725 = vsel %vm724, 2.0, %v718
  %v726 = vsub.f32 %v591, %v575
  %v727 = vand.u32 2147483647, %v726
  %vm728 = vcmp.le.f32.partialorder %v727, 1e-20
  %v729 = vsel %vm728, 1.0, %v726
  %v730 = vrcp.pop %v729
  %v731 = vsub.f32 0.0, %v575
  %v732 = vmul.f32 %v731, %v730
  %vm733 = vmxor %vm728, 1
  %vm734 = vcmp.gt.f32.partialorder %v726, 0.0
  %vm735 = vmand %vm733, %vm734
  %v736 = vmax.f32 %v725, %v732
  %v737 = vsel %vm735, %v736, %v725
  %vm738 = vcmp.lt.f32.partialorder %v726, 0.0
  %vm739 = vmand %vm733, %vm738
  %v740 = vmin.f32 %v722, %v732
  %v741 = vsel %vm739, %v740, %v722
  %vm742 = vcmp.le.f32.partialorder %v575, 0.0
  %vm743 = vmand %vm728, %vm742
  %v744 = vsel %vm743, 2.0, %v737
  %v745 = vsub.f32 %v595, %v579
  %v746 = vand.u32 2147483647, %v745
  %vm747 = vcmp.le.f32.partialorder %v746, 1e-20
  %v748 = vsel %vm747, 1.0, %v745
  %v749 = vrcp.pop %v748
  %v750 = vsub.f32 0.0, %v579
  %v751 = vmul.f32 %v750, %v749
  %vm752 = vmxor %vm747, 1
  %vm753 = vcmp.gt.f32.partialorder %v745, 0.0
  %vm754 = vmand %vm752, %vm753
  %v755 = vmax.f32 %v744, %v751
  %v756 = vsel %vm754, %v755, %v744
  %vm757 = vcmp.lt.f32.partialorder %v745, 0.0
  %vm758 = vmand %vm752, %vm757
  %v759 = vmin.f32 %v741, %v751
  %v760 = vsel %vm758, %v759, %v741
  %vm761 = vcmp.le.f32.partialorder %v579, 0.0
  %vm762 = vmand %vm747, %vm761
  %v763 = vsel %vm762, 2.0, %v756
  %v764 = vsub.f32 %v599, %v583
  %v765 = vand.u32 2147483647, %v764
  %vm766 = vcmp.le.f32.partialorder %v765, 1e-20
  %v767 = vsel %vm766, 1.0, %v764
  %v768 = vrcp.pop %v767
  %v769 = vsub.f32 0.0, %v583
  %v770 = vmul.f32 %v769, %v768
  %vm771 = vmxor %vm766, 1
  %vm772 = vcmp.gt.f32.partialorder %v764, 0.0
  %vm773 = vmand %vm771, %vm772
  %v774 = vmax.f32 %v763, %v770
  %v775 = vsel %vm773, %v774, %v763
  %vm776 = vcmp.lt.f32.partialorder %v764, 0.0
  %vm777 = vmand %vm771, %vm776
  %v778 = vmin.f32 %v760, %v770
  %v779 = vsel %vm777, %v778, %v760
  %vm780 = vcmp.le.f32.partialorder %v583, 0.0
  %vm781 = vmand %vm766, %vm780
  %v782 = vsel %vm781, 2.0, %v775
  %vm783 = vcmp.gt.f32.partialorder %v779, %v782
  %v784 = vsel %vm783, 1, 0
  %v785 = vcvt.s32.f32 %v784
  %v786 = vmul.f32 %v782, %v106
  %v787 = vadd.f32 %v72, %v786
  %v788 = vmul.f32 %v782, %v107
  %v789 = vadd.f32 %v74, %v788
  %v790 = vmul.f32 %v779, %v106
  %v791 = vadd.f32 %v72, %v790
  %v792 = vmul.f32 %v779, %v107
  %v793 = vadd.f32 %v74, %v792
  %v794 = vmul.f32 %v787, %v793
  %v795 = vmul.f32 %v789, %v791
  %v796 = vsub.f32 %v794, %v795
  %v797 = vmul.f32 %v785, %v796
  %v798 = vadd.f32 %v706, %v797
  %v799 = vsub.f32 %v603, %v587
  %v800 = vand.u32 2147483647, %v799
  %vm801 = vcmp.le.f32.partialorder %v800, 1e-20
  %v802 = vsel %vm801, 1.0, %v799
  %v803 = vrcp.pop %v802
  %v804 = vsub.f32 0.0, %v587
  %v805 = vmul.f32 %v804, %v803
  %vm806 = vmxor %vm801, 1
  %vm807 = vcmp.gt.f32.partialorder %v799, 0.0
  %vm808 = vmand %vm806, %vm807
  %v809 = vmax.f32 %v805, 0.0
  %v810 = vsel %vm808, %v809, 0.0
  %vm811 = vcmp.lt.f32.partialorder %v799, 0.0
  %vm812 = vmand %vm806, %vm811
  %v813 = vmin.f32 %v805, 1.0
  %v814 = vsel %vm812, %v813, 1.0
  %vm815 = vcmp.le.f32.partialorder %v587, 0.0
  %vm816 = vmand %vm801, %vm815
  %v817 = vsel %vm816, 2.0, %v810
  %v818 = vsub.f32 %v607, %v591
  %v819 = vand.u32 2147483647, %v818
  %vm820 = vcmp.le.f32.partialorder %v819, 1e-20
  %v821 = vsel %vm820, 1.0, %v818
  %v822 = vrcp.pop %v821
  %v823 = vsub.f32 0.0, %v591
  %v824 = vmul.f32 %v823, %v822
  %vm825 = vmxor %vm820, 1
  %vm826 = vcmp.gt.f32.partialorder %v818, 0.0
  %vm827 = vmand %vm825, %vm826
  %v828 = vmax.f32 %v817, %v824
  %v829 = vsel %vm827, %v828, %v817
  %vm830 = vcmp.lt.f32.partialorder %v818, 0.0
  %vm831 = vmand %vm825, %vm830
  %v832 = vmin.f32 %v814, %v824
  %v833 = vsel %vm831, %v832, %v814
  %vm834 = vcmp.le.f32.partialorder %v591, 0.0
  %vm835 = vmand %vm820, %vm834
  %v836 = vsel %vm835, 2.0, %v829
  %v837 = vsub.f32 %v611, %v595
  %v838 = vand.u32 2147483647, %v837
  %vm839 = vcmp.le.f32.partialorder %v838, 1e-20
  %v840 = vsel %vm839, 1.0, %v837
  %v841 = vrcp.pop %v840
  %v842 = vsub.f32 0.0, %v595
  %v843 = vmul.f32 %v842, %v841
  %vm844 = vmxor %vm839, 1
  %vm845 = vcmp.gt.f32.partialorder %v837, 0.0
  %vm846 = vmand %vm844, %vm845
  %v847 = vmax.f32 %v836, %v843
  %v848 = vsel %vm846, %v847, %v836
  %vm849 = vcmp.lt.f32.partialorder %v837, 0.0
  %vm850 = vmand %vm844, %vm849
  %v851 = vmin.f32 %v833, %v843
  %v852 = vsel %vm850, %v851, %v833
  %vm853 = vcmp.le.f32.partialorder %v595, 0.0
  %vm854 = vmand %vm839, %vm853
  %v855 = vsel %vm854, 2.0, %v848
  %v856 = vsub.f32 %v615, %v599
  %v857 = vand.u32 2147483647, %v856
  %vm858 = vcmp.le.f32.partialorder %v857, 1e-20
  %v859 = vsel %vm858, 1.0, %v856
  %v860 = vrcp.pop %v859
  %v861 = vsub.f32 0.0, %v599
  %v862 = vmul.f32 %v861, %v860
  %vm863 = vmxor %vm858, 1
  %vm864 = vcmp.gt.f32.partialorder %v856, 0.0
  %vm865 = vmand %vm863, %vm864
  %v866 = vmax.f32 %v855, %v862
  %v867 = vsel %vm865, %v866, %v855
  %vm868 = vcmp.lt.f32.partialorder %v856, 0.0
  %vm869 = vmand %vm863, %vm868
  %v870 = vmin.f32 %v852, %v862
  %v871 = vsel %vm869, %v870, %v852
  %vm872 = vcmp.le.f32.partialorder %v599, 0.0
  %vm873 = vmand %vm858, %vm872
  %v874 = vsel %vm873, 2.0, %v867
  %vm875 = vcmp.gt.f32.partialorder %v871, %v874
  %v876 = vsel %vm875, 1, 0
  %v877 = vcvt.s32.f32 %v876
  %v878 = vmul.f32 %v874, %v111
  %v879 = vadd.f32 %v76, %v878
  %v880 = vmul.f32 %v874, %v112
  %v881 = vadd.f32 %v78, %v880
  %v882 = vmul.f32 %v871, %v111
  %v883 = vadd.f32 %v76, %v882
  %v884 = vmul.f32 %v871, %v112
  %v885 = vadd.f32 %v78, %v884
  %v886 = vmul.f32 %v879, %v885
  %v887 = vmul.f32 %v881, %v883
  %v888 = vsub.f32 %v886, %v887
  %v889 = vmul.f32 %v877, %v888
  %v890 = vadd.f32 %v798, %v889
  %v891 = vsub.f32 %v555, %v603
  %v892 = vand.u32 2147483647, %v891
  %vm893 = vcmp.le.f32.partialorder %v892, 1e-20
  %v894 = vsel %vm893, 1.0, %v891
  %v895 = vrcp.pop %v894
  %v896 = vsub.f32 0.0, %v603
  %v897 = vmul.f32 %v896, %v895
  %vm898 = vmxor %vm893, 1
  %vm899 = vcmp.gt.f32.partialorder %v891, 0.0
  %vm900 = vmand %vm898, %vm899
  %v901 = vmax.f32 %v897, 0.0
  %v902 = vsel %vm900, %v901, 0.0
  %vm903 = vcmp.lt.f32.partialorder %v891, 0.0
  %vm904 = vmand %vm898, %vm903
  %v905 = vmin.f32 %v897, 1.0
  %v906 = vsel %vm904, %v905, 1.0
  %vm907 = vcmp.le.f32.partialorder %v603, 0.0
  %vm908 = vmand %vm893, %vm907
  %v909 = vsel %vm908, 2.0, %v902
  %v910 = vsub.f32 %v559, %v607
  %v911 = vand.u32 2147483647, %v910
  %vm912 = vcmp.le.f32.partialorder %v911, 1e-20
  %v913 = vsel %vm912, 1.0, %v910
  %v914 = vrcp.pop %v913
  %v915 = vsub.f32 0.0, %v607
  %v916 = vmul.f32 %v915, %v914
  %vm917 = vmxor %vm912, 1
  %vm918 = vcmp.gt.f32.partialorder %v910, 0.0
  %vm919 = vmand %vm917, %vm918
  %v920 = vmax.f32 %v909, %v916
  %v921 = vsel %vm919, %v920, %v909
  %vm922 = vcmp.lt.f32.partialorder %v910, 0.0
  %vm923 = vmand %vm917, %vm922
  %v924 = vmin.f32 %v906, %v916
  %v925 = vsel %vm923, %v924, %v906
  %vm926 = vcmp.le.f32.partialorder %v607, 0.0
  %vm927 = vmand %vm912, %vm926
  %v928 = vsel %vm927, 2.0, %v921
  %v929 = vsub.f32 %v563, %v611
  %v930 = vand.u32 2147483647, %v929
  %vm931 = vcmp.le.f32.partialorder %v930, 1e-20
  %v932 = vsel %vm931, 1.0, %v929
  %v933 = vrcp.pop %v932
  %v934 = vsub.f32 0.0, %v611
  %v935 = vmul.f32 %v934, %v933
  %vm936 = vmxor %vm931, 1
  %vm937 = vcmp.gt.f32.partialorder %v929, 0.0
  %vm938 = vmand %vm936, %vm937
  %v939 = vmax.f32 %v928, %v935
  %v940 = vsel %vm938, %v939, %v928
  %vm941 = vcmp.lt.f32.partialorder %v929, 0.0
  %vm942 = vmand %vm936, %vm941
  %v943 = vmin.f32 %v925, %v935
  %v944 = vsel %vm942, %v943, %v925
  %vm945 = vcmp.le.f32.partialorder %v611, 0.0
  %vm946 = vmand %vm931, %vm945
  %v947 = vsel %vm946, 2.0, %v940
  %v948 = vsub.f32 %v567, %v615
  %v949 = vand.u32 2147483647, %v948
  %vm950 = vcmp.le.f32.partialorder %v949, 1e-20
  %v951 = vsel %vm950, 1.0, %v948
  %v952 = vrcp.pop %v951
  %v953 = vsub.f32 0.0, %v615
  %v954 = vmul.f32 %v953, %v952
  %vm955 = vmxor %vm950, 1
  %vm956 = vcmp.gt.f32.partialorder %v948, 0.0
  %vm957 = vmand %vm955, %vm956
  %v958 = vmax.f32 %v947, %v954
  %v959 = vsel %vm957, %v958, %v947
  %vm960 = vcmp.lt.f32.partialorder %v948, 0.0
  %vm961 = vmand %vm955, %vm960
  %v962 = vmin.f32 %v944, %v954
  %v963 = vsel %vm961, %v962, %v944
  %vm964 = vcmp.le.f32.partialorder %v615, 0.0
  %vm965 = vmand %vm950, %vm964
  %v966 = vsel %vm965, 2.0, %v959
  %vm967 = vcmp.gt.f32.partialorder %v963, %v966
  %v968 = vsel %vm967, 1, 0
  %v969 = vcvt.s32.f32 %v968
  %v970 = vmul.f32 %v966, %v116
  %v971 = vadd.f32 %v79, %v970
  %v972 = vmul.f32 %v966, %v117
  %v973 = vadd.f32 %v80, %v972
  %v974 = vmul.f32 %v963, %v116
  %v975 = vadd.f32 %v79, %v974
  %v976 = vmul.f32 %v963, %v117
  %v977 = vadd.f32 %v80, %v976
  %v978 = vmul.f32 %v971, %v977
  %v979 = vmul.f32 %v973, %v975
  %v980 = vsub.f32 %v978, %v979
  %v981 = vmul.f32 %v969, %v980
  %v982 = vadd.f32 %v890, %v981
  %v983 = vadd.f32 %v551, %v982
  %v984 = vmul.f32 %v983, 0.5
  %v985 = vmax.f32 %v984, 0.0
  %s986 = scalar_lea.vmem %s0, 16
  %v987 = vld [vmem:[%s986] sm:$0xff]
  %s988 = scalar_lea.vmem %s0, 40
  %v989 = vld [vmem:[%s988] sm:$0xff]
  %s990 = scalar_lea.vmem %s0, 80
  %v991 = vld [vmem:[%s990] sm:$0xff]
  %s992 = scalar_lea.vmem %s0, 104
  %v993 = vld [vmem:[%s992] sm:$0xff]
  %v994 = vsub.f32 %v987, %v991
  %v995 = vmul.f32 %v989, 0.5
  %v996 = vmul.f32 %v993, 0.5
  %v997 = vadd.f32 %v994, %v995
  %v998 = vmin.f32 %v997, %v996
  %v999 = vsub.f32 %v994, %v995
  %v1000 = vsub.f32 0.0, %v996
  %v1001 = vmax.f32 %v999, %v1000
  %v1002 = vsub.f32 %v998, %v1001
  %v1003 = vmax.f32 %v1002, 0.0
  %v1004 = vmul.f32 %v985, %v1003
  %v1005 = vmul.f32 %v12, %v14
  %v1006 = vmul.f32 %v1005, %v989
  %v1007 = vmul.f32 %v24, %v26
  %v1008 = vmul.f32 %v1007, %v993
  %v1009 = vadd.f32 %v1006, %v1008
  %v1010 = vsub.f32 %v1009, %v1004
  %v1011 = vmax.f32 %v1010, 1e-06
  %v1012 = vrcp.pop %v1011
  %v1013 = vmul.f32 %v1011, %v1012
  %v1014 = vsub.f32 1.0, %v1013
  %v1015 = vmul.f32 %v1012, %v1014
  %v1016 = vadd.f32 %v1012, %v1015
  %vm1017 = vweird.f32 %v1011
  %vm1018 = vweird.f32 %v1012
  %vm1019 = vmor %vm1017, %vm1018
  %v1020 = vsel %vm1019, %v1012, %v1016
  %v1021 = vand.u32 2147483647, %v1011
  %vm1022 = vcmp.eq.f32.partialorder %v1021, 8.507059e+37
  %v1023 = vand.u32 %v1011, 2147483648
  %v1024 = vor.u32 1.1754944e-38, %v1023
  %v1025 = vsel %vm1022, %v1024, %v1020
  %v1026 = vmul.f32 %v1004, %v1025
  %v1027 = vmul.f32 %v1026, 2.0
  %v1028 = vsub.f32 %v1027, 1.0
  %s1029 = scalar_lea.vmem %s0, 128
  %v1030 = vld [vmem:[%s1029] sm:$0xff]
  %s1031 = scalar_lea.vmem %s0, 136
  %v1032 = vld [vmem:[%s1031] sm:$0xff]
  %vm1033 = vcmp.gt.f32.partialorder %v1032, 0.0
  %v1034 = vsub.f32 %v1030, %v1028
  %v1035 = vand.u32 2147483647, %v1034
  %v1036 = vsel %vm1033, %v1035, 0.0
  %v1037 = vadd.f32 %v1036, 0.0
  %1038 = vst [vmem:[%s1] sm:$0xff] %v1037
  // Predicated region
  $region6: #{iou_loss_sparse.1} parent=0 // pred_check
    _
  $region7: #{iou_loss_sparse.1} parent=0 // pred_check_branch
    %1040 = sbr.rel (0) target = $region9
  $region8: #{iou_loss_sparse.1} parent=0 // pred_region
    _
  $region9: #{iou_loss_sparse.1} parent=0 // pred_fallthru
    _
  // Predicated region
  $region10: #{iou_loss_sparse.1} parent=0 // pred_check
    _
  $region11: #{iou_loss_sparse.1} parent=0 // pred_check_branch
    %1042 = sbr.rel (0) target = $region13
  $region12: #{iou_loss_sparse.1} parent=0 // pred_region
    _
  $region13: #{iou_loss_sparse.1} parent=0 // pred_fallthru
    _

</llo_original>
